<compile_context>
chip_gen: v7x
topology: tpu7x:2x2x1
jax: 0.10.0
libtpu: 0.0.40
codegen_flags: <defaults>
</compile_context>

<pallas_src>
import functools

import jax
import jax.numpy as jnp
from jax.experimental import pallas as pl
from jax.experimental.pallas import tpu as pltpu

HIDDEN = 128
VMEM_TILE_BUDGET = 24 * 1024 * 1024   # budget used to cap the row tile estimate
VMEM_LIMIT_BYTES = 48 * 1024 * 1024   # raised scoped-VMEM limit (safe on v5e/v6e/v7x)


def _round_up(x: int, m: int) -> int:
    return ((x + m - 1) // m) * m


def _per_row_vmem_bytes(n_in: int) -> int:
    # f32 x tile (lane-padded to 128, double-buffered) + f32 h1/h2/product
    # intermediates + lane-dense out slab, with margin.
    return 8 * _round_up(n_in, 128) + 2048


def _plan(batch: int, n_in: int, tm_max: int, core_parallel: bool):
    """Returns (tm, rows, grid). `rows` is the row count the kernel sees;
    rows == batch means x needs no padding at all."""
    pb = _round_up(batch, 128)                       # lane-dense output granule
    tm_cap = (VMEM_TILE_BUDGET // _per_row_vmem_bytes(n_in)) // 128 * 128
    tm_cap = max(128, min(_round_up(tm_max, 128), tm_cap))
    if core_parallel and pb >= 256:
        # v7x: even number of equal blocks so both TensorCores get equal work.
        nb = max(2, 2 * pl.cdiv(pb, 2 * tm_cap))
        tm = _round_up(pl.cdiv(pb, nb), 128)
        return tm, nb * tm, nb                       # pad -> every block exact
    if pb <= tm_cap:
        return pb, pb, 1                             # single block (1-TC chips)
    # Large batch: stream tm_cap-row blocks; the last block is a Pallas partial
    # block (read-padded / write-masked), so no HBM copy of x is ever made.
    return tm_cap, batch, pl.cdiv(batch, tm_cap)


def _ffn_kernel(x_ref, w1_ref, b1_ref, w2_ref, b2_ref, w3_ref, b3_ref, o_ref,
                *, operand_dtype):
    # x: (tm, n_in) f32 | w1: (n_in, 128) | b1: (1, 128) f32
    # w2: (128, 128)    | b2: (1, 128) f32
    # w3: (1, 128) f32 (row vector) | b3: (1,) f32 in SMEM
    # o : (1, tm) f32 (lane-dense output row)
    x = x_ref[...].astype(operand_dtype)          # any operand cast stays in-kernel

    # Layer 1 (MXU, f32 accumulation) + ReLU.  Dropout(0.2) = identity in eval.
    h1 = jnp.dot(x, w1_ref[...], preferred_element_type=jnp.float32)
    h1 = jnp.maximum(h1 + b1_ref[...], 0.0)

    # Layer 2 (MXU) + ReLU.  Dropout(0.5) = identity in eval.
    h2 = jnp.dot(h1.astype(operand_dtype), w2_ref[...],
                 preferred_element_type=jnp.float32)
    h2 = jnp.maximum(h2 + b2_ref[...], 0.0)

    # Layer 3 (128 -> 1): VPU multiply + XLU lane reduce, written lane-dense.
    # TODO(synk): audit the sublane->lane relayout this reduce implies in the
    # MLIR; alternatives (MXU dot_general yielding (1, tm), vxpose-tiled
    # reduce) need a benchmark before switching.
    logits = jnp.sum(h2 * w3_ref[...], axis=-1)[None, :] + b3_ref[0]   # (1, tm)
    o_ref[...] = jax.nn.sigmoid(logits).astype(o_ref.dtype)


@functools.partial(jax.jit,
                   static_argnames=("tm_max", "operand_dtype", "core_parallel"))
def simple_ffn_forward(x, params, *, tm_max=8192, operand_dtype=jnp.float32,
                       core_parallel=False):
    """x: [batch, n_in] float32. Returns [batch, 1] float32 (eval-mode forward)."""
    w1, b1, w2, b2, w3, b3 = params
    batch, n_in = x.shape

    tm, rows, grid = _plan(batch, n_in, tm_max, core_parallel)
    if rows != batch:
        x = jnp.pad(x, ((0, rows - batch), (0, 0)))   # only small pads hit this

    # Weights/biases are tiny; cast/reshape them in the wrapper.
    w1q = w1.astype(operand_dtype)
    w2q = w2.astype(operand_dtype)
    b1r = b1.reshape(1, HIDDEN).astype(jnp.float32)
    b2r = b2.reshape(1, HIDDEN).astype(jnp.float32)
    w3r = w3.reshape(1, HIDDEN).astype(jnp.float32)   # row vector for VPU path
    b3r = b3.reshape(1).astype(jnp.float32)           # scalar, lives in SMEM

    flops = 2 * grid * tm * (n_in * HIDDEN + HIDDEN * HIDDEN + HIDDEN)
    bytes_accessed = (rows * n_in * 4
                      + w1q.size * w1q.dtype.itemsize
                      + w2q.size * w2q.dtype.itemsize
                      + (b1r.size + b2r.size + w3r.size + b3r.size) * 4
                      + rows * 4)

    dim_sem = (pltpu.CORE_PARALLEL,) if core_parallel else ("parallel",)
    kernel = functools.partial(_ffn_kernel, operand_dtype=jnp.dtype(operand_dtype))

    out = pl.pallas_call(
        kernel,
        out_shape=jax.ShapeDtypeStruct((1, rows), jnp.float32),
        grid_spec=pltpu.PrefetchScalarGridSpec(
            num_scalar_prefetch=0,
            grid=(grid,),
            in_specs=[
                pl.BlockSpec((tm, n_in), lambda i: (i, 0)),          # x tile
                pl.BlockSpec((n_in, HIDDEN), lambda i: (0, 0)),      # w1
                pl.BlockSpec((1, HIDDEN), lambda i: (0, 0)),         # b1
                pl.BlockSpec((HIDDEN, HIDDEN), lambda i: (0, 0)),    # w2
                pl.BlockSpec((1, HIDDEN), lambda i: (0, 0)),         # b2
                pl.BlockSpec((1, HIDDEN), lambda i: (0, 0)),         # w3 (row)
                pl.BlockSpec(memory_space=pltpu.MemorySpace.SMEM),   # b3 scalar
            ],
            out_specs=pl.BlockSpec((1, tm), lambda i: (0, i)),       # lane-dense
        ),
        compiler_params=pltpu.CompilerParams(
            dimension_semantics=dim_sem,
            vmem_limit_bytes=VMEM_LIMIT_BYTES),
        cost_estimate=pl.CostEstimate(
            flops=flops,
            transcendentals=grid * tm,
            bytes_accessed=bytes_accessed),
    )(x, w1q, b1r, w2q, b2r, w3r, b3r)

    return out[0, :batch].reshape(batch, 1)


def init_params(n_input_features: int, key):
    """Deterministic init matching SimpleFFN's shapes (Kaiming-uniform-ish).
    Weights stored as [in, out] so the kernel computes x @ W."""
    k1, k2, k3, k4, k5, k6 = jax.random.split(key, 6)

    def linear_init(kw, kb, fan_in, fan_out):
        bound = 1.0 / jnp.sqrt(jnp.float32(fan_in))
        w = jax.random.uniform(kw, (fan_in, fan_out), jnp.float32, -bound, bound)
        b = jax.random.uniform(kb, (fan_out,), jnp.float32, -bound, bound)
        return w, b

    w1, b1 = linear_init(k1, k2, n_input_features, HIDDEN)
    w2, b2 = linear_init(k3, k4, HIDDEN, HIDDEN)
    w3, b3 = linear_init(k5, k6, HIDDEN, 1)
    return (w1, b1, w2, b2, w3.reshape(HIDDEN), b3.reshape(1))


def reference_forward(x, params):
    """Pure-JAX f32 reference (same backend-default matmul precision as the kernel)."""
    w1, b1, w2, b2, w3, b3 = params
    h = jnp.maximum(jnp.dot(x, w1) + b1, 0.0)
    h = jnp.maximum(jnp.dot(h, w2) + b2, 0.0)
    return jax.nn.sigmoid(jnp.dot(h, w3.reshape(HIDDEN, 1)) + b3)


if __name__ == "__main__":
    key = jax.random.PRNGKey(0)
    kx, kp = jax.random.split(key)

    n_input_features = 32
    batch = 300  # not a multiple of 128 -> exercises the 128-pad, single-block path
    x = jax.random.normal(kx, (batch, n_input_features), jnp.float32)
    params = init_params(n_input_features, kp)
    y_ref = reference_forward(x, params)

    # Default plan: single 384-row block, grid=(1,).
    y = jax.block_until_ready(simple_ffn_forward(x, params))
    assert y.shape == (batch, 1), y.shape
    # Tolerance covers possible pass-count differences between Mosaic's and
    # XLA's default f32 MXU matmul paths; far tighter than bf16-operand error.
    assert jnp.allclose(y, y_ref, atol=2e-3, rtol=2e-3), (
        float(jnp.max(jnp.abs(y - y_ref))))

    # Force a multi-block grid with a partial (read-padded / write-masked)
    # edge block: tm=128 -> grid=ceil(300/128)=3, no padding of x.
    y2 = jax.block_until_ready(simple_ffn_forward(x, params, tm_max=128))
    assert y2.shape == (batch, 1), y2.shape
    assert jnp.allclose(y2, y_ref, atol=2e-3, rtol=2e-3), (
        float(jnp.max(jnp.abs(y2 - y_ref))))

    print("KERNEL_OK")
</pallas_src>

<mosaic_0001>
module attributes {stable_mosaic.version = 11 : i64} {
  func.func @_ffn_kernel(%arg0: i32, %arg1: memref<384x32xf32, #tpu.memory_space<vmem>>, %arg2: memref<32x128xf32, #tpu.memory_space<vmem>>, %arg3: memref<1x128xf32, #tpu.memory_space<vmem>>, %arg4: memref<128x128xf32, #tpu.memory_space<vmem>>, %arg5: memref<1x128xf32, #tpu.memory_space<vmem>>, %arg6: memref<1x128xf32, #tpu.memory_space<vmem>>, %arg7: memref<1xf32, #tpu.memory_space<smem>>, %arg8: memref<1x384xf32, #tpu.memory_space<vmem>>) attributes {dimension_semantics = [#tpu.dimension_semantics<parallel>], iteration_bounds = array<i64: 1>, scalar_prefetch = 0 : i64, scratch_operands = 0 : i64, tpu.core_type = #tpu.core_type<tc>, window_params = [{transform_indices = @transform_0, window_bounds = array<i64: 384, 32>}, {pipeline_mode = #tpu.pipeline_mode<synchronous>, transform_indices = @transform_1, window_bounds = array<i64: 32, 128>}, {pipeline_mode = #tpu.pipeline_mode<synchronous>, transform_indices = @transform_2, window_bounds = array<i64: 1, 128>}, {pipeline_mode = #tpu.pipeline_mode<synchronous>, transform_indices = @transform_3, window_bounds = array<i64: 128, 128>}, {pipeline_mode = #tpu.pipeline_mode<synchronous>, transform_indices = @transform_4, window_bounds = array<i64: 1, 128>}, {pipeline_mode = #tpu.pipeline_mode<synchronous>, transform_indices = @transform_5, window_bounds = array<i64: 1, 128>}, {transform_indices = @transform_6, window_bounds = array<i64: 1>}, {transform_indices = @transform_7, window_bounds = array<i64: 1, 384>}]} {
    %c0 = arith.constant 0 : index
    %c0_0 = arith.constant 0 : index
    %0 = vector.load %arg1[%c0, %c0_0] : memref<384x32xf32, #tpu.memory_space<vmem>>, vector<384x32xf32>
    %c0_1 = arith.constant 0 : index
    %c0_2 = arith.constant 0 : index
    %1 = vector.load %arg2[%c0_1, %c0_2] : memref<32x128xf32, #tpu.memory_space<vmem>>, vector<32x128xf32>
    %cst = arith.constant dense<0.000000e+00> : vector<384x128xf32>
    %2 = tpu.matmul %0, %1, %cst {dimension_numbers = #tpu.dot_dimension_numbers<[1], [0], [0], [1], [0, 0, 1, 1], [], []>} : vector<384x32xf32>, vector<32x128xf32>, vector<384x128xf32> -> vector<384x128xf32>
    %c0_3 = arith.constant 0 : index
    %c0_4 = arith.constant 0 : index
    %3 = vector.load %arg3[%c0_3, %c0_4] : memref<1x128xf32, #tpu.memory_space<vmem>>, vector<1x128xf32>
    %4 = vector.broadcast %3 : vector<1x128xf32> to vector<384x128xf32>
    %5 = arith.addf %2, %4 : vector<384x128xf32>
    %cst_5 = arith.constant 0.000000e+00 : f32
    %6 = vector.broadcast %cst_5 : f32 to vector<384x128xf32>
    %7 = arith.maximumf %5, %6 : vector<384x128xf32>
    %c0_6 = arith.constant 0 : index
    %c0_7 = arith.constant 0 : index
    %8 = vector.load %arg4[%c0_6, %c0_7] : memref<128x128xf32, #tpu.memory_space<vmem>>, vector<128x128xf32>
    %cst_8 = arith.constant dense<0.000000e+00> : vector<384x128xf32>
    %9 = tpu.matmul %7, %8, %cst_8 {dimension_numbers = #tpu.dot_dimension_numbers<[1], [0], [0], [1], [0, 0, 1, 1], [], []>} : vector<384x128xf32>, vector<128x128xf32>, vector<384x128xf32> -> vector<384x128xf32>
    %c0_9 = arith.constant 0 : index
    %c0_10 = arith.constant 0 : index
    %10 = vector.load %arg5[%c0_9, %c0_10] : memref<1x128xf32, #tpu.memory_space<vmem>>, vector<1x128xf32>
    %11 = vector.broadcast %10 : vector<1x128xf32> to vector<384x128xf32>
    %12 = arith.addf %9, %11 : vector<384x128xf32>
    %cst_11 = arith.constant 0.000000e+00 : f32
    %13 = vector.broadcast %cst_11 : f32 to vector<384x128xf32>
    %14 = arith.maximumf %12, %13 : vector<384x128xf32>
    %c0_12 = arith.constant 0 : index
    %c0_13 = arith.constant 0 : index
    %15 = vector.load %arg6[%c0_12, %c0_13] : memref<1x128xf32, #tpu.memory_space<vmem>>, vector<1x128xf32>
    %16 = vector.broadcast %15 : vector<1x128xf32> to vector<384x128xf32>
    %17 = arith.mulf %14, %16 : vector<384x128xf32>
    %cst_14 = arith.constant dense<0.000000e+00> : vector<384xf32>
    %18 = vector.multi_reduction <add>, %17, %cst_14 [1] : vector<384x128xf32> to vector<384xf32>
    %19 = vector.shape_cast %18 : vector<384xf32> to vector<1x384xf32>
    %c0_15 = arith.constant 0 : index
    %20 = memref.load %arg7[%c0_15] : memref<1xf32, #tpu.memory_space<smem>>
    %21 = vector.broadcast %20 : f32 to vector<1x384xf32>
    %22 = arith.addf %19, %21 : vector<1x384xf32>
    %23 = arith.negf %22 : vector<1x384xf32>
    %24 = math.exp %23 : vector<1x384xf32>
    %cst_16 = arith.constant 1.000000e+00 : f32
    %25 = vector.broadcast %cst_16 : f32 to vector<1x384xf32>
    %26 = arith.addf %25, %24 : vector<1x384xf32>
    %27 = arith.divf %25, %26 : vector<1x384xf32>
    %c0_17 = arith.constant 0 : index
    %c0_18 = arith.constant 0 : index
    %28 = vector.load %arg8[%c0_17, %c0_18] : memref<1x384xf32, #tpu.memory_space<vmem>>, vector<1x384xf32>
    tpu.vector_store %arg8[%c0_17, %c0_18], %27 {strides = array<i32>} : memref<1x384xf32, #tpu.memory_space<vmem>>, vector<1x384xf32>,
    return
  }
  func.func @transform_0(%arg0: i32) -> (i32, i32) {
    %c0_i32 = arith.constant 0 : i32
    %c0_i32_0 = arith.constant 0 : i32
    return %arg0, %c0_i32 : i32, i32
  }
  func.func @transform_1(%arg0: i32) -> (i32, i32) {
    %c0_i32 = arith.constant 0 : i32
    %c0_i32_0 = arith.constant 0 : i32
    %c0_i32_1 = arith.constant 0 : i32
    return %c0_i32, %c0_i32_0 : i32, i32
  }
  func.func @transform_2(%arg0: i32) -> (i32, i32) {
    %c0_i32 = arith.constant 0 : i32
    %c0_i32_0 = arith.constant 0 : i32
    %c0_i32_1 = arith.constant 0 : i32
    return %c0_i32, %c0_i32_0 : i32, i32
  }
  func.func @transform_3(%arg0: i32) -> (i32, i32) {
    %c0_i32 = arith.constant 0 : i32
    %c0_i32_0 = arith.constant 0 : i32
    %c0_i32_1 = arith.constant 0 : i32
    return %c0_i32, %c0_i32_0 : i32, i32
  }
  func.func @transform_4(%arg0: i32) -> (i32, i32) {
    %c0_i32 = arith.constant 0 : i32
    %c0_i32_0 = arith.constant 0 : i32
    %c0_i32_1 = arith.constant 0 : i32
    return %c0_i32, %c0_i32_0 : i32, i32
  }
  func.func @transform_5(%arg0: i32) -> (i32, i32) {
    %c0_i32 = arith.constant 0 : i32
    %c0_i32_0 = arith.constant 0 : i32
    %c0_i32_1 = arith.constant 0 : i32
    return %c0_i32, %c0_i32_0 : i32, i32
  }
  func.func @transform_6(%arg0: i32) -> i32 {
    %c0_i32 = arith.constant 0 : i32
    %c0_i32_0 = arith.constant 0 : i32
    return %c0_i32 : i32
  }
  func.func @transform_7(%arg0: i32) -> (i32, i32) {
    %c0_i32 = arith.constant 0 : i32
    %c0_i32_0 = arith.constant 0 : i32
    return %c0_i32, %arg0 : i32, i32
  }
}

</mosaic_0001>

<llo_original>
// kernel: simple_ffn_forward.1
$region0: #{simple_ffn_forward.1}
  #allocation0 [shape = 'u32[]', space=smem, size = 0x4, offset = 0x4, fixed_abs, tag = 'smem constant byte address 0x4 - core index']
  #allocation1 [shape = 'u32[144,128]{1,0:T(1,128)}', space=vmem, size = 0x12000, scoped, tag = 'internal scratch']
  #allocation2 [shape = 'f32[1]{0:T(128)S(6)}', space=smem, size = 0x200, scoped, tag = 'scoped memory for simple_ffn_forward.1']
  %s0 = inlined_call_operand.vmem [shape: f32[384,32], index: 0, kind: input, shape index: {}]
  %s1 = inlined_call_operand.vmem [shape: f32[32,128], index: 1, kind: input, shape index: {}]
  %s2 = inlined_call_operand.vmem [shape: f32[1,128], index: 2, kind: input, shape index: {}]
  %s3 = inlined_call_operand.vmem [shape: f32[128,128], index: 3, kind: input, shape index: {}]
  %s4 = inlined_call_operand.vmem [shape: f32[1,128], index: 4, kind: input, shape index: {}]
  %s5 = inlined_call_operand.vmem [shape: f32[1,128], index: 5, kind: input, shape index: {}]
  %s6 = inlined_call_operand.<no memory space> [shape: f32[1], index: 6, kind: input, shape index: {}]
  %s7 = inlined_call_operand.vmem [shape: f32[1,384], index: 7, kind: output, shape index: {}]
  %s8 = sld [smem:[#allocation0]]
  $region38: #{simple_ffn_forward.1} parent=0
    _
  %s10 = ssub.s32 1, %s8
  %s11 = scalar_select 0, %s10, %s8
  %12 = sst [smem:[#allocation2]] %s6
  // Predicated region
  $region2: #{simple_ffn_forward.1} parent=0 // pred_check
    _
  $region3: #{simple_ffn_forward.1} parent=0 // pred_check_branch
    %14 = sbr.rel (0) target = $region5
  $region4: #{simple_ffn_forward.1} parent=0 // pred_region
    _
  $region5: #{simple_ffn_forward.1} parent=0 // pred_fallthru
    _
  // Predicated region
  $region6: #{simple_ffn_forward.1} parent=0 // pred_check
    _
  $region7: #{simple_ffn_forward.1} parent=0 // pred_check_branch
    %16 = sbr.rel (0) target = $region9
  $region8: #{simple_ffn_forward.1} parent=0 // pred_region
    _
  $region9: #{simple_ffn_forward.1} parent=0 // pred_fallthru
    _
  // Predicated region
  $region10: #{simple_ffn_forward.1} parent=0 // pred_check
    _
  $region11: #{simple_ffn_forward.1} parent=0 // pred_check_branch
    %18 = sbr.rel (0) target = $region13
  $region12: #{simple_ffn_forward.1} parent=0 // pred_region
    _
  $region13: #{simple_ffn_forward.1} parent=0 // pred_fallthru
    _
  // Predicated region
  $region14: #{simple_ffn_forward.1} parent=0 // pred_check
    _
  $region15: #{simple_ffn_forward.1} parent=0 // pred_check_branch
    %20 = sbr.rel (0) target = $region17
  $region16: #{simple_ffn_forward.1} parent=0 // pred_region
    _
  $region17: #{simple_ffn_forward.1} parent=0 // pred_fallthru
    _
  // Predicated region
  $region18: #{simple_ffn_forward.1} parent=0 // pred_check
    _
  $region19: #{simple_ffn_forward.1} parent=0 // pred_check_branch
    %22 = sbr.rel (0) target = $region21
  $region20: #{simple_ffn_forward.1} parent=0 // pred_region
    _
  $region21: #{simple_ffn_forward.1} parent=0 // pred_fallthru
    _
  // Predicated region
  $region22: #{simple_ffn_forward.1} parent=0 // pred_check
    _
  $region23: #{simple_ffn_forward.1} parent=0 // pred_check_branch
    %24 = sbr.rel (0) target = $region25
  $region24: #{simple_ffn_forward.1} parent=0 // pred_region
    _
  $region25: #{simple_ffn_forward.1} parent=0 // pred_fallthru
    _
  // Predicated region
  $region26: #{simple_ffn_forward.1} parent=0 // pred_check
    _
  $region27: #{simple_ffn_forward.1} parent=0 // pred_check_branch
    %26 = sbr.rel (0) target = $region29
  $region28: #{simple_ffn_forward.1} parent=0 // pred_region
    _
  $region29: #{simple_ffn_forward.1} parent=0 // pred_fallthru
    _
  %v27 = vld [vmem:[%s0] sm:$0xff]
  %v28 = vld [vmem:[%s0 + $0x8] sm:$0xff]
  %v29 = vld [vmem:[%s0 + $0x10] sm:$0xff]
  %v30 = vld [vmem:[%s0 + $0x18] sm:$0xff]
  %v31 = vld [vmem:[%s0 + $0x20] sm:$0xff]
  %v32 = vld [vmem:[%s0 + $0x28] sm:$0xff]
  %v33 = vld [vmem:[%s0 + $0x30] sm:$0xff]
  %v34 = vld [vmem:[%s0 + $0x38] sm:$0xff]
  %v35 = vld [vmem:[%s0 + $0x40] sm:$0xff]
  %v36 = vld [vmem:[%s0 + $0x48] sm:$0xff]
  %v37 = vld [vmem:[%s0 + $0x50] sm:$0xff]
  %v38 = vld [vmem:[%s0 + $0x58] sm:$0xff]
  %v39 = vld [vmem:[%s0 + $0x60] sm:$0xff]
  %v40 = vld [vmem:[%s0 + $0x68] sm:$0xff]
  %v41 = vld [vmem:[%s0 + $0x70] sm:$0xff]
  %v42 = vld [vmem:[%s0 + $0x78] sm:$0xff]
  %v43 = vld [vmem:[%s0 + $0x80] sm:$0xff]
  %v44 = vld [vmem:[%s0 + $0x88] sm:$0xff]
  %v45 = vld [vmem:[%s0 + $0x90] sm:$0xff]
  %v46 = vld [vmem:[%s0 + $0x98] sm:$0xff]
  %v47 = vld [vmem:[%s0 + $0xa0] sm:$0xff]
  %v48 = vld [vmem:[%s0 + $0xa8] sm:$0xff]
  %v49 = vld [vmem:[%s0 + $0xb0] sm:$0xff]
  %v50 = vld [vmem:[%s0 + $0xb8] sm:$0xff]
  %v51 = vld [vmem:[%s0 + $0xc0] sm:$0xff]
  %v52 = vld [vmem:[%s0 + $0xc8] sm:$0xff]
  %v53 = vld [vmem:[%s0 + $0xd0] sm:$0xff]
  %v54 = vld [vmem:[%s0 + $0xd8] sm:$0xff]
  %v55 = vld [vmem:[%s0 + $0xe0] sm:$0xff]
  %v56 = vld [vmem:[%s0 + $0xe8] sm:$0xff]
  %v57 = vld [vmem:[%s0 + $0xf0] sm:$0xff]
  %v58 = vld [vmem:[%s0 + $0xf8] sm:$0xff]
  %v59 = vld [vmem:[%s0 + $0x100] sm:$0xff]
  %v60 = vld [vmem:[%s0 + $0x108] sm:$0xff]
  %v61 = vld [vmem:[%s0 + $0x110] sm:$0xff]
  %v62 = vld [vmem:[%s0 + $0x118] sm:$0xff]
  %v63 = vld [vmem:[%s0 + $0x120] sm:$0xff]
  %v64 = vld [vmem:[%s0 + $0x128] sm:$0xff]
  %v65 = vld [vmem:[%s0 + $0x130] sm:$0xff]
  %v66 = vld [vmem:[%s0 + $0x138] sm:$0xff]
  %v67 = vld [vmem:[%s0 + $0x140] sm:$0xff]
  %v68 = vld [vmem:[%s0 + $0x148] sm:$0xff]
  %v69 = vld [vmem:[%s0 + $0x150] sm:$0xff]
  %v70 = vld [vmem:[%s0 + $0x158] sm:$0xff]
  %v71 = vld [vmem:[%s0 + $0x160] sm:$0xff]
  %v72 = vld [vmem:[%s0 + $0x168] sm:$0xff]
  %v73 = vld [vmem:[%s0 + $0x170] sm:$0xff]
  %v74 = vld [vmem:[%s0 + $0x178] sm:$0xff]
  %v75 = vld [vmem:[%s1] sm:$0xff]
  %v76 = vld [vmem:[%s1 + $0x8] sm:$0xff]
  %v77 = vld [vmem:[%s1 + $0x10] sm:$0xff]
  %v78 = vld [vmem:[%s1 + $0x18] sm:$0xff]
  %v79 = vld [vmem:[%s2] sm:$0x1]
  %v81 = vlaneseq
  %v82 = vshrl.u32 %v81, 7
  %v83 = vsub.s32 0, %v82
  %v84 = vrot.slane %v79, %v83
  %vm86 = vcmask 261120
  %v88 = vsel %vm86, %v27, 0
  %v91 = vsel %vm86, %v28, 0
  %v94 = vsel %vm86, %v29, 0
  %v97 = vsel %vm86, %v30, 0
  %v100 = vsel %vm86, %v31, 0
  %v103 = vsel %vm86, %v32, 0
  %v106 = vsel %vm86, %v33, 0
  %v109 = vsel %vm86, %v34, 0
  %v112 = vsel %vm86, %v35, 0
  %v115 = vsel %vm86, %v36, 0
  %v118 = vsel %vm86, %v37, 0
  %v121 = vsel %vm86, %v38, 0
  %v124 = vsel %vm86, %v39, 0
  %v127 = vsel %vm86, %v40, 0
  %v130 = vsel %vm86, %v41, 0
  %v133 = vsel %vm86, %v42, 0
  %v136 = vsel %vm86, %v43, 0
  %v139 = vsel %vm86, %v44, 0
  %v142 = vsel %vm86, %v45, 0
  %v145 = vsel %vm86, %v46, 0
  %v148 = vsel %vm86, %v47, 0
  %v151 = vsel %vm86, %v48, 0
  %v154 = vsel %vm86, %v49, 0
  %v157 = vsel %vm86, %v50, 0
  %v160 = vsel %vm86, %v51, 0
  %v163 = vsel %vm86, %v52, 0
  %v166 = vsel %vm86, %v53, 0
  %v169 = vsel %vm86, %v54, 0
  %v172 = vsel %vm86, %v55, 0
  %v175 = vsel %vm86, %v56, 0
  %v178 = vsel %vm86, %v57, 0
  %v181 = vsel %vm86, %v58, 0
  %v184 = vsel %vm86, %v59, 0
  %v187 = vsel %vm86, %v60, 0
  %v190 = vsel %vm86, %v61, 0
  %v193 = vsel %vm86, %v62, 0
  %v196 = vsel %vm86, %v63, 0
  %v199 = vsel %vm86, %v64, 0
  %v202 = vsel %vm86, %v65, 0
  %v205 = vsel %vm86, %v66, 0
  %v208 = vsel %vm86, %v67, 0
  %v211 = vsel %vm86, %v68, 0
  %v214 = vsel %vm86, %v69, 0
  %v217 = vsel %vm86, %v70, 0
  %v220 = vsel %vm86, %v71, 0
  %v223 = vsel %vm86, %v72, 0
  %v226 = vsel %vm86, %v73, 0
  %v229 = vsel %vm86, %v74, 0
  %231 = vmatprep.subr.mxu0 0.0
  %232 = vmatpush1.msra.mxu0 %v75
  %233 = vmatprep.subr.mxu0 0.0
  %234 = vmatpush1.msra.mxu0 %v76
  %235 = vmatprep.subr.mxu0 0.0
  %236 = vmatpush1.msra.mxu0 %v77
  %237 = vmatprep.subr.mxu0 0.0
  %238 = vmatpush1.msra.mxu0 %v78
  %239 = vmatprep.subr.mxu0 0.0
  %240 = vmatpush1.msra.mxu0 0.0
  %241 = vmatprep.subr.mxu0 0.0
  %242 = vmatpush1.msra.mxu0 0.0
  %243 = vmatprep.subr.mxu0 0.0
  %244 = vmatpush1.msra.mxu0 0.0
  %245 = vmatprep.subr.mxu0 0.0
  %246 = vmatpush1.msra.mxu0 0.0
  %247 = vmatprep.subr.mxu0 0.0
  %248 = vmatpush1.msra.mxu0 0.0
  %249 = vmatprep.subr.mxu0 0.0
  %250 = vmatpush1.msra.mxu0 0.0
  %251 = vmatprep.subr.mxu0 0.0
  %252 = vmatpush1.msra.mxu0 0.0
  %253 = vmatprep.subr.mxu0 0.0
  %254 = vmatpush1.msra.mxu0 0.0
  %255 = vmatprep.subr.mxu0 0.0
  %256 = vmatpush1.msra.mxu0 0.0
  %257 = vmatprep.subr.mxu0 0.0
  %258 = vmatpush1.msra.mxu0 0.0
  %259 = vmatprep.subr.mxu0 0.0
  %260 = vmatpush1.msra.mxu0 0.0
  %261 = vmatprep.subr.mxu0 0.0
  %262 = vmatpush1.msra.mxu0 0.0
  %263 = vmatprep.subr.mxu0 0.0
  %264 = vmatpush1.msra.mxu0 0.0
  %265 = vmatprep.subr.mxu0 0.0
  %266 = vmatpush1.msra.mxu0 0.0
  %267 = vmatprep.subr.mxu0 0.0
  %268 = vmatpush1.msra.mxu0 0.0
  %269 = vmatprep.subr.mxu0 0.0
  %270 = vmatpush1.msra.mxu0 0.0
  %271 = vmatprep.subr.mxu0 0.0
  %272 = vmatpush1.msra.mxu0 0.0
  %273 = vmatprep.subr.mxu0 0.0
  %274 = vmatpush1.msra.mxu0 0.0
  %275 = vmatprep.subr.mxu0 0.0
  %276 = vmatpush1.msra.mxu0 0.0
  %277 = vmatprep.subr.mxu0 0.0
  %278 = vmatpush1.msra.mxu0 0.0
  %279 = vmatprep.subr.mxu0 0.0
  %280 = vmatpush1.msra.mxu0 0.0
  %281 = vmatprep.subr.mxu0 0.0
  %282 = vmatpush1.msra.mxu0 0.0
  %283 = vmatprep.subr.mxu0 0.0
  %284 = vmatpush1.msra.mxu0 0.0
  %285 = vmatprep.subr.mxu0 0.0
  %286 = vmatpush1.msra.mxu0 0.0
  %287 = vmatprep.subr.mxu0 0.0
  %288 = vmatpush1.msra.mxu0 0.0
  %289 = vmatprep.subr.mxu0 0.0
  %290 = vmatpush1.msra.mxu0 0.0
  %291 = vmatprep.subr.mxu0 0.0
  %292 = vmatpush1.msra.mxu0 0.0
  %293 = vmatprep.subr.mxu0 0.0
  %294 = vmatpush1.msra.mxu0 0.0
  %295 = vmatprep.mubr.f32.mxu0 0.0
  %296 = vmatmul.mubr.f32.gmra.mrb[0].mxu0 %v88
  %v297 = vpop.f32.mrb[0].mxu0
  %v298 = vadd.f32 %v84, %v297
  %v299 = vpop.f32.mrb[0].mxu0
  %300 = vmatprep.mubr.f32.mxu0 0.0
  %301 = vmatmul.mubr.f32.gmra.mrb[0].mxu0 %v91
  %v302 = vpop.f32.mrb[0].mxu0
  %v303 = vadd.f32 %v84, %v302
  %v304 = vpop.f32.mrb[0].mxu0
  %305 = vmatprep.mubr.f32.mxu0 0.0
  %306 = vmatmul.mubr.f32.gmra.mrb[0].mxu0 %v94
  %v307 = vpop.f32.mrb[0].mxu0
  %v308 = vadd.f32 %v84, %v307
  %v309 = vpop.f32.mrb[0].mxu0
  %310 = vmatprep.mubr.f32.mxu0 0.0
  %311 = vmatmul.mubr.f32.gmra.mrb[0].mxu0 %v97
  %v312 = vpop.f32.mrb[0].mxu0
  %v313 = vadd.f32 %v84, %v312
  %v314 = vpop.f32.mrb[0].mxu0
  %315 = vmatprep.mubr.f32.mxu0 0.0
  %316 = vmatmul.mubr.f32.gmra.mrb[0].mxu0 %v100
  %v317 = vpop.f32.mrb[0].mxu0
  %v318 = vadd.f32 %v84, %v317
  %v319 = vpop.f32.mrb[0].mxu0
  %320 = vmatprep.mubr.f32.mxu0 0.0
  %321 = vmatmul.mubr.f32.gmra.mrb[0].mxu0 %v103
  %v322 = vpop.f32.mrb[0].mxu0
  %v323 = vadd.f32 %v84, %v322
  %v324 = vpop.f32.mrb[0].mxu0
  %325 = vmatprep.mubr.f32.mxu0 0.0
  %326 = vmatmul.mubr.f32.gmra.mrb[0].mxu0 %v106
  %v327 = vpop.f32.mrb[0].mxu0
  %v328 = vadd.f32 %v84, %v327
  %v329 = vpop.f32.mrb[0].mxu0
  %330 = vmatprep.mubr.f32.mxu0 0.0
  %331 = vmatmul.mubr.f32.gmra.mrb[0].mxu0 %v109
  %v332 = vpop.f32.mrb[0].mxu0
  %v333 = vadd.f32 %v84, %v332
  %v334 = vpop.f32.mrb[0].mxu0
  %335 = vmatprep.mubr.f32.mxu0 0.0
  %336 = vmatmul.mubr.f32.gmra.mrb[0].mxu0 %v112
  %v337 = vpop.f32.mrb[0].mxu0
  %v338 = vadd.f32 %v84, %v337
  %v339 = vpop.f32.mrb[0].mxu0
  %340 = vmatprep.mubr.f32.mxu0 0.0
  %341 = vmatmul.mubr.f32.gmra.mrb[0].mxu0 %v115
  %v342 = vpop.f32.mrb[0].mxu0
  %v343 = vadd.f32 %v84, %v342
  %v344 = vpop.f32.mrb[0].mxu0
  %345 = vmatprep.mubr.f32.mxu0 0.0
  %346 = vmatmul.mubr.f32.gmra.mrb[0].mxu0 %v118
  %v347 = vpop.f32.mrb[0].mxu0
  %v348 = vadd.f32 %v84, %v347
  %v349 = vpop.f32.mrb[0].mxu0
  %350 = vmatprep.mubr.f32.mxu0 0.0
  %351 = vmatmul.mubr.f32.gmra.mrb[0].mxu0 %v121
  %v352 = vpop.f32.mrb[0].mxu0
  %v353 = vadd.f32 %v84, %v352
  %v354 = vpop.f32.mrb[0].mxu0
  %355 = vmatprep.mubr.f32.mxu0 0.0
  %356 = vmatmul.mubr.f32.gmra.mrb[0].mxu0 %v124
  %v357 = vpop.f32.mrb[0].mxu0
  %v358 = vadd.f32 %v84, %v357
  %v359 = vpop.f32.mrb[0].mxu0
  %360 = vmatprep.mubr.f32.mxu0 0.0
  %361 = vmatmul.mubr.f32.gmra.mrb[0].mxu0 %v127
  %v362 = vpop.f32.mrb[0].mxu0
  %v363 = vadd.f32 %v84, %v362
  %v364 = vpop.f32.mrb[0].mxu0
  %365 = vmatprep.mubr.f32.mxu0 0.0
  %366 = vmatmul.mubr.f32.gmra.mrb[0].mxu0 %v130
  %v367 = vpop.f32.mrb[0].mxu0
  %v368 = vadd.f32 %v84, %v367
  %v369 = vpop.f32.mrb[0].mxu0
  %370 = vmatprep.mubr.f32.mxu0 0.0
  %371 = vmatmul.mubr.f32.gmra.mrb[0].mxu0 %v133
  %v372 = vpop.f32.mrb[0].mxu0
  %v373 = vadd.f32 %v84, %v372
  %v374 = vpop.f32.mrb[0].mxu0
  %375 = vmatprep.mubr.f32.mxu0 0.0
  %376 = vmatmul.mubr.f32.gmra.mrb[0].mxu0 %v136
  %v377 = vpop.f32.mrb[0].mxu0
  %v378 = vadd.f32 %v84, %v377
  %v379 = vpop.f32.mrb[0].mxu0
  %380 = vmatprep.mubr.f32.mxu0 0.0
  %381 = vmatmul.mubr.f32.gmra.mrb[0].mxu0 %v139
  %v382 = vpop.f32.mrb[0].mxu0
  %v383 = vadd.f32 %v84, %v382
  %v384 = vpop.f32.mrb[0].mxu0
  %385 = vmatprep.mubr.f32.mxu0 0.0
  %386 = vmatmul.mubr.f32.gmra.mrb[0].mxu0 %v142
  %v387 = vpop.f32.mrb[0].mxu0
  %v388 = vadd.f32 %v84, %v387
  %v389 = vpop.f32.mrb[0].mxu0
  %390 = vmatprep.mubr.f32.mxu0 0.0
  %391 = vmatmul.mubr.f32.gmra.mrb[0].mxu0 %v145
  %v392 = vpop.f32.mrb[0].mxu0
  %v393 = vadd.f32 %v84, %v392
  %v394 = vpop.f32.mrb[0].mxu0
  %395 = vmatprep.mubr.f32.mxu0 0.0
  %396 = vmatmul.mubr.f32.gmra.mrb[0].mxu0 %v148
  %v397 = vpop.f32.mrb[0].mxu0
  %v398 = vadd.f32 %v84, %v397
  %v399 = vpop.f32.mrb[0].mxu0
  %400 = vmatprep.mubr.f32.mxu0 0.0
  %401 = vmatmul.mubr.f32.gmra.mrb[0].mxu0 %v151
  %v402 = vpop.f32.mrb[0].mxu0
  %v403 = vadd.f32 %v84, %v402
  %v404 = vpop.f32.mrb[0].mxu0
  %405 = vmatprep.mubr.f32.mxu0 0.0
  %406 = vmatmul.mubr.f32.gmra.mrb[0].mxu0 %v154
  %v407 = vpop.f32.mrb[0].mxu0
  %v408 = vadd.f32 %v84, %v407
  %v409 = vpop.f32.mrb[0].mxu0
  %410 = vmatprep.mubr.f32.mxu0 0.0
  %411 = vmatmul.mubr.f32.gmra.mrb[0].mxu0 %v157
  %v412 = vpop.f32.mrb[0].mxu0
  %v413 = vadd.f32 %v84, %v412
  %v414 = vpop.f32.mrb[0].mxu0
  %415 = vmatprep.mubr.f32.mxu0 0.0
  %416 = vmatmul.mubr.f32.gmra.mrb[0].mxu0 %v160
  %v417 = vpop.f32.mrb[0].mxu0
  %v418 = vadd.f32 %v84, %v417
  %v419 = vpop.f32.mrb[0].mxu0
  %420 = vmatprep.mubr.f32.mxu0 0.0
  %421 = vmatmul.mubr.f32.gmra.mrb[0].mxu0 %v163
  %v422 = vpop.f32.mrb[0].mxu0
  %v423 = vadd.f32 %v84, %v422
  %v424 = vpop.f32.mrb[0].mxu0
  %425 = vmatprep.mubr.f32.mxu0 0.0
  %426 = vmatmul.mubr.f32.gmra.mrb[0].mxu0 %v166
  %v427 = vpop.f32.mrb[0].mxu0
  %v428 = vadd.f32 %v84, %v427
  %v429 = vpop.f32.mrb[0].mxu0
  %430 = vmatprep.mubr.f32.mxu0 0.0
  %431 = vmatmul.mubr.f32.gmra.mrb[0].mxu0 %v169
  %v432 = vpop.f32.mrb[0].mxu0
  %v433 = vadd.f32 %v84, %v432
  %v434 = vpop.f32.mrb[0].mxu0
  %435 = vmatprep.mubr.f32.mxu0 0.0
  %436 = vmatmul.mubr.f32.gmra.mrb[0].mxu0 %v172
  %v437 = vpop.f32.mrb[0].mxu0
  %v438 = vadd.f32 %v84, %v437
  %v439 = vpop.f32.mrb[0].mxu0
  %440 = vmatprep.mubr.f32.mxu0 0.0
  %441 = vmatmul.mubr.f32.gmra.mrb[0].mxu0 %v175
  %v442 = vpop.f32.mrb[0].mxu0
  %v443 = vadd.f32 %v84, %v442
  %v444 = vpop.f32.mrb[0].mxu0
  %445 = vmatprep.mubr.f32.mxu0 0.0
  %446 = vmatmul.mubr.f32.gmra.mrb[0].mxu0 %v178
  %v447 = vpop.f32.mrb[0].mxu0
  %v448 = vadd.f32 %v84, %v447
  %v449 = vpop.f32.mrb[0].mxu0
  %450 = vmatprep.mubr.f32.mxu0 0.0
  %451 = vmatmul.mubr.f32.gmra.mrb[0].mxu0 %v181
  %v452 = vpop.f32.mrb[0].mxu0
  %v453 = vadd.f32 %v84, %v452
  %v454 = vpop.f32.mrb[0].mxu0
  %455 = vmatprep.mubr.f32.mxu0 0.0
  %456 = vmatmul.mubr.f32.gmra.mrb[0].mxu0 %v184
  %v457 = vpop.f32.mrb[0].mxu0
  %v458 = vadd.f32 %v84, %v457
  %v459 = vpop.f32.mrb[0].mxu0
  %460 = vmatprep.mubr.f32.mxu0 0.0
  %461 = vmatmul.mubr.f32.gmra.mrb[0].mxu0 %v187
  %v462 = vpop.f32.mrb[0].mxu0
  %v463 = vadd.f32 %v84, %v462
  %v464 = vpop.f32.mrb[0].mxu0
  %465 = vmatprep.mubr.f32.mxu0 0.0
  %466 = vmatmul.mubr.f32.gmra.mrb[0].mxu0 %v190
  %v467 = vpop.f32.mrb[0].mxu0
  %v468 = vadd.f32 %v84, %v467
  %v469 = vpop.f32.mrb[0].mxu0
  %470 = vmatprep.mubr.f32.mxu0 0.0
  %471 = vmatmul.mubr.f32.gmra.mrb[0].mxu0 %v193
  %v472 = vpop.f32.mrb[0].mxu0
  %v473 = vadd.f32 %v84, %v472
  %v474 = vpop.f32.mrb[0].mxu0
  %475 = vmatprep.mubr.f32.mxu0 0.0
  %476 = vmatmul.mubr.f32.gmra.mrb[0].mxu0 %v196
  %v477 = vpop.f32.mrb[0].mxu0
  %v478 = vadd.f32 %v84, %v477
  %v479 = vpop.f32.mrb[0].mxu0
  %480 = vmatprep.mubr.f32.mxu0 0.0
  %481 = vmatmul.mubr.f32.gmra.mrb[0].mxu0 %v199
  %v482 = vpop.f32.mrb[0].mxu0
  %v483 = vadd.f32 %v84, %v482
  %v484 = vpop.f32.mrb[0].mxu0
  %485 = vmatprep.mubr.f32.mxu0 0.0
  %486 = vmatmul.mubr.f32.gmra.mrb[0].mxu0 %v202
  %v487 = vpop.f32.mrb[0].mxu0
  %v488 = vadd.f32 %v84, %v487
  %v489 = vpop.f32.mrb[0].mxu0
  %490 = vmatprep.mubr.f32.mxu0 0.0
  %491 = vmatmul.mubr.f32.gmra.mrb[0].mxu0 %v205
  %v492 = vpop.f32.mrb[0].mxu0
  %v493 = vadd.f32 %v84, %v492
  %v494 = vpop.f32.mrb[0].mxu0
  %495 = vmatprep.mubr.f32.mxu0 0.0
  %496 = vmatmul.mubr.f32.gmra.mrb[0].mxu0 %v208
  %v497 = vpop.f32.mrb[0].mxu0
  %v498 = vadd.f32 %v84, %v497
  %v499 = vpop.f32.mrb[0].mxu0
  %500 = vmatprep.mubr.f32.mxu0 0.0
  %501 = vmatmul.mubr.f32.gmra.mrb[0].mxu0 %v211
  %v502 = vpop.f32.mrb[0].mxu0
  %v503 = vadd.f32 %v84, %v502
  %v504 = vpop.f32.mrb[0].mxu0
  %505 = vmatprep.mubr.f32.mxu0 0.0
  %506 = vmatmul.mubr.f32.gmra.mrb[0].mxu0 %v214
  %v507 = vpop.f32.mrb[0].mxu0
  %v508 = vadd.f32 %v84, %v507
  %v509 = vpop.f32.mrb[0].mxu0
  %510 = vmatprep.mubr.f32.mxu0 0.0
  %511 = vmatmul.mubr.f32.gmra.mrb[0].mxu0 %v217
  %v512 = vpop.f32.mrb[0].mxu0
  %v513 = vadd.f32 %v84, %v512
  %v514 = vpop.f32.mrb[0].mxu0
  %515 = vmatprep.mubr.f32.mxu0 0.0
  %516 = vmatmul.mubr.f32.gmra.mrb[0].mxu0 %v220
  %v517 = vpop.f32.mrb[0].mxu0
  %v518 = vadd.f32 %v84, %v517
  %v519 = vpop.f32.mrb[0].mxu0
  %520 = vmatprep.mubr.f32.mxu0 0.0
  %521 = vmatmul.mubr.f32.gmra.mrb[0].mxu0 %v223
  %v522 = vpop.f32.mrb[0].mxu0
  %v523 = vadd.f32 %v84, %v522
  %v524 = vpop.f32.mrb[0].mxu0
  %525 = vmatprep.mubr.f32.mxu0 0.0
  %526 = vmatmul.mubr.f32.gmra.mrb[0].mxu0 %v226
  %v527 = vpop.f32.mrb[0].mxu0
  %v528 = vadd.f32 %v84, %v527
  %v529 = vpop.f32.mrb[0].mxu0
  %530 = vmatprep.mubr.f32.mxu0 0.0
  %531 = vmatmul.mubr.f32.gmra.mrb[0].mxu0 %v229
  %v532 = vpop.f32.mrb[0].mxu0
  %v533 = vadd.f32 %v84, %v532
  %v534 = vpop.f32.mrb[0].mxu0
  %535 = vdwg.mxu0
  %v536 = vmax.f32 %v298, 0.0
  %v537 = vmax.f32 %v303, 0.0
  %v538 = vmax.f32 %v308, 0.0
  %v539 = vmax.f32 %v313, 0.0
  %v540 = vmax.f32 %v318, 0.0
  %v541 = vmax.f32 %v323, 0.0
  %v542 = vmax.f32 %v328, 0.0
  %v543 = vmax.f32 %v333, 0.0
  %v544 = vmax.f32 %v338, 0.0
  %v545 = vmax.f32 %v343, 0.0
  %v546 = vmax.f32 %v348, 0.0
  %v547 = vmax.f32 %v353, 0.0
  %v548 = vmax.f32 %v358, 0.0
  %v549 = vmax.f32 %v363, 0.0
  %v550 = vmax.f32 %v368, 0.0
  %v551 = vmax.f32 %v373, 0.0
  %v552 = vmax.f32 %v378, 0.0
  %v553 = vmax.f32 %v383, 0.0
  %v554 = vmax.f32 %v388, 0.0
  %v555 = vmax.f32 %v393, 0.0
  %v556 = vmax.f32 %v398, 0.0
  %v557 = vmax.f32 %v403, 0.0
  %v558 = vmax.f32 %v408, 0.0
  %v559 = vmax.f32 %v413, 0.0
  %v560 = vmax.f32 %v418, 0.0
  %v561 = vmax.f32 %v423, 0.0
  %v562 = vmax.f32 %v428, 0.0
  %v563 = vmax.f32 %v433, 0.0
  %v564 = vmax.f32 %v438, 0.0
  %v565 = vmax.f32 %v443, 0.0
  %v566 = vmax.f32 %v448, 0.0
  %v567 = vmax.f32 %v453, 0.0
  %v568 = vmax.f32 %v458, 0.0
  %v569 = vmax.f32 %v463, 0.0
  %v570 = vmax.f32 %v468, 0.0
  %v571 = vmax.f32 %v473, 0.0
  %v572 = vmax.f32 %v478, 0.0
  %v573 = vmax.f32 %v483, 0.0
  %v574 = vmax.f32 %v488, 0.0
  %v575 = vmax.f32 %v493, 0.0
  %v576 = vmax.f32 %v498, 0.0
  %v577 = vmax.f32 %v503, 0.0
  %v578 = vmax.f32 %v508, 0.0
  %v579 = vmax.f32 %v513, 0.0
  %v580 = vmax.f32 %v518, 0.0
  %v581 = vmax.f32 %v523, 0.0
  %v582 = vmax.f32 %v528, 0.0
  %v583 = vmax.f32 %v533, 0.0
  %v584 = vld [vmem:[%s3] sm:$0xff]
  %v585 = vld [vmem:[%s3 + $0x8] sm:$0xff]
  %v586 = vld [vmem:[%s3 + $0x10] sm:$0xff]
  %v587 = vld [vmem:[%s3 + $0x18] sm:$0xff]
  %v588 = vld [vmem:[%s3 + $0x20] sm:$0xff]
  %v589 = vld [vmem:[%s3 + $0x28] sm:$0xff]
  %v590 = vld [vmem:[%s3 + $0x30] sm:$0xff]
  %v591 = vld [vmem:[%s3 + $0x38] sm:$0xff]
  %v592 = vld [vmem:[%s3 + $0x40] sm:$0xff]
  %v593 = vld [vmem:[%s3 + $0x48] sm:$0xff]
  %v594 = vld [vmem:[%s3 + $0x50] sm:$0xff]
  %v595 = vld [vmem:[%s3 + $0x58] sm:$0xff]
  %v596 = vld [vmem:[%s3 + $0x60] sm:$0xff]
  %v597 = vld [vmem:[%s3 + $0x68] sm:$0xff]
  %v598 = vld [vmem:[%s3 + $0x70] sm:$0xff]
  %v599 = vld [vmem:[%s3 + $0x78] sm:$0xff]
  %v600 = vld [vmem:[%s4] sm:$0x1]
  %v602 = vlaneseq
  %v603 = vshrl.u32 %v602, 7
  %v604 = vsub.s32 0, %v603
  %v605 = vrot.slane %v600, %v604
  %607 = vmatprep.subr.mxu0 0.0
  %608 = vmatpush1.msra.mxu0 %v584
  %609 = vmatprep.subr.mxu0 0.0
  %610 = vmatpush1.msra.mxu0 %v585
  %611 = vmatprep.subr.mxu0 0.0
  %612 = vmatpush1.msra.mxu0 %v586
  %613 = vmatprep.subr.mxu0 0.0
  %614 = vmatpush1.msra.mxu0 %v587
  %615 = vmatprep.subr.mxu0 0.0
  %616 = vmatpush1.msra.mxu0 %v588
  %617 = vmatprep.subr.mxu0 0.0
  %618 = vmatpush1.msra.mxu0 %v589
  %619 = vmatprep.subr.mxu0 0.0
  %620 = vmatpush1.msra.mxu0 %v590
  %621 = vmatprep.subr.mxu0 0.0
  %622 = vmatpush1.msra.mxu0 %v591
  %623 = vmatprep.subr.mxu0 0.0
  %624 = vmatpush1.msra.mxu0 %v592
  %625 = vmatprep.subr.mxu0 0.0
  %626 = vmatpush1.msra.mxu0 %v593
  %627 = vmatprep.subr.mxu0 0.0
  %628 = vmatpush1.msra.mxu0 %v594
  %629 = vmatprep.subr.mxu0 0.0
  %630 = vmatpush1.msra.mxu0 %v595
  %631 = vmatprep.subr.mxu0 0.0
  %632 = vmatpush1.msra.mxu0 %v596
  %633 = vmatprep.subr.mxu0 0.0
  %634 = vmatpush1.msra.mxu0 %v597
  %635 = vmatprep.subr.mxu0 0.0
  %636 = vmatpush1.msra.mxu0 %v598
  %637 = vmatprep.subr.mxu0 0.0
  %638 = vmatpush1.msra.mxu0 %v599
  %639 = vmatprep.subr.mxu0 0.0
  %640 = vmatpush1.msra.mxu0 0.0
  %641 = vmatprep.subr.mxu0 0.0
  %642 = vmatpush1.msra.mxu0 0.0
  %643 = vmatprep.subr.mxu0 0.0
  %644 = vmatpush1.msra.mxu0 0.0
  %645 = vmatprep.subr.mxu0 0.0
  %646 = vmatpush1.msra.mxu0 0.0
  %647 = vmatprep.subr.mxu0 0.0
  %648 = vmatpush1.msra.mxu0 0.0
  %649 = vmatprep.subr.mxu0 0.0
  %650 = vmatpush1.msra.mxu0 0.0
  %651 = vmatprep.subr.mxu0 0.0
  %652 = vmatpush1.msra.mxu0 0.0
  %653 = vmatprep.subr.mxu0 0.0
  %654 = vmatpush1.msra.mxu0 0.0
  %655 = vmatprep.subr.mxu0 0.0
  %656 = vmatpush1.msra.mxu0 0.0
  %657 = vmatprep.subr.mxu0 0.0
  %658 = vmatpush1.msra.mxu0 0.0
  %659 = vmatprep.subr.mxu0 0.0
  %660 = vmatpush1.msra.mxu0 0.0
  %661 = vmatprep.subr.mxu0 0.0
  %662 = vmatpush1.msra.mxu0 0.0
  %663 = vmatprep.subr.mxu0 0.0
  %664 = vmatpush1.msra.mxu0 0.0
  %665 = vmatprep.subr.mxu0 0.0
  %666 = vmatpush1.msra.mxu0 0.0
  %667 = vmatprep.subr.mxu0 0.0
  %668 = vmatpush1.msra.mxu0 0.0
  %669 = vmatprep.subr.mxu0 0.0
  %670 = vmatpush1.msra.mxu0 0.0
  %671 = vmatprep.mubr.f32.mxu0 0.0
  %672 = vmatmul.mubr.f32.gmra.mrb[0].mxu0 %v536
  %v673 = vpop.f32.mrb[0].mxu0
  %v674 = vadd.f32 %v605, %v673
  %v675 = vpop.f32.mrb[0].mxu0
  %676 = vmatprep.mubr.f32.mxu0 0.0
  %677 = vmatmul.mubr.f32.gmra.mrb[0].mxu0 %v537
  %v678 = vpop.f32.mrb[0].mxu0
  %v679 = vadd.f32 %v605, %v678
  %v680 = vpop.f32.mrb[0].mxu0
  %681 = vmatprep.mubr.f32.mxu0 0.0
  %682 = vmatmul.mubr.f32.gmra.mrb[0].mxu0 %v538
  %v683 = vpop.f32.mrb[0].mxu0
  %v684 = vadd.f32 %v605, %v683
  %v685 = vpop.f32.mrb[0].mxu0
  %686 = vmatprep.mubr.f32.mxu0 0.0
  %687 = vmatmul.mubr.f32.gmra.mrb[0].mxu0 %v539
  %v688 = vpop.f32.mrb[0].mxu0
  %v689 = vadd.f32 %v605, %v688
  %v690 = vpop.f32.mrb[0].mxu0
  %691 = vmatprep.mubr.f32.mxu0 0.0
  %692 = vmatmul.mubr.f32.gmra.mrb[0].mxu0 %v540
  %v693 = vpop.f32.mrb[0].mxu0
  %v694 = vadd.f32 %v605, %v693
  %v695 = vpop.f32.mrb[0].mxu0
  %696 = vmatprep.mubr.f32.mxu0 0.0
  %697 = vmatmul.mubr.f32.gmra.mrb[0].mxu0 %v541
  %v698 = vpop.f32.mrb[0].mxu0
  %v699 = vadd.f32 %v605, %v698
  %v700 = vpop.f32.mrb[0].mxu0
  %701 = vmatprep.mubr.f32.mxu0 0.0
  %702 = vmatmul.mubr.f32.gmra.mrb[0].mxu0 %v542
  %v703 = vpop.f32.mrb[0].mxu0
  %v704 = vadd.f32 %v605, %v703
  %v705 = vpop.f32.mrb[0].mxu0
  %706 = vmatprep.mubr.f32.mxu0 0.0
  %707 = vmatmul.mubr.f32.gmra.mrb[0].mxu0 %v543
  %v708 = vpop.f32.mrb[0].mxu0
  %v709 = vadd.f32 %v605, %v708
  %v710 = vpop.f32.mrb[0].mxu0
  %711 = vmatprep.mubr.f32.mxu0 0.0
  %712 = vmatmul.mubr.f32.gmra.mrb[0].mxu0 %v544
  %v713 = vpop.f32.mrb[0].mxu0
  %v714 = vadd.f32 %v605, %v713
  %v715 = vpop.f32.mrb[0].mxu0
  %716 = vmatprep.mubr.f32.mxu0 0.0
  %717 = vmatmul.mubr.f32.gmra.mrb[0].mxu0 %v545
  %v718 = vpop.f32.mrb[0].mxu0
  %v719 = vadd.f32 %v605, %v718
  %v720 = vpop.f32.mrb[0].mxu0
  %721 = vmatprep.mubr.f32.mxu0 0.0
  %722 = vmatmul.mubr.f32.gmra.mrb[0].mxu0 %v546
  %v723 = vpop.f32.mrb[0].mxu0
  %v724 = vadd.f32 %v605, %v723
  %v725 = vpop.f32.mrb[0].mxu0
  %726 = vmatprep.mubr.f32.mxu0 0.0
  %727 = vmatmul.mubr.f32.gmra.mrb[0].mxu0 %v547
  %v728 = vpop.f32.mrb[0].mxu0
  %v729 = vadd.f32 %v605, %v728
  %v730 = vpop.f32.mrb[0].mxu0
  %731 = vmatprep.mubr.f32.mxu0 0.0
  %732 = vmatmul.mubr.f32.gmra.mrb[0].mxu0 %v548
  %v733 = vpop.f32.mrb[0].mxu0
  %v734 = vadd.f32 %v605, %v733
  %v735 = vpop.f32.mrb[0].mxu0
  %736 = vmatprep.mubr.f32.mxu0 0.0
  %737 = vmatmul.mubr.f32.gmra.mrb[0].mxu0 %v549
  %v738 = vpop.f32.mrb[0].mxu0
  %v739 = vadd.f32 %v605, %v738
  %v740 = vpop.f32.mrb[0].mxu0
  %741 = vmatprep.mubr.f32.mxu0 0.0
  %742 = vmatmul.mubr.f32.gmra.mrb[0].mxu0 %v550
  %v743 = vpop.f32.mrb[0].mxu0
  %v744 = vadd.f32 %v605, %v743
  %v745 = vpop.f32.mrb[0].mxu0
  %746 = vmatprep.mubr.f32.mxu0 0.0
  %747 = vmatmul.mubr.f32.gmra.mrb[0].mxu0 %v551
  %v748 = vpop.f32.mrb[0].mxu0
  %v749 = vadd.f32 %v605, %v748
  %v750 = vpop.f32.mrb[0].mxu0
  %751 = vmatprep.mubr.f32.mxu0 0.0
  %752 = vmatmul.mubr.f32.gmra.mrb[0].mxu0 %v552
  %v753 = vpop.f32.mrb[0].mxu0
  %v754 = vadd.f32 %v605, %v753
  %v755 = vpop.f32.mrb[0].mxu0
  %756 = vmatprep.mubr.f32.mxu0 0.0
  %757 = vmatmul.mubr.f32.gmra.mrb[0].mxu0 %v553
  %v758 = vpop.f32.mrb[0].mxu0
  %v759 = vadd.f32 %v605, %v758
  %v760 = vpop.f32.mrb[0].mxu0
  %761 = vmatprep.mubr.f32.mxu0 0.0
  %762 = vmatmul.mubr.f32.gmra.mrb[0].mxu0 %v554
  %v763 = vpop.f32.mrb[0].mxu0
  %v764 = vadd.f32 %v605, %v763
  %v765 = vpop.f32.mrb[0].mxu0
  %766 = vmatprep.mubr.f32.mxu0 0.0
  %767 = vmatmul.mubr.f32.gmra.mrb[0].mxu0 %v555
  %v768 = vpop.f32.mrb[0].mxu0
  %v769 = vadd.f32 %v605, %v768
  %v770 = vpop.f32.mrb[0].mxu0
  %771 = vmatprep.mubr.f32.mxu0 0.0
  %772 = vmatmul.mubr.f32.gmra.mrb[0].mxu0 %v556
  %v773 = vpop.f32.mrb[0].mxu0
  %v774 = vadd.f32 %v605, %v773
  %v775 = vpop.f32.mrb[0].mxu0
  %776 = vmatprep.mubr.f32.mxu0 0.0
  %777 = vmatmul.mubr.f32.gmra.mrb[0].mxu0 %v557
  %v778 = vpop.f32.mrb[0].mxu0
  %v779 = vadd.f32 %v605, %v778
  %v780 = vpop.f32.mrb[0].mxu0
  %781 = vmatprep.mubr.f32.mxu0 0.0
  %782 = vmatmul.mubr.f32.gmra.mrb[0].mxu0 %v558
  %v783 = vpop.f32.mrb[0].mxu0
  %v784 = vadd.f32 %v605, %v783
  %v785 = vpop.f32.mrb[0].mxu0
  %786 = vmatprep.mubr.f32.mxu0 0.0
  %787 = vmatmul.mubr.f32.gmra.mrb[0].mxu0 %v559
  %v788 = vpop.f32.mrb[0].mxu0
  %v789 = vadd.f32 %v605, %v788
  %v790 = vpop.f32.mrb[0].mxu0
  %791 = vmatprep.mubr.f32.mxu0 0.0
  %792 = vmatmul.mubr.f32.gmra.mrb[0].mxu0 %v560
  %v793 = vpop.f32.mrb[0].mxu0
  %v794 = vadd.f32 %v605, %v793
  %v795 = vpop.f32.mrb[0].mxu0
  %796 = vmatprep.mubr.f32.mxu0 0.0
  %797 = vmatmul.mubr.f32.gmra.mrb[0].mxu0 %v561
  %v798 = vpop.f32.mrb[0].mxu0
  %v799 = vadd.f32 %v605, %v798
  %v800 = vpop.f32.mrb[0].mxu0
  %801 = vmatprep.mubr.f32.mxu0 0.0
  %802 = vmatmul.mubr.f32.gmra.mrb[0].mxu0 %v562
  %v803 = vpop.f32.mrb[0].mxu0
  %v804 = vadd.f32 %v605, %v803
  %v805 = vpop.f32.mrb[0].mxu0
  %806 = vmatprep.mubr.f32.mxu0 0.0
  %807 = vmatmul.mubr.f32.gmra.mrb[0].mxu0 %v563
  %v808 = vpop.f32.mrb[0].mxu0
  %v809 = vadd.f32 %v605, %v808
  %v810 = vpop.f32.mrb[0].mxu0
  %811 = vmatprep.mubr.f32.mxu0 0.0
  %812 = vmatmul.mubr.f32.gmra.mrb[0].mxu0 %v564
  %v813 = vpop.f32.mrb[0].mxu0
  %v814 = vadd.f32 %v605, %v813
  %v815 = vpop.f32.mrb[0].mxu0
  %816 = vmatprep.mubr.f32.mxu0 0.0
  %817 = vmatmul.mubr.f32.gmra.mrb[0].mxu0 %v565
  %v818 = vpop.f32.mrb[0].mxu0
  %v819 = vadd.f32 %v605, %v818
  %v820 = vpop.f32.mrb[0].mxu0
  %821 = vmatprep.mubr.f32.mxu0 0.0
  %822 = vmatmul.mubr.f32.gmra.mrb[0].mxu0 %v566
  %v823 = vpop.f32.mrb[0].mxu0
  %v824 = vadd.f32 %v605, %v823
  %v825 = vpop.f32.mrb[0].mxu0
  %826 = vmatprep.mubr.f32.mxu0 0.0
  %827 = vmatmul.mubr.f32.gmra.mrb[0].mxu0 %v567
  %v828 = vpop.f32.mrb[0].mxu0
  %v829 = vadd.f32 %v605, %v828
  %v830 = vpop.f32.mrb[0].mxu0
  %831 = vmatprep.mubr.f32.mxu0 0.0
  %832 = vmatmul.mubr.f32.gmra.mrb[0].mxu0 %v568
  %v833 = vpop.f32.mrb[0].mxu0
  %v834 = vadd.f32 %v605, %v833
  %v835 = vpop.f32.mrb[0].mxu0
  %836 = vmatprep.mubr.f32.mxu0 0.0
  %837 = vmatmul.mubr.f32.gmra.mrb[0].mxu0 %v569
  %v838 = vpop.f32.mrb[0].mxu0
  %v839 = vadd.f32 %v605, %v838
  %v840 = vpop.f32.mrb[0].mxu0
  %841 = vmatprep.mubr.f32.mxu0 0.0
  %842 = vmatmul.mubr.f32.gmra.mrb[0].mxu0 %v570
  %v843 = vpop.f32.mrb[0].mxu0
  %v844 = vadd.f32 %v605, %v843
  %v845 = vpop.f32.mrb[0].mxu0
  %846 = vmatprep.mubr.f32.mxu0 0.0
  %847 = vmatmul.mubr.f32.gmra.mrb[0].mxu0 %v571
  %v848 = vpop.f32.mrb[0].mxu0
  %v849 = vadd.f32 %v605, %v848
  %v850 = vpop.f32.mrb[0].mxu0
  %851 = vmatprep.mubr.f32.mxu0 0.0
  %852 = vmatmul.mubr.f32.gmra.mrb[0].mxu0 %v572
  %v853 = vpop.f32.mrb[0].mxu0
  %v854 = vadd.f32 %v605, %v853
  %v855 = vpop.f32.mrb[0].mxu0
  %856 = vmatprep.mubr.f32.mxu0 0.0
  %857 = vmatmul.mubr.f32.gmra.mrb[0].mxu0 %v573
  %v858 = vpop.f32.mrb[0].mxu0
  %v859 = vadd.f32 %v605, %v858
  %v860 = vpop.f32.mrb[0].mxu0
  %861 = vmatprep.mubr.f32.mxu0 0.0
  %862 = vmatmul.mubr.f32.gmra.mrb[0].mxu0 %v574
  %v863 = vpop.f32.mrb[0].mxu0
  %v864 = vadd.f32 %v605, %v863
  %v865 = vpop.f32.mrb[0].mxu0
  %866 = vmatprep.mubr.f32.mxu0 0.0
  %867 = vmatmul.mubr.f32.gmra.mrb[0].mxu0 %v575
  %v868 = vpop.f32.mrb[0].mxu0
  %v869 = vadd.f32 %v605, %v868
  %v870 = vpop.f32.mrb[0].mxu0
  %871 = vmatprep.mubr.f32.mxu0 0.0
  %872 = vmatmul.mubr.f32.gmra.mrb[0].mxu0 %v576
  %v873 = vpop.f32.mrb[0].mxu0
  %v874 = vadd.f32 %v605, %v873
  %v875 = vpop.f32.mrb[0].mxu0
  %876 = vmatprep.mubr.f32.mxu0 0.0
  %877 = vmatmul.mubr.f32.gmra.mrb[0].mxu0 %v577
  %v878 = vpop.f32.mrb[0].mxu0
  %v879 = vadd.f32 %v605, %v878
  %v880 = vpop.f32.mrb[0].mxu0
  %881 = vmatprep.mubr.f32.mxu0 0.0
  %882 = vmatmul.mubr.f32.gmra.mrb[0].mxu0 %v578
  %v883 = vpop.f32.mrb[0].mxu0
  %v884 = vadd.f32 %v605, %v883
  %v885 = vpop.f32.mrb[0].mxu0
  %886 = vmatprep.mubr.f32.mxu0 0.0
  %887 = vmatmul.mubr.f32.gmra.mrb[0].mxu0 %v579
  %v888 = vpop.f32.mrb[0].mxu0
  %v889 = vadd.f32 %v605, %v888
  %v890 = vpop.f32.mrb[0].mxu0
  %891 = vmatprep.mubr.f32.mxu0 0.0
  %892 = vmatmul.mubr.f32.gmra.mrb[0].mxu0 %v580
  %v893 = vpop.f32.mrb[0].mxu0
  %v894 = vadd.f32 %v605, %v893
  %v895 = vpop.f32.mrb[0].mxu0
  %896 = vmatprep.mubr.f32.mxu0 0.0
  %897 = vmatmul.mubr.f32.gmra.mrb[0].mxu0 %v581
  %v898 = vpop.f32.mrb[0].mxu0
  %v899 = vadd.f32 %v605, %v898
  %v900 = vpop.f32.mrb[0].mxu0
  %901 = vmatprep.mubr.f32.mxu0 0.0
  %902 = vmatmul.mubr.f32.gmra.mrb[0].mxu0 %v582
  %v903 = vpop.f32.mrb[0].mxu0
  %v904 = vadd.f32 %v605, %v903
  %v905 = vpop.f32.mrb[0].mxu0
  %906 = vmatprep.mubr.f32.mxu0 0.0
  %907 = vmatmul.mubr.f32.gmra.mrb[0].mxu0 %v583
  %v908 = vpop.f32.mrb[0].mxu0
  %v909 = vadd.f32 %v605, %v908
  %v910 = vpop.f32.mrb[0].mxu0
  %911 = vdwg.mxu0
  %v912 = vmax.f32 %v674, 0.0
  %v913 = vmax.f32 %v679, 0.0
  %v914 = vmax.f32 %v684, 0.0
  %v915 = vmax.f32 %v689, 0.0
  %v916 = vmax.f32 %v694, 0.0
  %v917 = vmax.f32 %v699, 0.0
  %v918 = vmax.f32 %v704, 0.0
  %v919 = vmax.f32 %v709, 0.0
  %v920 = vmax.f32 %v714, 0.0
  %v921 = vmax.f32 %v719, 0.0
  %v922 = vmax.f32 %v724, 0.0
  %v923 = vmax.f32 %v729, 0.0
  %v924 = vmax.f32 %v734, 0.0
  %v925 = vmax.f32 %v739, 0.0
  %v926 = vmax.f32 %v744, 0.0
  %v927 = vmax.f32 %v749, 0.0
  %v928 = vmax.f32 %v754, 0.0
  %v929 = vmax.f32 %v759, 0.0
  %v930 = vmax.f32 %v764, 0.0
  %v931 = vmax.f32 %v769, 0.0
  %v932 = vmax.f32 %v774, 0.0
  %v933 = vmax.f32 %v779, 0.0
  %v934 = vmax.f32 %v784, 0.0
  %v935 = vmax.f32 %v789, 0.0
  %v936 = vmax.f32 %v794, 0.0
  %v937 = vmax.f32 %v799, 0.0
  %v938 = vmax.f32 %v804, 0.0
  %v939 = vmax.f32 %v809, 0.0
  %v940 = vmax.f32 %v814, 0.0
  %v941 = vmax.f32 %v819, 0.0
  %v942 = vmax.f32 %v824, 0.0
  %v943 = vmax.f32 %v829, 0.0
  %v944 = vmax.f32 %v834, 0.0
  %v945 = vmax.f32 %v839, 0.0
  %v946 = vmax.f32 %v844, 0.0
  %v947 = vmax.f32 %v849, 0.0
  %v948 = vmax.f32 %v854, 0.0
  %v949 = vmax.f32 %v859, 0.0
  %v950 = vmax.f32 %v864, 0.0
  %v951 = vmax.f32 %v869, 0.0
  %v952 = vmax.f32 %v874, 0.0
  %v953 = vmax.f32 %v879, 0.0
  %v954 = vmax.f32 %v884, 0.0
  %v955 = vmax.f32 %v889, 0.0
  %v956 = vmax.f32 %v894, 0.0
  %v957 = vmax.f32 %v899, 0.0
  %v958 = vmax.f32 %v904, 0.0
  %v959 = vmax.f32 %v909, 0.0
  %v960 = vld [vmem:[%s5] sm:$0x1]
  %v962 = vlaneseq
  %v963 = vshrl.u32 %v962, 7
  %v964 = vsub.s32 0, %v963
  %v965 = vrot.slane %v960, %v964
  %v967 = vmul.f32 %v912, %v965
  %v968 = vmul.f32 %v913, %v965
  %v969 = vmul.f32 %v914, %v965
  %v970 = vmul.f32 %v915, %v965
  %v971 = vmul.f32 %v916, %v965
  %v972 = vmul.f32 %v917, %v965
  %v973 = vmul.f32 %v918, %v965
  %v974 = vmul.f32 %v919, %v965
  %v975 = vmul.f32 %v920, %v965
  %v976 = vmul.f32 %v921, %v965
  %v977 = vmul.f32 %v922, %v965
  %v978 = vmul.f32 %v923, %v965
  %v979 = vmul.f32 %v924, %v965
  %v980 = vmul.f32 %v925, %v965
  %v981 = vmul.f32 %v926, %v965
  %v982 = vmul.f32 %v927, %v965
  %v983 = vmul.f32 %v928, %v965
  %v984 = vmul.f32 %v929, %v965
  %v985 = vmul.f32 %v930, %v965
  %v986 = vmul.f32 %v931, %v965
  %v987 = vmul.f32 %v932, %v965
  %v988 = vmul.f32 %v933, %v965
  %v989 = vmul.f32 %v934, %v965
  %v990 = vmul.f32 %v935, %v965
  %v991 = vmul.f32 %v936, %v965
  %v992 = vmul.f32 %v937, %v965
  %v993 = vmul.f32 %v938, %v965
  %v994 = vmul.f32 %v939, %v965
  %v995 = vmul.f32 %v940, %v965
  %v996 = vmul.f32 %v941, %v965
  %v997 = vmul.f32 %v942, %v965
  %v998 = vmul.f32 %v943, %v965
  %v999 = vmul.f32 %v944, %v965
  %v1000 = vmul.f32 %v945, %v965
  %v1001 = vmul.f32 %v946, %v965
  %v1002 = vmul.f32 %v947, %v965
  %v1003 = vmul.f32 %v948, %v965
  %v1004 = vmul.f32 %v949, %v965
  %v1005 = vmul.f32 %v950, %v965
  %v1006 = vmul.f32 %v951, %v965
  %v1007 = vmul.f32 %v952, %v965
  %v1008 = vmul.f32 %v953, %v965
  %v1009 = vmul.f32 %v954, %v965
  %v1010 = vmul.f32 %v955, %v965
  %v1011 = vmul.f32 %v956, %v965
  %v1012 = vmul.f32 %v957, %v965
  %v1013 = vmul.f32 %v958, %v965
  %v1014 = vmul.f32 %v959, %v965
  %1015 = vadd.xlane.f32.xlu0 %v967
  %v1016 = vpop.xlane.xlu0 %1015
  %1017 = vadd.xlane.f32.xlu0 %v968
  %v1018 = vpop.xlane.xlu0 %1017
  %1019 = vadd.xlane.f32.xlu0 %v969
  %v1020 = vpop.xlane.xlu0 %1019
  %1021 = vadd.xlane.f32.xlu0 %v970
  %v1022 = vpop.xlane.xlu0 %1021
  %1023 = vadd.xlane.f32.xlu0 %v971
  %v1024 = vpop.xlane.xlu0 %1023
  %1025 = vadd.xlane.f32.xlu0 %v972
  %v1026 = vpop.xlane.xlu0 %1025
  %1027 = vadd.xlane.f32.xlu0 %v973
  %v1028 = vpop.xlane.xlu0 %1027
  %1029 = vadd.xlane.f32.xlu0 %v974
  %v1030 = vpop.xlane.xlu0 %1029
  %1031 = vadd.xlane.f32.xlu0 %v975
  %v1032 = vpop.xlane.xlu0 %1031
  %1033 = vadd.xlane.f32.xlu0 %v976
  %v1034 = vpop.xlane.xlu0 %1033
  %1035 = vadd.xlane.f32.xlu0 %v977
  %v1036 = vpop.xlane.xlu0 %1035
  %1037 = vadd.xlane.f32.xlu0 %v978
  %v1038 = vpop.xlane.xlu0 %1037
  %1039 = vadd.xlane.f32.xlu0 %v979
  %v1040 = vpop.xlane.xlu0 %1039
  %1041 = vadd.xlane.f32.xlu0 %v980
  %v1042 = vpop.xlane.xlu0 %1041
  %1043 = vadd.xlane.f32.xlu0 %v981
  %v1044 = vpop.xlane.xlu0 %1043
  %1045 = vadd.xlane.f32.xlu0 %v982
  %v1046 = vpop.xlane.xlu0 %1045
  %1047 = vadd.xlane.f32.xlu0 %v983
  %v1048 = vpop.xlane.xlu0 %1047
  %1049 = vadd.xlane.f32.xlu0 %v984
  %v1050 = vpop.xlane.xlu0 %1049
  %1051 = vadd.xlane.f32.xlu0 %v985
  %v1052 = vpop.xlane.xlu0 %1051
  %1053 = vadd.xlane.f32.xlu0 %v986
  %v1054 = vpop.xlane.xlu0 %1053
  %1055 = vadd.xlane.f32.xlu0 %v987
  %v1056 = vpop.xlane.xlu0 %1055
  %1057 = vadd.xlane.f32.xlu0 %v988
  %v1058 = vpop.xlane.xlu0 %1057
  %1059 = vadd.xlane.f32.xlu0 %v989
  %v1060 = vpop.xlane.xlu0 %1059
  %1061 = vadd.xlane.f32.xlu0 %v990
  %v1062 = vpop.xlane.xlu0 %1061
  %1063 = vadd.xlane.f32.xlu0 %v991
  %v1064 = vpop.xlane.xlu0 %1063
  %1065 = vadd.xlane.f32.xlu0 %v992
  %v1066 = vpop.xlane.xlu0 %1065
  %1067 = vadd.xlane.f32.xlu0 %v993
  %v1068 = vpop.xlane.xlu0 %1067
  %1069 = vadd.xlane.f32.xlu0 %v994
  %v1070 = vpop.xlane.xlu0 %1069
  %1071 = vadd.xlane.f32.xlu0 %v995
  %v1072 = vpop.xlane.xlu0 %1071
  %1073 = vadd.xlane.f32.xlu0 %v996
  %v1074 = vpop.xlane.xlu0 %1073
  %1075 = vadd.xlane.f32.xlu0 %v997
  %v1076 = vpop.xlane.xlu0 %1075
  %1077 = vadd.xlane.f32.xlu0 %v998
  %v1078 = vpop.xlane.xlu0 %1077
  %1079 = vadd.xlane.f32.xlu0 %v999
  %v1080 = vpop.xlane.xlu0 %1079
  %1081 = vadd.xlane.f32.xlu0 %v1000
  %v1082 = vpop.xlane.xlu0 %1081
  %1083 = vadd.xlane.f32.xlu0 %v1001
  %v1084 = vpop.xlane.xlu0 %1083
  %1085 = vadd.xlane.f32.xlu0 %v1002
  %v1086 = vpop.xlane.xlu0 %1085
  %1087 = vadd.xlane.f32.xlu0 %v1003
  %v1088 = vpop.xlane.xlu0 %1087
  %1089 = vadd.xlane.f32.xlu0 %v1004
  %v1090 = vpop.xlane.xlu0 %1089
  %1091 = vadd.xlane.f32.xlu0 %v1005
  %v1092 = vpop.xlane.xlu0 %1091
  %1093 = vadd.xlane.f32.xlu0 %v1006
  %v1094 = vpop.xlane.xlu0 %1093
  %1095 = vadd.xlane.f32.xlu0 %v1007
  %v1096 = vpop.xlane.xlu0 %1095
  %1097 = vadd.xlane.f32.xlu0 %v1008
  %v1098 = vpop.xlane.xlu0 %1097
  %1099 = vadd.xlane.f32.xlu0 %v1009
  %v1100 = vpop.xlane.xlu0 %1099
  %1101 = vadd.xlane.f32.xlu0 %v1010
  %v1102 = vpop.xlane.xlu0 %1101
  %1103 = vadd.xlane.f32.xlu0 %v1011
  %v1104 = vpop.xlane.xlu0 %1103
  %1105 = vadd.xlane.f32.xlu0 %v1012
  %v1106 = vpop.xlane.xlu0 %1105
  %1107 = vadd.xlane.f32.xlu0 %v1013
  %v1108 = vpop.xlane.xlu0 %1107
  %1109 = vadd.xlane.f32.xlu0 %v1014
  %v1110 = vpop.xlane.xlu0 %1109
  %s1111 = sld [smem:[#allocation2]]
  %v1112 = vstv %s1111
  %v1113 = vadd.f32 %v1016, %v1112
  %v1114 = vadd.f32 %v1018, %v1112
  %v1115 = vadd.f32 %v1020, %v1112
  %v1116 = vadd.f32 %v1022, %v1112
  %v1117 = vadd.f32 %v1024, %v1112
  %v1118 = vadd.f32 %v1026, %v1112
  %v1119 = vadd.f32 %v1028, %v1112
  %v1120 = vadd.f32 %v1030, %v1112
  %v1121 = vadd.f32 %v1032, %v1112
  %v1122 = vadd.f32 %v1034, %v1112
  %v1123 = vadd.f32 %v1036, %v1112
  %v1124 = vadd.f32 %v1038, %v1112
  %v1125 = vadd.f32 %v1040, %v1112
  %v1126 = vadd.f32 %v1042, %v1112
  %v1127 = vadd.f32 %v1044, %v1112
  %v1128 = vadd.f32 %v1046, %v1112
  %v1129 = vadd.f32 %v1048, %v1112
  %v1130 = vadd.f32 %v1050, %v1112
  %v1131 = vadd.f32 %v1052, %v1112
  %v1132 = vadd.f32 %v1054, %v1112
  %v1133 = vadd.f32 %v1056, %v1112
  %v1134 = vadd.f32 %v1058, %v1112
  %v1135 = vadd.f32 %v1060, %v1112
  %v1136 = vadd.f32 %v1062, %v1112
  %v1137 = vadd.f32 %v1064, %v1112
  %v1138 = vadd.f32 %v1066, %v1112
  %v1139 = vadd.f32 %v1068, %v1112
  %v1140 = vadd.f32 %v1070, %v1112
  %v1141 = vadd.f32 %v1072, %v1112
  %v1142 = vadd.f32 %v1074, %v1112
  %v1143 = vadd.f32 %v1076, %v1112
  %v1144 = vadd.f32 %v1078, %v1112
  %v1145 = vadd.f32 %v1080, %v1112
  %v1146 = vadd.f32 %v1082, %v1112
  %v1147 = vadd.f32 %v1084, %v1112
  %v1148 = vadd.f32 %v1086, %v1112
  %v1149 = vadd.f32 %v1088, %v1112
  %v1150 = vadd.f32 %v1090, %v1112
  %v1151 = vadd.f32 %v1092, %v1112
  %v1152 = vadd.f32 %v1094, %v1112
  %v1153 = vadd.f32 %v1096, %v1112
  %v1154 = vadd.f32 %v1098, %v1112
  %v1155 = vadd.f32 %v1100, %v1112
  %v1156 = vadd.f32 %v1102, %v1112
  %v1157 = vadd.f32 %v1104, %v1112
  %v1158 = vadd.f32 %v1106, %v1112
  %v1159 = vadd.f32 %v1108, %v1112
  %v1160 = vadd.f32 %v1110, %v1112
  %v1161 = vxor.u32 %v1113, 2147483648
  %v1162 = vxor.u32 %v1114, 2147483648
  %v1163 = vxor.u32 %v1115, 2147483648
  %v1164 = vxor.u32 %v1116, 2147483648
  %v1165 = vxor.u32 %v1117, 2147483648
  %v1166 = vxor.u32 %v1118, 2147483648
  %v1167 = vxor.u32 %v1119, 2147483648
  %v1168 = vxor.u32 %v1120, 2147483648
  %v1169 = vxor.u32 %v1121, 2147483648
  %v1170 = vxor.u32 %v1122, 2147483648
  %v1171 = vxor.u32 %v1123, 2147483648
  %v1172 = vxor.u32 %v1124, 2147483648
  %v1173 = vxor.u32 %v1125, 2147483648
  %v1174 = vxor.u32 %v1126, 2147483648
  %v1175 = vxor.u32 %v1127, 2147483648
  %v1176 = vxor.u32 %v1128, 2147483648
  %v1177 = vxor.u32 %v1129, 2147483648
  %v1178 = vxor.u32 %v1130, 2147483648
  %v1179 = vxor.u32 %v1131, 2147483648
  %v1180 = vxor.u32 %v1132, 2147483648
  %v1181 = vxor.u32 %v1133, 2147483648
  %v1182 = vxor.u32 %v1134, 2147483648
  %v1183 = vxor.u32 %v1135, 2147483648
  %v1184 = vxor.u32 %v1136, 2147483648
  %v1185 = vxor.u32 %v1137, 2147483648
  %v1186 = vxor.u32 %v1138, 2147483648
  %v1187 = vxor.u32 %v1139, 2147483648
  %v1188 = vxor.u32 %v1140, 2147483648
  %v1189 = vxor.u32 %v1141, 2147483648
  %v1190 = vxor.u32 %v1142, 2147483648
  %v1191 = vxor.u32 %v1143, 2147483648
  %v1192 = vxor.u32 %v1144, 2147483648
  %v1193 = vxor.u32 %v1145, 2147483648
  %v1194 = vxor.u32 %v1146, 2147483648
  %v1195 = vxor.u32 %v1147, 2147483648
  %v1196 = vxor.u32 %v1148, 2147483648
  %v1197 = vxor.u32 %v1149, 2147483648
  %v1198 = vxor.u32 %v1150, 2147483648
  %v1199 = vxor.u32 %v1151, 2147483648
  %v1200 = vxor.u32 %v1152, 2147483648
  %v1201 = vxor.u32 %v1153, 2147483648
  %v1202 = vxor.u32 %v1154, 2147483648
  %v1203 = vxor.u32 %v1155, 2147483648
  %v1204 = vxor.u32 %v1156, 2147483648
  %v1205 = vxor.u32 %v1157, 2147483648
  %v1206 = vxor.u32 %v1158, 2147483648
  %v1207 = vxor.u32 %v1159, 2147483648
  %v1208 = vxor.u32 %v1160, 2147483648
  %v1209 = vmul.f32 %v1161, 1.442695
  %v1210 = vpow.pop %v1209
  %v1211 = vmul.f32 %v1162, 1.442695
  %v1212 = vpow.pop %v1211
  %v1213 = vmul.f32 %v1163, 1.442695
  %v1214 = vpow.pop %v1213
  %v1215 = vmul.f32 %v1164, 1.442695
  %v1216 = vpow.pop %v1215
  %v1217 = vmul.f32 %v1165, 1.442695
  %v1218 = vpow.pop %v1217
  %v1219 = vmul.f32 %v1166, 1.442695
  %v1220 = vpow.pop %v1219
  %v1221 = vmul.f32 %v1167, 1.442695
  %v1222 = vpow.pop %v1221
  %v1223 = vmul.f32 %v1168, 1.442695
  %v1224 = vpow.pop %v1223
  %v1225 = vmul.f32 %v1169, 1.442695
  %v1226 = vpow.pop %v1225
  %v1227 = vmul.f32 %v1170, 1.442695
  %v1228 = vpow.pop %v1227
  %v1229 = vmul.f32 %v1171, 1.442695
  %v1230 = vpow.pop %v1229
  %v1231 = vmul.f32 %v1172, 1.442695
  %v1232 = vpow.pop %v1231
  %v1233 = vmul.f32 %v1173, 1.442695
  %v1234 = vpow.pop %v1233
  %v1235 = vmul.f32 %v1174, 1.442695
  %v1236 = vpow.pop %v1235
  %v1237 = vmul.f32 %v1175, 1.442695
  %v1238 = vpow.pop %v1237
  %v1239 = vmul.f32 %v1176, 1.442695
  %v1240 = vpow.pop %v1239
  %v1241 = vmul.f32 %v1177, 1.442695
  %v1242 = vpow.pop %v1241
  %v1243 = vmul.f32 %v1178, 1.442695
  %v1244 = vpow.pop %v1243
  %v1245 = vmul.f32 %v1179, 1.442695
  %v1246 = vpow.pop %v1245
  %v1247 = vmul.f32 %v1180, 1.442695
  %v1248 = vpow.pop %v1247
  %v1249 = vmul.f32 %v1181, 1.442695
  %v1250 = vpow.pop %v1249
  %v1251 = vmul.f32 %v1182, 1.442695
  %v1252 = vpow.pop %v1251
  %v1253 = vmul.f32 %v1183, 1.442695
  %v1254 = vpow.pop %v1253
  %v1255 = vmul.f32 %v1184, 1.442695
  %v1256 = vpow.pop %v1255
  %v1257 = vmul.f32 %v1185, 1.442695
  %v1258 = vpow.pop %v1257
  %v1259 = vmul.f32 %v1186, 1.442695
  %v1260 = vpow.pop %v1259
  %v1261 = vmul.f32 %v1187, 1.442695
  %v1262 = vpow.pop %v1261
  %v1263 = vmul.f32 %v1188, 1.442695
  %v1264 = vpow.pop %v1263
  %v1265 = vmul.f32 %v1189, 1.442695
  %v1266 = vpow.pop %v1265
  %v1267 = vmul.f32 %v1190, 1.442695
  %v1268 = vpow.pop %v1267
  %v1269 = vmul.f32 %v1191, 1.442695
  %v1270 = vpow.pop %v1269
  %v1271 = vmul.f32 %v1192, 1.442695
  %v1272 = vpow.pop %v1271
  %v1273 = vmul.f32 %v1193, 1.442695
  %v1274 = vpow.pop %v1273
  %v1275 = vmul.f32 %v1194, 1.442695
  %v1276 = vpow.pop %v1275
  %v1277 = vmul.f32 %v1195, 1.442695
  %v1278 = vpow.pop %v1277
  %v1279 = vmul.f32 %v1196, 1.442695
  %v1280 = vpow.pop %v1279
  %v1281 = vmul.f32 %v1197, 1.442695
  %v1282 = vpow.pop %v1281
  %v1283 = vmul.f32 %v1198, 1.442695
  %v1284 = vpow.pop %v1283
  %v1285 = vmul.f32 %v1199, 1.442695
  %v1286 = vpow.pop %v1285
  %v1287 = vmul.f32 %v1200, 1.442695
  %v1288 = vpow.pop %v1287
  %v1289 = vmul.f32 %v1201, 1.442695
  %v1290 = vpow.pop %v1289
  %v1291 = vmul.f32 %v1202, 1.442695
  %v1292 = vpow.pop %v1291
  %v1293 = vmul.f32 %v1203, 1.442695
  %v1294 = vpow.pop %v1293
  %v1295 = vmul.f32 %v1204, 1.442695
  %v1296 = vpow.pop %v1295
  %v1297 = vmul.f32 %v1205, 1.442695
  %v1298 = vpow.pop %v1297
  %v1299 = vmul.f32 %v1206, 1.442695
  %v1300 = vpow.pop %v1299
  %v1301 = vmul.f32 %v1207, 1.442695
  %v1302 = vpow.pop %v1301
  %v1303 = vmul.f32 %v1208, 1.442695
  %v1304 = vpow.pop %v1303
  %v1305 = vadd.f32 %v1210, 1.0
  %v1306 = vadd.f32 %v1212, 1.0
  %v1307 = vadd.f32 %v1214, 1.0
  %v1308 = vadd.f32 %v1216, 1.0
  %v1309 = vadd.f32 %v1218, 1.0
  %v1310 = vadd.f32 %v1220, 1.0
  %v1311 = vadd.f32 %v1222, 1.0
  %v1312 = vadd.f32 %v1224, 1.0
  %v1313 = vadd.f32 %v1226, 1.0
  %v1314 = vadd.f32 %v1228, 1.0
  %v1315 = vadd.f32 %v1230, 1.0
  %v1316 = vadd.f32 %v1232, 1.0
  %v1317 = vadd.f32 %v1234, 1.0
  %v1318 = vadd.f32 %v1236, 1.0
  %v1319 = vadd.f32 %v1238, 1.0
  %v1320 = vadd.f32 %v1240, 1.0
  %v1321 = vadd.f32 %v1242, 1.0
  %v1322 = vadd.f32 %v1244, 1.0
  %v1323 = vadd.f32 %v1246, 1.0
  %v1324 = vadd.f32 %v1248, 1.0
  %v1325 = vadd.f32 %v1250, 1.0
  %v1326 = vadd.f32 %v1252, 1.0
  %v1327 = vadd.f32 %v1254, 1.0
  %v1328 = vadd.f32 %v1256, 1.0
  %v1329 = vadd.f32 %v1258, 1.0
  %v1330 = vadd.f32 %v1260, 1.0
  %v1331 = vadd.f32 %v1262, 1.0
  %v1332 = vadd.f32 %v1264, 1.0
  %v1333 = vadd.f32 %v1266, 1.0
  %v1334 = vadd.f32 %v1268, 1.0
  %v1335 = vadd.f32 %v1270, 1.0
  %v1336 = vadd.f32 %v1272, 1.0
  %v1337 = vadd.f32 %v1274, 1.0
  %v1338 = vadd.f32 %v1276, 1.0
  %v1339 = vadd.f32 %v1278, 1.0
  %v1340 = vadd.f32 %v1280, 1.0
  %v1341 = vadd.f32 %v1282, 1.0
  %v1342 = vadd.f32 %v1284, 1.0
  %v1343 = vadd.f32 %v1286, 1.0
  %v1344 = vadd.f32 %v1288, 1.0
  %v1345 = vadd.f32 %v1290, 1.0
  %v1346 = vadd.f32 %v1292, 1.0
  %v1347 = vadd.f32 %v1294, 1.0
  %v1348 = vadd.f32 %v1296, 1.0
  %v1349 = vadd.f32 %v1298, 1.0
  %v1350 = vadd.f32 %v1300, 1.0
  %v1351 = vadd.f32 %v1302, 1.0
  %v1352 = vadd.f32 %v1304, 1.0
  %v1353 = vrcp.pop %v1305
  %v1354 = vmul.f32 1.0, %v1353
  %v1355 = vrcp.pop %v1306
  %v1356 = vmul.f32 1.0, %v1355
  %v1357 = vrcp.pop %v1307
  %v1358 = vmul.f32 1.0, %v1357
  %v1359 = vrcp.pop %v1308
  %v1360 = vmul.f32 1.0, %v1359
  %v1361 = vrcp.pop %v1309
  %v1362 = vmul.f32 1.0, %v1361
  %v1363 = vrcp.pop %v1310
  %v1364 = vmul.f32 1.0, %v1363
  %v1365 = vrcp.pop %v1311
  %v1366 = vmul.f32 1.0, %v1365
  %v1367 = vrcp.pop %v1312
  %v1368 = vmul.f32 1.0, %v1367
  %v1369 = vrcp.pop %v1313
  %v1370 = vmul.f32 1.0, %v1369
  %v1371 = vrcp.pop %v1314
  %v1372 = vmul.f32 1.0, %v1371
  %v1373 = vrcp.pop %v1315
  %v1374 = vmul.f32 1.0, %v1373
  %v1375 = vrcp.pop %v1316
  %v1376 = vmul.f32 1.0, %v1375
  %v1377 = vrcp.pop %v1317
  %v1378 = vmul.f32 1.0, %v1377
  %v1379 = vrcp.pop %v1318
  %v1380 = vmul.f32 1.0, %v1379
  %v1381 = vrcp.pop %v1319
  %v1382 = vmul.f32 1.0, %v1381
  %v1383 = vrcp.pop %v1320
  %v1384 = vmul.f32 1.0, %v1383
  %v1385 = vrcp.pop %v1321
  %v1386 = vmul.f32 1.0, %v1385
  %v1387 = vrcp.pop %v1322
  %v1388 = vmul.f32 1.0, %v1387
  %v1389 = vrcp.pop %v1323
  %v1390 = vmul.f32 1.0, %v1389
  %v1391 = vrcp.pop %v1324
  %v1392 = vmul.f32 1.0, %v1391
  %v1393 = vrcp.pop %v1325
  %v1394 = vmul.f32 1.0, %v1393
  %v1395 = vrcp.pop %v1326
  %v1396 = vmul.f32 1.0, %v1395
  %v1397 = vrcp.pop %v1327
  %v1398 = vmul.f32 1.0, %v1397
  %v1399 = vrcp.pop %v1328
  %v1400 = vmul.f32 1.0, %v1399
  %v1401 = vrcp.pop %v1329
  %v1402 = vmul.f32 1.0, %v1401
  %v1403 = vrcp.pop %v1330
  %v1404 = vmul.f32 1.0, %v1403
  %v1405 = vrcp.pop %v1331
  %v1406 = vmul.f32 1.0, %v1405
  %v1407 = vrcp.pop %v1332
  %v1408 = vmul.f32 1.0, %v1407
  %v1409 = vrcp.pop %v1333
  %v1410 = vmul.f32 1.0, %v1409
  %v1411 = vrcp.pop %v1334
  %v1412 = vmul.f32 1.0, %v1411
  %v1413 = vrcp.pop %v1335
  %v1414 = vmul.f32 1.0, %v1413
  %v1415 = vrcp.pop %v1336
  %v1416 = vmul.f32 1.0, %v1415
  %v1417 = vrcp.pop %v1337
  %v1418 = vmul.f32 1.0, %v1417
  %v1419 = vrcp.pop %v1338
  %v1420 = vmul.f32 1.0, %v1419
  %v1421 = vrcp.pop %v1339
  %v1422 = vmul.f32 1.0, %v1421
  %v1423 = vrcp.pop %v1340
  %v1424 = vmul.f32 1.0, %v1423
  %v1425 = vrcp.pop %v1341
  %v1426 = vmul.f32 1.0, %v1425
  %v1427 = vrcp.pop %v1342
  %v1428 = vmul.f32 1.0, %v1427
  %v1429 = vrcp.pop %v1343
  %v1430 = vmul.f32 1.0, %v1429
  %v1431 = vrcp.pop %v1344
  %v1432 = vmul.f32 1.0, %v1431
  %v1433 = vrcp.pop %v1345
  %v1434 = vmul.f32 1.0, %v1433
  %v1435 = vrcp.pop %v1346
  %v1436 = vmul.f32 1.0, %v1435
  %v1437 = vrcp.pop %v1347
  %v1438 = vmul.f32 1.0, %v1437
  %v1439 = vrcp.pop %v1348
  %v1440 = vmul.f32 1.0, %v1439
  %v1441 = vrcp.pop %v1349
  %v1442 = vmul.f32 1.0, %v1441
  %v1443 = vrcp.pop %v1350
  %v1444 = vmul.f32 1.0, %v1443
  %v1445 = vrcp.pop %v1351
  %v1446 = vmul.f32 1.0, %v1445
  %v1447 = vrcp.pop %v1352
  %v1448 = vmul.f32 1.0, %v1447
  %v1497 = vlaneseq
  %v1498 = vshrl.u32 %v1497, 7
  %v1499 = vsub.s32 0, %v1498
  %v1500 = vrot.slane %v1354, %v1499
  %v1501 = vlaneseq
  %v1502 = vshrl.u32 %v1501, 7
  %v1503 = vsub.s32 1, %v1502
  %v1504 = vrot.slane %v1354, %v1503
  %v1505 = vlaneseq
  %v1506 = vshrl.u32 %v1505, 7
  %v1507 = vsub.s32 2, %v1506
  %v1508 = vrot.slane %v1354, %v1507
  %v1509 = vlaneseq
  %v1510 = vshrl.u32 %v1509, 7
  %v1511 = vsub.s32 3, %v1510
  %v1512 = vrot.slane %v1354, %v1511
  %v1513 = vlaneseq
  %v1514 = vshrl.u32 %v1513, 7
  %v1515 = vsub.s32 4, %v1514
  %v1516 = vrot.slane %v1354, %v1515
  %v1517 = vlaneseq
  %v1518 = vshrl.u32 %v1517, 7
  %v1519 = vsub.s32 5, %v1518
  %v1520 = vrot.slane %v1354, %v1519
  %v1521 = vlaneseq
  %v1522 = vshrl.u32 %v1521, 7
  %v1523 = vsub.s32 6, %v1522
  %v1524 = vrot.slane %v1354, %v1523
  %v1525 = vlaneseq
  %v1526 = vshrl.u32 %v1525, 7
  %v1527 = vsub.s32 7, %v1526
  %v1528 = vrot.slane %v1354, %v1527
  %v1529 = vlaneseq
  %v1530 = vshrl.u32 %v1529, 7
  %v1531 = vsub.s32 0, %v1530
  %v1532 = vrot.slane %v1356, %v1531
  %v1533 = vlaneseq
  %v1534 = vshrl.u32 %v1533, 7
  %v1535 = vsub.s32 1, %v1534
  %v1536 = vrot.slane %v1356, %v1535
  %v1537 = vlaneseq
  %v1538 = vshrl.u32 %v1537, 7
  %v1539 = vsub.s32 2, %v1538
  %v1540 = vrot.slane %v1356, %v1539
  %v1541 = vlaneseq
  %v1542 = vshrl.u32 %v1541, 7
  %v1543 = vsub.s32 3, %v1542
  %v1544 = vrot.slane %v1356, %v1543
  %v1545 = vlaneseq
  %v1546 = vshrl.u32 %v1545, 7
  %v1547 = vsub.s32 4, %v1546
  %v1548 = vrot.slane %v1356, %v1547
  %v1549 = vlaneseq
  %v1550 = vshrl.u32 %v1549, 7
  %v1551 = vsub.s32 5, %v1550
  %v1552 = vrot.slane %v1356, %v1551
  %v1553 = vlaneseq
  %v1554 = vshrl.u32 %v1553, 7
  %v1555 = vsub.s32 6, %v1554
  %v1556 = vrot.slane %v1356, %v1555
  %v1557 = vlaneseq
  %v1558 = vshrl.u32 %v1557, 7
  %v1559 = vsub.s32 7, %v1558
  %v1560 = vrot.slane %v1356, %v1559
  %v1561 = vlaneseq
  %v1562 = vshrl.u32 %v1561, 7
  %v1563 = vsub.s32 0, %v1562
  %v1564 = vrot.slane %v1358, %v1563
  %v1565 = vlaneseq
  %v1566 = vshrl.u32 %v1565, 7
  %v1567 = vsub.s32 1, %v1566
  %v1568 = vrot.slane %v1358, %v1567
  %v1569 = vlaneseq
  %v1570 = vshrl.u32 %v1569, 7
  %v1571 = vsub.s32 2, %v1570
  %v1572 = vrot.slane %v1358, %v1571
  %v1573 = vlaneseq
  %v1574 = vshrl.u32 %v1573, 7
  %v1575 = vsub.s32 3, %v1574
  %v1576 = vrot.slane %v1358, %v1575
  %v1577 = vlaneseq
  %v1578 = vshrl.u32 %v1577, 7
  %v1579 = vsub.s32 4, %v1578
  %v1580 = vrot.slane %v1358, %v1579
  %v1581 = vlaneseq
  %v1582 = vshrl.u32 %v1581, 7
  %v1583 = vsub.s32 5, %v1582
  %v1584 = vrot.slane %v1358, %v1583
  %v1585 = vlaneseq
  %v1586 = vshrl.u32 %v1585, 7
  %v1587 = vsub.s32 6, %v1586
  %v1588 = vrot.slane %v1358, %v1587
  %v1589 = vlaneseq
  %v1590 = vshrl.u32 %v1589, 7
  %v1591 = vsub.s32 7, %v1590
  %v1592 = vrot.slane %v1358, %v1591
  %v1593 = vlaneseq
  %v1594 = vshrl.u32 %v1593, 7
  %v1595 = vsub.s32 0, %v1594
  %v1596 = vrot.slane %v1360, %v1595
  %v1597 = vlaneseq
  %v1598 = vshrl.u32 %v1597, 7
  %v1599 = vsub.s32 1, %v1598
  %v1600 = vrot.slane %v1360, %v1599
  %v1601 = vlaneseq
  %v1602 = vshrl.u32 %v1601, 7
  %v1603 = vsub.s32 2, %v1602
  %v1604 = vrot.slane %v1360, %v1603
  %v1605 = vlaneseq
  %v1606 = vshrl.u32 %v1605, 7
  %v1607 = vsub.s32 3, %v1606
  %v1608 = vrot.slane %v1360, %v1607
  %v1609 = vlaneseq
  %v1610 = vshrl.u32 %v1609, 7
  %v1611 = vsub.s32 4, %v1610
  %v1612 = vrot.slane %v1360, %v1611
  %v1613 = vlaneseq
  %v1614 = vshrl.u32 %v1613, 7
  %v1615 = vsub.s32 5, %v1614
  %v1616 = vrot.slane %v1360, %v1615
  %v1617 = vlaneseq
  %v1618 = vshrl.u32 %v1617, 7
  %v1619 = vsub.s32 6, %v1618
  %v1620 = vrot.slane %v1360, %v1619
  %v1621 = vlaneseq
  %v1622 = vshrl.u32 %v1621, 7
  %v1623 = vsub.s32 7, %v1622
  %v1624 = vrot.slane %v1360, %v1623
  %v1625 = vlaneseq
  %v1626 = vshrl.u32 %v1625, 7
  %v1627 = vsub.s32 0, %v1626
  %v1628 = vrot.slane %v1362, %v1627
  %v1629 = vlaneseq
  %v1630 = vshrl.u32 %v1629, 7
  %v1631 = vsub.s32 1, %v1630
  %v1632 = vrot.slane %v1362, %v1631
  %v1633 = vlaneseq
  %v1634 = vshrl.u32 %v1633, 7
  %v1635 = vsub.s32 2, %v1634
  %v1636 = vrot.slane %v1362, %v1635
  %v1637 = vlaneseq
  %v1638 = vshrl.u32 %v1637, 7
  %v1639 = vsub.s32 3, %v1638
  %v1640 = vrot.slane %v1362, %v1639
  %v1641 = vlaneseq
  %v1642 = vshrl.u32 %v1641, 7
  %v1643 = vsub.s32 4, %v1642
  %v1644 = vrot.slane %v1362, %v1643
  %v1645 = vlaneseq
  %v1646 = vshrl.u32 %v1645, 7
  %v1647 = vsub.s32 5, %v1646
  %v1648 = vrot.slane %v1362, %v1647
  %v1649 = vlaneseq
  %v1650 = vshrl.u32 %v1649, 7
  %v1651 = vsub.s32 6, %v1650
  %v1652 = vrot.slane %v1362, %v1651
  %v1653 = vlaneseq
  %v1654 = vshrl.u32 %v1653, 7
  %v1655 = vsub.s32 7, %v1654
  %v1656 = vrot.slane %v1362, %v1655
  %v1657 = vlaneseq
  %v1658 = vshrl.u32 %v1657, 7
  %v1659 = vsub.s32 0, %v1658
  %v1660 = vrot.slane %v1364, %v1659
  %v1661 = vlaneseq
  %v1662 = vshrl.u32 %v1661, 7
  %v1663 = vsub.s32 1, %v1662
  %v1664 = vrot.slane %v1364, %v1663
  %v1665 = vlaneseq
  %v1666 = vshrl.u32 %v1665, 7
  %v1667 = vsub.s32 2, %v1666
  %v1668 = vrot.slane %v1364, %v1667
  %v1669 = vlaneseq
  %v1670 = vshrl.u32 %v1669, 7
  %v1671 = vsub.s32 3, %v1670
  %v1672 = vrot.slane %v1364, %v1671
  %v1673 = vlaneseq
  %v1674 = vshrl.u32 %v1673, 7
  %v1675 = vsub.s32 4, %v1674
  %v1676 = vrot.slane %v1364, %v1675
  %v1677 = vlaneseq
  %v1678 = vshrl.u32 %v1677, 7
  %v1679 = vsub.s32 5, %v1678
  %v1680 = vrot.slane %v1364, %v1679
  %v1681 = vlaneseq
  %v1682 = vshrl.u32 %v1681, 7
  %v1683 = vsub.s32 6, %v1682
  %v1684 = vrot.slane %v1364, %v1683
  %v1685 = vlaneseq
  %v1686 = vshrl.u32 %v1685, 7
  %v1687 = vsub.s32 7, %v1686
  %v1688 = vrot.slane %v1364, %v1687
  %v1689 = vlaneseq
  %v1690 = vshrl.u32 %v1689, 7
  %v1691 = vsub.s32 0, %v1690
  %v1692 = vrot.slane %v1366, %v1691
  %v1693 = vlaneseq
  %v1694 = vshrl.u32 %v1693, 7
  %v1695 = vsub.s32 1, %v1694
  %v1696 = vrot.slane %v1366, %v1695
  %v1697 = vlaneseq
  %v1698 = vshrl.u32 %v1697, 7
  %v1699 = vsub.s32 2, %v1698
  %v1700 = vrot.slane %v1366, %v1699
  %v1701 = vlaneseq
  %v1702 = vshrl.u32 %v1701, 7
  %v1703 = vsub.s32 3, %v1702
  %v1704 = vrot.slane %v1366, %v1703
  %v1705 = vlaneseq
  %v1706 = vshrl.u32 %v1705, 7
  %v1707 = vsub.s32 4, %v1706
  %v1708 = vrot.slane %v1366, %v1707
  %v1709 = vlaneseq
  %v1710 = vshrl.u32 %v1709, 7
  %v1711 = vsub.s32 5, %v1710
  %v1712 = vrot.slane %v1366, %v1711
  %v1713 = vlaneseq
  %v1714 = vshrl.u32 %v1713, 7
  %v1715 = vsub.s32 6, %v1714
  %v1716 = vrot.slane %v1366, %v1715
  %v1717 = vlaneseq
  %v1718 = vshrl.u32 %v1717, 7
  %v1719 = vsub.s32 7, %v1718
  %v1720 = vrot.slane %v1366, %v1719
  %v1721 = vlaneseq
  %v1722 = vshrl.u32 %v1721, 7
  %v1723 = vsub.s32 0, %v1722
  %v1724 = vrot.slane %v1368, %v1723
  %v1725 = vlaneseq
  %v1726 = vshrl.u32 %v1725, 7
  %v1727 = vsub.s32 1, %v1726
  %v1728 = vrot.slane %v1368, %v1727
  %v1729 = vlaneseq
  %v1730 = vshrl.u32 %v1729, 7
  %v1731 = vsub.s32 2, %v1730
  %v1732 = vrot.slane %v1368, %v1731
  %v1733 = vlaneseq
  %v1734 = vshrl.u32 %v1733, 7
  %v1735 = vsub.s32 3, %v1734
  %v1736 = vrot.slane %v1368, %v1735
  %v1737 = vlaneseq
  %v1738 = vshrl.u32 %v1737, 7
  %v1739 = vsub.s32 4, %v1738
  %v1740 = vrot.slane %v1368, %v1739
  %v1741 = vlaneseq
  %v1742 = vshrl.u32 %v1741, 7
  %v1743 = vsub.s32 5, %v1742
  %v1744 = vrot.slane %v1368, %v1743
  %v1745 = vlaneseq
  %v1746 = vshrl.u32 %v1745, 7
  %v1747 = vsub.s32 6, %v1746
  %v1748 = vrot.slane %v1368, %v1747
  %v1749 = vlaneseq
  %v1750 = vshrl.u32 %v1749, 7
  %v1751 = vsub.s32 7, %v1750
  %v1752 = vrot.slane %v1368, %v1751
  %v1753 = vlaneseq
  %v1754 = vshrl.u32 %v1753, 7
  %v1755 = vsub.s32 0, %v1754
  %v1756 = vrot.slane %v1370, %v1755
  %v1757 = vlaneseq
  %v1758 = vshrl.u32 %v1757, 7
  %v1759 = vsub.s32 1, %v1758
  %v1760 = vrot.slane %v1370, %v1759
  %v1761 = vlaneseq
  %v1762 = vshrl.u32 %v1761, 7
  %v1763 = vsub.s32 2, %v1762
  %v1764 = vrot.slane %v1370, %v1763
  %v1765 = vlaneseq
  %v1766 = vshrl.u32 %v1765, 7
  %v1767 = vsub.s32 3, %v1766
  %v1768 = vrot.slane %v1370, %v1767
  %v1769 = vlaneseq
  %v1770 = vshrl.u32 %v1769, 7
  %v1771 = vsub.s32 4, %v1770
  %v1772 = vrot.slane %v1370, %v1771
  %v1773 = vlaneseq
  %v1774 = vshrl.u32 %v1773, 7
  %v1775 = vsub.s32 5, %v1774
  %v1776 = vrot.slane %v1370, %v1775
  %v1777 = vlaneseq
  %v1778 = vshrl.u32 %v1777, 7
  %v1779 = vsub.s32 6, %v1778
  %v1780 = vrot.slane %v1370, %v1779
  %v1781 = vlaneseq
  %v1782 = vshrl.u32 %v1781, 7
  %v1783 = vsub.s32 7, %v1782
  %v1784 = vrot.slane %v1370, %v1783
  %v1785 = vlaneseq
  %v1786 = vshrl.u32 %v1785, 7
  %v1787 = vsub.s32 0, %v1786
  %v1788 = vrot.slane %v1372, %v1787
  %v1789 = vlaneseq
  %v1790 = vshrl.u32 %v1789, 7
  %v1791 = vsub.s32 1, %v1790
  %v1792 = vrot.slane %v1372, %v1791
  %v1793 = vlaneseq
  %v1794 = vshrl.u32 %v1793, 7
  %v1795 = vsub.s32 2, %v1794
  %v1796 = vrot.slane %v1372, %v1795
  %v1797 = vlaneseq
  %v1798 = vshrl.u32 %v1797, 7
  %v1799 = vsub.s32 3, %v1798
  %v1800 = vrot.slane %v1372, %v1799
  %v1801 = vlaneseq
  %v1802 = vshrl.u32 %v1801, 7
  %v1803 = vsub.s32 4, %v1802
  %v1804 = vrot.slane %v1372, %v1803
  %v1805 = vlaneseq
  %v1806 = vshrl.u32 %v1805, 7
  %v1807 = vsub.s32 5, %v1806
  %v1808 = vrot.slane %v1372, %v1807
  %v1809 = vlaneseq
  %v1810 = vshrl.u32 %v1809, 7
  %v1811 = vsub.s32 6, %v1810
  %v1812 = vrot.slane %v1372, %v1811
  %v1813 = vlaneseq
  %v1814 = vshrl.u32 %v1813, 7
  %v1815 = vsub.s32 7, %v1814
  %v1816 = vrot.slane %v1372, %v1815
  %v1817 = vlaneseq
  %v1818 = vshrl.u32 %v1817, 7
  %v1819 = vsub.s32 0, %v1818
  %v1820 = vrot.slane %v1374, %v1819
  %v1821 = vlaneseq
  %v1822 = vshrl.u32 %v1821, 7
  %v1823 = vsub.s32 1, %v1822
  %v1824 = vrot.slane %v1374, %v1823
  %v1825 = vlaneseq
  %v1826 = vshrl.u32 %v1825, 7
  %v1827 = vsub.s32 2, %v1826
  %v1828 = vrot.slane %v1374, %v1827
  %v1829 = vlaneseq
  %v1830 = vshrl.u32 %v1829, 7
  %v1831 = vsub.s32 3, %v1830
  %v1832 = vrot.slane %v1374, %v1831
  %v1833 = vlaneseq
  %v1834 = vshrl.u32 %v1833, 7
  %v1835 = vsub.s32 4, %v1834
  %v1836 = vrot.slane %v1374, %v1835
  %v1837 = vlaneseq
  %v1838 = vshrl.u32 %v1837, 7
  %v1839 = vsub.s32 5, %v1838
  %v1840 = vrot.slane %v1374, %v1839
  %v1841 = vlaneseq
  %v1842 = vshrl.u32 %v1841, 7
  %v1843 = vsub.s32 6, %v1842
  %v1844 = vrot.slane %v1374, %v1843
  %v1845 = vlaneseq
  %v1846 = vshrl.u32 %v1845, 7
  %v1847 = vsub.s32 7, %v1846
  %v1848 = vrot.slane %v1374, %v1847
  %v1849 = vlaneseq
  %v1850 = vshrl.u32 %v1849, 7
  %v1851 = vsub.s32 0, %v1850
  %v1852 = vrot.slane %v1376, %v1851
  %v1853 = vlaneseq
  %v1854 = vshrl.u32 %v1853, 7
  %v1855 = vsub.s32 1, %v1854
  %v1856 = vrot.slane %v1376, %v1855
  %v1857 = vlaneseq
  %v1858 = vshrl.u32 %v1857, 7
  %v1859 = vsub.s32 2, %v1858
  %v1860 = vrot.slane %v1376, %v1859
  %v1861 = vlaneseq
  %v1862 = vshrl.u32 %v1861, 7
  %v1863 = vsub.s32 3, %v1862
  %v1864 = vrot.slane %v1376, %v1863
  %v1865 = vlaneseq
  %v1866 = vshrl.u32 %v1865, 7
  %v1867 = vsub.s32 4, %v1866
  %v1868 = vrot.slane %v1376, %v1867
  %v1869 = vlaneseq
  %v1870 = vshrl.u32 %v1869, 7
  %v1871 = vsub.s32 5, %v1870
  %v1872 = vrot.slane %v1376, %v1871
  %v1873 = vlaneseq
  %v1874 = vshrl.u32 %v1873, 7
  %v1875 = vsub.s32 6, %v1874
  %v1876 = vrot.slane %v1376, %v1875
  %v1877 = vlaneseq
  %v1878 = vshrl.u32 %v1877, 7
  %v1879 = vsub.s32 7, %v1878
  %v1880 = vrot.slane %v1376, %v1879
  %v1881 = vlaneseq
  %v1882 = vshrl.u32 %v1881, 7
  %v1883 = vsub.s32 0, %v1882
  %v1884 = vrot.slane %v1378, %v1883
  %v1885 = vlaneseq
  %v1886 = vshrl.u32 %v1885, 7
  %v1887 = vsub.s32 1, %v1886
  %v1888 = vrot.slane %v1378, %v1887
  %v1889 = vlaneseq
  %v1890 = vshrl.u32 %v1889, 7
  %v1891 = vsub.s32 2, %v1890
  %v1892 = vrot.slane %v1378, %v1891
  %v1893 = vlaneseq
  %v1894 = vshrl.u32 %v1893, 7
  %v1895 = vsub.s32 3, %v1894
  %v1896 = vrot.slane %v1378, %v1895
  %v1897 = vlaneseq
  %v1898 = vshrl.u32 %v1897, 7
  %v1899 = vsub.s32 4, %v1898
  %v1900 = vrot.slane %v1378, %v1899
  %v1901 = vlaneseq
  %v1902 = vshrl.u32 %v1901, 7
  %v1903 = vsub.s32 5, %v1902
  %v1904 = vrot.slane %v1378, %v1903
  %v1905 = vlaneseq
  %v1906 = vshrl.u32 %v1905, 7
  %v1907 = vsub.s32 6, %v1906
  %v1908 = vrot.slane %v1378, %v1907
  %v1909 = vlaneseq
  %v1910 = vshrl.u32 %v1909, 7
  %v1911 = vsub.s32 7, %v1910
  %v1912 = vrot.slane %v1378, %v1911
  %v1913 = vlaneseq
  %v1914 = vshrl.u32 %v1913, 7
  %v1915 = vsub.s32 0, %v1914
  %v1916 = vrot.slane %v1380, %v1915
  %v1917 = vlaneseq
  %v1918 = vshrl.u32 %v1917, 7
  %v1919 = vsub.s32 1, %v1918
  %v1920 = vrot.slane %v1380, %v1919
  %v1921 = vlaneseq
  %v1922 = vshrl.u32 %v1921, 7
  %v1923 = vsub.s32 2, %v1922
  %v1924 = vrot.slane %v1380, %v1923
  %v1925 = vlaneseq
  %v1926 = vshrl.u32 %v1925, 7
  %v1927 = vsub.s32 3, %v1926
  %v1928 = vrot.slane %v1380, %v1927
  %v1929 = vlaneseq
  %v1930 = vshrl.u32 %v1929, 7
  %v1931 = vsub.s32 4, %v1930
  %v1932 = vrot.slane %v1380, %v1931
  %v1933 = vlaneseq
  %v1934 = vshrl.u32 %v1933, 7
  %v1935 = vsub.s32 5, %v1934
  %v1936 = vrot.slane %v1380, %v1935
  %v1937 = vlaneseq
  %v1938 = vshrl.u32 %v1937, 7
  %v1939 = vsub.s32 6, %v1938
  %v1940 = vrot.slane %v1380, %v1939
  %v1941 = vlaneseq
  %v1942 = vshrl.u32 %v1941, 7
  %v1943 = vsub.s32 7, %v1942
  %v1944 = vrot.slane %v1380, %v1943
  %v1945 = vlaneseq
  %v1946 = vshrl.u32 %v1945, 7
  %v1947 = vsub.s32 0, %v1946
  %v1948 = vrot.slane %v1382, %v1947
  %v1949 = vlaneseq
  %v1950 = vshrl.u32 %v1949, 7
  %v1951 = vsub.s32 1, %v1950
  %v1952 = vrot.slane %v1382, %v1951
  %v1953 = vlaneseq
  %v1954 = vshrl.u32 %v1953, 7
  %v1955 = vsub.s32 2, %v1954
  %v1956 = vrot.slane %v1382, %v1955
  %v1957 = vlaneseq
  %v1958 = vshrl.u32 %v1957, 7
  %v1959 = vsub.s32 3, %v1958
  %v1960 = vrot.slane %v1382, %v1959
  %v1961 = vlaneseq
  %v1962 = vshrl.u32 %v1961, 7
  %v1963 = vsub.s32 4, %v1962
  %v1964 = vrot.slane %v1382, %v1963
  %v1965 = vlaneseq
  %v1966 = vshrl.u32 %v1965, 7
  %v1967 = vsub.s32 5, %v1966
  %v1968 = vrot.slane %v1382, %v1967
  %v1969 = vlaneseq
  %v1970 = vshrl.u32 %v1969, 7
  %v1971 = vsub.s32 6, %v1970
  %v1972 = vrot.slane %v1382, %v1971
  %v1973 = vlaneseq
  %v1974 = vshrl.u32 %v1973, 7
  %v1975 = vsub.s32 7, %v1974
  %v1976 = vrot.slane %v1382, %v1975
  %v1977 = vlaneseq
  %v1978 = vshrl.u32 %v1977, 7
  %v1979 = vsub.s32 0, %v1978
  %v1980 = vrot.slane %v1384, %v1979
  %v1981 = vlaneseq
  %v1982 = vshrl.u32 %v1981, 7
  %v1983 = vsub.s32 1, %v1982
  %v1984 = vrot.slane %v1384, %v1983
  %v1985 = vlaneseq
  %v1986 = vshrl.u32 %v1985, 7
  %v1987 = vsub.s32 2, %v1986
  %v1988 = vrot.slane %v1384, %v1987
  %v1989 = vlaneseq
  %v1990 = vshrl.u32 %v1989, 7
  %v1991 = vsub.s32 3, %v1990
  %v1992 = vrot.slane %v1384, %v1991
  %v1993 = vlaneseq
  %v1994 = vshrl.u32 %v1993, 7
  %v1995 = vsub.s32 4, %v1994
  %v1996 = vrot.slane %v1384, %v1995
  %v1997 = vlaneseq
  %v1998 = vshrl.u32 %v1997, 7
  %v1999 = vsub.s32 5, %v1998
  %v2000 = vrot.slane %v1384, %v1999
  %v2001 = vlaneseq
  %v2002 = vshrl.u32 %v2001, 7
  %v2003 = vsub.s32 6, %v2002
  %v2004 = vrot.slane %v1384, %v2003
  %v2005 = vlaneseq
  %v2006 = vshrl.u32 %v2005, 7
  %v2007 = vsub.s32 7, %v2006
  %v2008 = vrot.slane %v1384, %v2007
  %v2009 = vlaneseq
  %v2010 = vshrl.u32 %v2009, 7
  %v2011 = vsub.s32 0, %v2010
  %v2012 = vrot.slane %v1386, %v2011
  %v2013 = vlaneseq
  %v2014 = vshrl.u32 %v2013, 7
  %v2015 = vsub.s32 1, %v2014
  %v2016 = vrot.slane %v1386, %v2015
  %v2017 = vlaneseq
  %v2018 = vshrl.u32 %v2017, 7
  %v2019 = vsub.s32 2, %v2018
  %v2020 = vrot.slane %v1386, %v2019
  %v2021 = vlaneseq
  %v2022 = vshrl.u32 %v2021, 7
  %v2023 = vsub.s32 3, %v2022
  %v2024 = vrot.slane %v1386, %v2023
  %v2025 = vlaneseq
  %v2026 = vshrl.u32 %v2025, 7
  %v2027 = vsub.s32 4, %v2026
  %v2028 = vrot.slane %v1386, %v2027
  %v2029 = vlaneseq
  %v2030 = vshrl.u32 %v2029, 7
  %v2031 = vsub.s32 5, %v2030
  %v2032 = vrot.slane %v1386, %v2031
  %v2033 = vlaneseq
  %v2034 = vshrl.u32 %v2033, 7
  %v2035 = vsub.s32 6, %v2034
  %v2036 = vrot.slane %v1386, %v2035
  %v2037 = vlaneseq
  %v2038 = vshrl.u32 %v2037, 7
  %v2039 = vsub.s32 7, %v2038
  %v2040 = vrot.slane %v1386, %v2039
  %v2041 = vlaneseq
  %v2042 = vshrl.u32 %v2041, 7
  %v2043 = vsub.s32 0, %v2042
  %v2044 = vrot.slane %v1388, %v2043
  %v2045 = vlaneseq
  %v2046 = vshrl.u32 %v2045, 7
  %v2047 = vsub.s32 1, %v2046
  %v2048 = vrot.slane %v1388, %v2047
  %v2049 = vlaneseq
  %v2050 = vshrl.u32 %v2049, 7
  %v2051 = vsub.s32 2, %v2050
  %v2052 = vrot.slane %v1388, %v2051
  %v2053 = vlaneseq
  %v2054 = vshrl.u32 %v2053, 7
  %v2055 = vsub.s32 3, %v2054
  %v2056 = vrot.slane %v1388, %v2055
  %v2057 = vlaneseq
  %v2058 = vshrl.u32 %v2057, 7
  %v2059 = vsub.s32 4, %v2058
  %v2060 = vrot.slane %v1388, %v2059
  %v2061 = vlaneseq
  %v2062 = vshrl.u32 %v2061, 7
  %v2063 = vsub.s32 5, %v2062
  %v2064 = vrot.slane %v1388, %v2063
  %v2065 = vlaneseq
  %v2066 = vshrl.u32 %v2065, 7
  %v2067 = vsub.s32 6, %v2066
  %v2068 = vrot.slane %v1388, %v2067
  %v2069 = vlaneseq
  %v2070 = vshrl.u32 %v2069, 7
  %v2071 = vsub.s32 7, %v2070
  %v2072 = vrot.slane %v1388, %v2071
  %v2073 = vlaneseq
  %v2074 = vshrl.u32 %v2073, 7
  %v2075 = vsub.s32 0, %v2074
  %v2076 = vrot.slane %v1390, %v2075
  %v2077 = vlaneseq
  %v2078 = vshrl.u32 %v2077, 7
  %v2079 = vsub.s32 1, %v2078
  %v2080 = vrot.slane %v1390, %v2079
  %v2081 = vlaneseq
  %v2082 = vshrl.u32 %v2081, 7
  %v2083 = vsub.s32 2, %v2082
  %v2084 = vrot.slane %v1390, %v2083
  %v2085 = vlaneseq
  %v2086 = vshrl.u32 %v2085, 7
  %v2087 = vsub.s32 3, %v2086
  %v2088 = vrot.slane %v1390, %v2087
  %v2089 = vlaneseq
  %v2090 = vshrl.u32 %v2089, 7
  %v2091 = vsub.s32 4, %v2090
  %v2092 = vrot.slane %v1390, %v2091
  %v2093 = vlaneseq
  %v2094 = vshrl.u32 %v2093, 7
  %v2095 = vsub.s32 5, %v2094
  %v2096 = vrot.slane %v1390, %v2095
  %v2097 = vlaneseq
  %v2098 = vshrl.u32 %v2097, 7
  %v2099 = vsub.s32 6, %v2098
  %v2100 = vrot.slane %v1390, %v2099
  %v2101 = vlaneseq
  %v2102 = vshrl.u32 %v2101, 7
  %v2103 = vsub.s32 7, %v2102
  %v2104 = vrot.slane %v1390, %v2103
  %v2105 = vlaneseq
  %v2106 = vshrl.u32 %v2105, 7
  %v2107 = vsub.s32 0, %v2106
  %v2108 = vrot.slane %v1392, %v2107
  %v2109 = vlaneseq
  %v2110 = vshrl.u32 %v2109, 7
  %v2111 = vsub.s32 1, %v2110
  %v2112 = vrot.slane %v1392, %v2111
  %v2113 = vlaneseq
  %v2114 = vshrl.u32 %v2113, 7
  %v2115 = vsub.s32 2, %v2114
  %v2116 = vrot.slane %v1392, %v2115
  %v2117 = vlaneseq
  %v2118 = vshrl.u32 %v2117, 7
  %v2119 = vsub.s32 3, %v2118
  %v2120 = vrot.slane %v1392, %v2119
  %v2121 = vlaneseq
  %v2122 = vshrl.u32 %v2121, 7
  %v2123 = vsub.s32 4, %v2122
  %v2124 = vrot.slane %v1392, %v2123
  %v2125 = vlaneseq
  %v2126 = vshrl.u32 %v2125, 7
  %v2127 = vsub.s32 5, %v2126
  %v2128 = vrot.slane %v1392, %v2127
  %v2129 = vlaneseq
  %v2130 = vshrl.u32 %v2129, 7
  %v2131 = vsub.s32 6, %v2130
  %v2132 = vrot.slane %v1392, %v2131
  %v2133 = vlaneseq
  %v2134 = vshrl.u32 %v2133, 7
  %v2135 = vsub.s32 7, %v2134
  %v2136 = vrot.slane %v1392, %v2135
  %v2137 = vlaneseq
  %v2138 = vshrl.u32 %v2137, 7
  %v2139 = vsub.s32 0, %v2138
  %v2140 = vrot.slane %v1394, %v2139
  %v2141 = vlaneseq
  %v2142 = vshrl.u32 %v2141, 7
  %v2143 = vsub.s32 1, %v2142
  %v2144 = vrot.slane %v1394, %v2143
  %v2145 = vlaneseq
  %v2146 = vshrl.u32 %v2145, 7
  %v2147 = vsub.s32 2, %v2146
  %v2148 = vrot.slane %v1394, %v2147
  %v2149 = vlaneseq
  %v2150 = vshrl.u32 %v2149, 7
  %v2151 = vsub.s32 3, %v2150
  %v2152 = vrot.slane %v1394, %v2151
  %v2153 = vlaneseq
  %v2154 = vshrl.u32 %v2153, 7
  %v2155 = vsub.s32 4, %v2154
  %v2156 = vrot.slane %v1394, %v2155
  %v2157 = vlaneseq
  %v2158 = vshrl.u32 %v2157, 7
  %v2159 = vsub.s32 5, %v2158
  %v2160 = vrot.slane %v1394, %v2159
  %v2161 = vlaneseq
  %v2162 = vshrl.u32 %v2161, 7
  %v2163 = vsub.s32 6, %v2162
  %v2164 = vrot.slane %v1394, %v2163
  %v2165 = vlaneseq
  %v2166 = vshrl.u32 %v2165, 7
  %v2167 = vsub.s32 7, %v2166
  %v2168 = vrot.slane %v1394, %v2167
  %v2169 = vlaneseq
  %v2170 = vshrl.u32 %v2169, 7
  %v2171 = vsub.s32 0, %v2170
  %v2172 = vrot.slane %v1396, %v2171
  %v2173 = vlaneseq
  %v2174 = vshrl.u32 %v2173, 7
  %v2175 = vsub.s32 1, %v2174
  %v2176 = vrot.slane %v1396, %v2175
  %v2177 = vlaneseq
  %v2178 = vshrl.u32 %v2177, 7
  %v2179 = vsub.s32 2, %v2178
  %v2180 = vrot.slane %v1396, %v2179
  %v2181 = vlaneseq
  %v2182 = vshrl.u32 %v2181, 7
  %v2183 = vsub.s32 3, %v2182
  %v2184 = vrot.slane %v1396, %v2183
  %v2185 = vlaneseq
  %v2186 = vshrl.u32 %v2185, 7
  %v2187 = vsub.s32 4, %v2186
  %v2188 = vrot.slane %v1396, %v2187
  %v2189 = vlaneseq
  %v2190 = vshrl.u32 %v2189, 7
  %v2191 = vsub.s32 5, %v2190
  %v2192 = vrot.slane %v1396, %v2191
  %v2193 = vlaneseq
  %v2194 = vshrl.u32 %v2193, 7
  %v2195 = vsub.s32 6, %v2194
  %v2196 = vrot.slane %v1396, %v2195
  %v2197 = vlaneseq
  %v2198 = vshrl.u32 %v2197, 7
  %v2199 = vsub.s32 7, %v2198
  %v2200 = vrot.slane %v1396, %v2199
  %v2201 = vlaneseq
  %v2202 = vshrl.u32 %v2201, 7
  %v2203 = vsub.s32 0, %v2202
  %v2204 = vrot.slane %v1398, %v2203
  %v2205 = vlaneseq
  %v2206 = vshrl.u32 %v2205, 7
  %v2207 = vsub.s32 1, %v2206
  %v2208 = vrot.slane %v1398, %v2207
  %v2209 = vlaneseq
  %v2210 = vshrl.u32 %v2209, 7
  %v2211 = vsub.s32 2, %v2210
  %v2212 = vrot.slane %v1398, %v2211
  %v2213 = vlaneseq
  %v2214 = vshrl.u32 %v2213, 7
  %v2215 = vsub.s32 3, %v2214
  %v2216 = vrot.slane %v1398, %v2215
  %v2217 = vlaneseq
  %v2218 = vshrl.u32 %v2217, 7
  %v2219 = vsub.s32 4, %v2218
  %v2220 = vrot.slane %v1398, %v2219
  %v2221 = vlaneseq
  %v2222 = vshrl.u32 %v2221, 7
  %v2223 = vsub.s32 5, %v2222
  %v2224 = vrot.slane %v1398, %v2223
  %v2225 = vlaneseq
  %v2226 = vshrl.u32 %v2225, 7
  %v2227 = vsub.s32 6, %v2226
  %v2228 = vrot.slane %v1398, %v2227
  %v2229 = vlaneseq
  %v2230 = vshrl.u32 %v2229, 7
  %v2231 = vsub.s32 7, %v2230
  %v2232 = vrot.slane %v1398, %v2231
  %v2233 = vlaneseq
  %v2234 = vshrl.u32 %v2233, 7
  %v2235 = vsub.s32 0, %v2234
  %v2236 = vrot.slane %v1400, %v2235
  %v2237 = vlaneseq
  %v2238 = vshrl.u32 %v2237, 7
  %v2239 = vsub.s32 1, %v2238
  %v2240 = vrot.slane %v1400, %v2239
  %v2241 = vlaneseq
  %v2242 = vshrl.u32 %v2241, 7
  %v2243 = vsub.s32 2, %v2242
  %v2244 = vrot.slane %v1400, %v2243
  %v2245 = vlaneseq
  %v2246 = vshrl.u32 %v2245, 7
  %v2247 = vsub.s32 3, %v2246
  %v2248 = vrot.slane %v1400, %v2247
  %v2249 = vlaneseq
  %v2250 = vshrl.u32 %v2249, 7
  %v2251 = vsub.s32 4, %v2250
  %v2252 = vrot.slane %v1400, %v2251
  %v2253 = vlaneseq
  %v2254 = vshrl.u32 %v2253, 7
  %v2255 = vsub.s32 5, %v2254
  %v2256 = vrot.slane %v1400, %v2255
  %v2257 = vlaneseq
  %v2258 = vshrl.u32 %v2257, 7
  %v2259 = vsub.s32 6, %v2258
  %v2260 = vrot.slane %v1400, %v2259
  %v2261 = vlaneseq
  %v2262 = vshrl.u32 %v2261, 7
  %v2263 = vsub.s32 7, %v2262
  %v2264 = vrot.slane %v1400, %v2263
  %v2265 = vlaneseq
  %v2266 = vshrl.u32 %v2265, 7
  %v2267 = vsub.s32 0, %v2266
  %v2268 = vrot.slane %v1402, %v2267
  %v2269 = vlaneseq
  %v2270 = vshrl.u32 %v2269, 7
  %v2271 = vsub.s32 1, %v2270
  %v2272 = vrot.slane %v1402, %v2271
  %v2273 = vlaneseq
  %v2274 = vshrl.u32 %v2273, 7
  %v2275 = vsub.s32 2, %v2274
  %v2276 = vrot.slane %v1402, %v2275
  %v2277 = vlaneseq
  %v2278 = vshrl.u32 %v2277, 7
  %v2279 = vsub.s32 3, %v2278
  %v2280 = vrot.slane %v1402, %v2279
  %v2281 = vlaneseq
  %v2282 = vshrl.u32 %v2281, 7
  %v2283 = vsub.s32 4, %v2282
  %v2284 = vrot.slane %v1402, %v2283
  %v2285 = vlaneseq
  %v2286 = vshrl.u32 %v2285, 7
  %v2287 = vsub.s32 5, %v2286
  %v2288 = vrot.slane %v1402, %v2287
  %v2289 = vlaneseq
  %v2290 = vshrl.u32 %v2289, 7
  %v2291 = vsub.s32 6, %v2290
  %v2292 = vrot.slane %v1402, %v2291
  %v2293 = vlaneseq
  %v2294 = vshrl.u32 %v2293, 7
  %v2295 = vsub.s32 7, %v2294
  %v2296 = vrot.slane %v1402, %v2295
  %v2297 = vlaneseq
  %v2298 = vshrl.u32 %v2297, 7
  %v2299 = vsub.s32 0, %v2298
  %v2300 = vrot.slane %v1404, %v2299
  %v2301 = vlaneseq
  %v2302 = vshrl.u32 %v2301, 7
  %v2303 = vsub.s32 1, %v2302
  %v2304 = vrot.slane %v1404, %v2303
  %v2305 = vlaneseq
  %v2306 = vshrl.u32 %v2305, 7
  %v2307 = vsub.s32 2, %v2306
  %v2308 = vrot.slane %v1404, %v2307
  %v2309 = vlaneseq
  %v2310 = vshrl.u32 %v2309, 7
  %v2311 = vsub.s32 3, %v2310
  %v2312 = vrot.slane %v1404, %v2311
  %v2313 = vlaneseq
  %v2314 = vshrl.u32 %v2313, 7
  %v2315 = vsub.s32 4, %v2314
  %v2316 = vrot.slane %v1404, %v2315
  %v2317 = vlaneseq
  %v2318 = vshrl.u32 %v2317, 7
  %v2319 = vsub.s32 5, %v2318
  %v2320 = vrot.slane %v1404, %v2319
  %v2321 = vlaneseq
  %v2322 = vshrl.u32 %v2321, 7
  %v2323 = vsub.s32 6, %v2322
  %v2324 = vrot.slane %v1404, %v2323
  %v2325 = vlaneseq
  %v2326 = vshrl.u32 %v2325, 7
  %v2327 = vsub.s32 7, %v2326
  %v2328 = vrot.slane %v1404, %v2327
  %v2329 = vlaneseq
  %v2330 = vshrl.u32 %v2329, 7
  %v2331 = vsub.s32 0, %v2330
  %v2332 = vrot.slane %v1406, %v2331
  %v2333 = vlaneseq
  %v2334 = vshrl.u32 %v2333, 7
  %v2335 = vsub.s32 1, %v2334
  %v2336 = vrot.slane %v1406, %v2335
  %v2337 = vlaneseq
  %v2338 = vshrl.u32 %v2337, 7
  %v2339 = vsub.s32 2, %v2338
  %v2340 = vrot.slane %v1406, %v2339
  %v2341 = vlaneseq
  %v2342 = vshrl.u32 %v2341, 7
  %v2343 = vsub.s32 3, %v2342
  %v2344 = vrot.slane %v1406, %v2343
  %v2345 = vlaneseq
  %v2346 = vshrl.u32 %v2345, 7
  %v2347 = vsub.s32 4, %v2346
  %v2348 = vrot.slane %v1406, %v2347
  %v2349 = vlaneseq
  %v2350 = vshrl.u32 %v2349, 7
  %v2351 = vsub.s32 5, %v2350
  %v2352 = vrot.slane %v1406, %v2351
  %v2353 = vlaneseq
  %v2354 = vshrl.u32 %v2353, 7
  %v2355 = vsub.s32 6, %v2354
  %v2356 = vrot.slane %v1406, %v2355
  %v2357 = vlaneseq
  %v2358 = vshrl.u32 %v2357, 7
  %v2359 = vsub.s32 7, %v2358
  %v2360 = vrot.slane %v1406, %v2359
  %v2361 = vlaneseq
  %v2362 = vshrl.u32 %v2361, 7
  %v2363 = vsub.s32 0, %v2362
  %v2364 = vrot.slane %v1408, %v2363
  %v2365 = vlaneseq
  %v2366 = vshrl.u32 %v2365, 7
  %v2367 = vsub.s32 1, %v2366
  %v2368 = vrot.slane %v1408, %v2367
  %v2369 = vlaneseq
  %v2370 = vshrl.u32 %v2369, 7
  %v2371 = vsub.s32 2, %v2370
  %v2372 = vrot.slane %v1408, %v2371
  %v2373 = vlaneseq
  %v2374 = vshrl.u32 %v2373, 7
  %v2375 = vsub.s32 3, %v2374
  %v2376 = vrot.slane %v1408, %v2375
  %v2377 = vlaneseq
  %v2378 = vshrl.u32 %v2377, 7
  %v2379 = vsub.s32 4, %v2378
  %v2380 = vrot.slane %v1408, %v2379
  %v2381 = vlaneseq
  %v2382 = vshrl.u32 %v2381, 7
  %v2383 = vsub.s32 5, %v2382
  %v2384 = vrot.slane %v1408, %v2383
  %v2385 = vlaneseq
  %v2386 = vshrl.u32 %v2385, 7
  %v2387 = vsub.s32 6, %v2386
  %v2388 = vrot.slane %v1408, %v2387
  %v2389 = vlaneseq
  %v2390 = vshrl.u32 %v2389, 7
  %v2391 = vsub.s32 7, %v2390
  %v2392 = vrot.slane %v1408, %v2391
  %v2393 = vlaneseq
  %v2394 = vshrl.u32 %v2393, 7
  %v2395 = vsub.s32 0, %v2394
  %v2396 = vrot.slane %v1410, %v2395
  %v2397 = vlaneseq
  %v2398 = vshrl.u32 %v2397, 7
  %v2399 = vsub.s32 1, %v2398
  %v2400 = vrot.slane %v1410, %v2399
  %v2401 = vlaneseq
  %v2402 = vshrl.u32 %v2401, 7
  %v2403 = vsub.s32 2, %v2402
  %v2404 = vrot.slane %v1410, %v2403
  %v2405 = vlaneseq
  %v2406 = vshrl.u32 %v2405, 7
  %v2407 = vsub.s32 3, %v2406
  %v2408 = vrot.slane %v1410, %v2407
  %v2409 = vlaneseq
  %v2410 = vshrl.u32 %v2409, 7
  %v2411 = vsub.s32 4, %v2410
  %v2412 = vrot.slane %v1410, %v2411
  %v2413 = vlaneseq
  %v2414 = vshrl.u32 %v2413, 7
  %v2415 = vsub.s32 5, %v2414
  %v2416 = vrot.slane %v1410, %v2415
  %v2417 = vlaneseq
  %v2418 = vshrl.u32 %v2417, 7
  %v2419 = vsub.s32 6, %v2418
  %v2420 = vrot.slane %v1410, %v2419
  %v2421 = vlaneseq
  %v2422 = vshrl.u32 %v2421, 7
  %v2423 = vsub.s32 7, %v2422
  %v2424 = vrot.slane %v1410, %v2423
  %v2425 = vlaneseq
  %v2426 = vshrl.u32 %v2425, 7
  %v2427 = vsub.s32 0, %v2426
  %v2428 = vrot.slane %v1412, %v2427
  %v2429 = vlaneseq
  %v2430 = vshrl.u32 %v2429, 7
  %v2431 = vsub.s32 1, %v2430
  %v2432 = vrot.slane %v1412, %v2431
  %v2433 = vlaneseq
  %v2434 = vshrl.u32 %v2433, 7
  %v2435 = vsub.s32 2, %v2434
  %v2436 = vrot.slane %v1412, %v2435
  %v2437 = vlaneseq
  %v2438 = vshrl.u32 %v2437, 7
  %v2439 = vsub.s32 3, %v2438
  %v2440 = vrot.slane %v1412, %v2439
  %v2441 = vlaneseq
  %v2442 = vshrl.u32 %v2441, 7
  %v2443 = vsub.s32 4, %v2442
  %v2444 = vrot.slane %v1412, %v2443
  %v2445 = vlaneseq
  %v2446 = vshrl.u32 %v2445, 7
  %v2447 = vsub.s32 5, %v2446
  %v2448 = vrot.slane %v1412, %v2447
  %v2449 = vlaneseq
  %v2450 = vshrl.u32 %v2449, 7
  %v2451 = vsub.s32 6, %v2450
  %v2452 = vrot.slane %v1412, %v2451
  %v2453 = vlaneseq
  %v2454 = vshrl.u32 %v2453, 7
  %v2455 = vsub.s32 7, %v2454
  %v2456 = vrot.slane %v1412, %v2455
  %v2457 = vlaneseq
  %v2458 = vshrl.u32 %v2457, 7
  %v2459 = vsub.s32 0, %v2458
  %v2460 = vrot.slane %v1414, %v2459
  %v2461 = vlaneseq
  %v2462 = vshrl.u32 %v2461, 7
  %v2463 = vsub.s32 1, %v2462
  %v2464 = vrot.slane %v1414, %v2463
  %v2465 = vlaneseq
  %v2466 = vshrl.u32 %v2465, 7
  %v2467 = vsub.s32 2, %v2466
  %v2468 = vrot.slane %v1414, %v2467
  %v2469 = vlaneseq
  %v2470 = vshrl.u32 %v2469, 7
  %v2471 = vsub.s32 3, %v2470
  %v2472 = vrot.slane %v1414, %v2471
  %v2473 = vlaneseq
  %v2474 = vshrl.u32 %v2473, 7
  %v2475 = vsub.s32 4, %v2474
  %v2476 = vrot.slane %v1414, %v2475
  %v2477 = vlaneseq
  %v2478 = vshrl.u32 %v2477, 7
  %v2479 = vsub.s32 5, %v2478
  %v2480 = vrot.slane %v1414, %v2479
  %v2481 = vlaneseq
  %v2482 = vshrl.u32 %v2481, 7
  %v2483 = vsub.s32 6, %v2482
  %v2484 = vrot.slane %v1414, %v2483
  %v2485 = vlaneseq
  %v2486 = vshrl.u32 %v2485, 7
  %v2487 = vsub.s32 7, %v2486
  %v2488 = vrot.slane %v1414, %v2487
  %v2489 = vlaneseq
  %v2490 = vshrl.u32 %v2489, 7
  %v2491 = vsub.s32 0, %v2490
  %v2492 = vrot.slane %v1416, %v2491
  %v2493 = vlaneseq
  %v2494 = vshrl.u32 %v2493, 7
  %v2495 = vsub.s32 1, %v2494
  %v2496 = vrot.slane %v1416, %v2495
  %v2497 = vlaneseq
  %v2498 = vshrl.u32 %v2497, 7
  %v2499 = vsub.s32 2, %v2498
  %v2500 = vrot.slane %v1416, %v2499
  %v2501 = vlaneseq
  %v2502 = vshrl.u32 %v2501, 7
  %v2503 = vsub.s32 3, %v2502
  %v2504 = vrot.slane %v1416, %v2503
  %v2505 = vlaneseq
  %v2506 = vshrl.u32 %v2505, 7
  %v2507 = vsub.s32 4, %v2506
  %v2508 = vrot.slane %v1416, %v2507
  %v2509 = vlaneseq
  %v2510 = vshrl.u32 %v2509, 7
  %v2511 = vsub.s32 5, %v2510
  %v2512 = vrot.slane %v1416, %v2511
  %v2513 = vlaneseq
  %v2514 = vshrl.u32 %v2513, 7
  %v2515 = vsub.s32 6, %v2514
  %v2516 = vrot.slane %v1416, %v2515
  %v2517 = vlaneseq
  %v2518 = vshrl.u32 %v2517, 7
  %v2519 = vsub.s32 7, %v2518
  %v2520 = vrot.slane %v1416, %v2519
  %v2521 = vlaneseq
  %v2522 = vshrl.u32 %v2521, 7
  %v2523 = vsub.s32 0, %v2522
  %v2524 = vrot.slane %v1418, %v2523
  %v2525 = vlaneseq
  %v2526 = vshrl.u32 %v2525, 7
  %v2527 = vsub.s32 1, %v2526
  %v2528 = vrot.slane %v1418, %v2527
  %v2529 = vlaneseq
  %v2530 = vshrl.u32 %v2529, 7
  %v2531 = vsub.s32 2, %v2530
  %v2532 = vrot.slane %v1418, %v2531
  %v2533 = vlaneseq
  %v2534 = vshrl.u32 %v2533, 7
  %v2535 = vsub.s32 3, %v2534
  %v2536 = vrot.slane %v1418, %v2535
  %v2537 = vlaneseq
  %v2538 = vshrl.u32 %v2537, 7
  %v2539 = vsub.s32 4, %v2538
  %v2540 = vrot.slane %v1418, %v2539
  %v2541 = vlaneseq
  %v2542 = vshrl.u32 %v2541, 7
  %v2543 = vsub.s32 5, %v2542
  %v2544 = vrot.slane %v1418, %v2543
  %v2545 = vlaneseq
  %v2546 = vshrl.u32 %v2545, 7
  %v2547 = vsub.s32 6, %v2546
  %v2548 = vrot.slane %v1418, %v2547
  %v2549 = vlaneseq
  %v2550 = vshrl.u32 %v2549, 7
  %v2551 = vsub.s32 7, %v2550
  %v2552 = vrot.slane %v1418, %v2551
  %v2553 = vlaneseq
  %v2554 = vshrl.u32 %v2553, 7
  %v2555 = vsub.s32 0, %v2554
  %v2556 = vrot.slane %v1420, %v2555
  %v2557 = vlaneseq
  %v2558 = vshrl.u32 %v2557, 7
  %v2559 = vsub.s32 1, %v2558
  %v2560 = vrot.slane %v1420, %v2559
  %v2561 = vlaneseq
  %v2562 = vshrl.u32 %v2561, 7
  %v2563 = vsub.s32 2, %v2562
  %v2564 = vrot.slane %v1420, %v2563
  %v2565 = vlaneseq
  %v2566 = vshrl.u32 %v2565, 7
  %v2567 = vsub.s32 3, %v2566
  %v2568 = vrot.slane %v1420, %v2567
  %v2569 = vlaneseq
  %v2570 = vshrl.u32 %v2569, 7
  %v2571 = vsub.s32 4, %v2570
  %v2572 = vrot.slane %v1420, %v2571
  %v2573 = vlaneseq
  %v2574 = vshrl.u32 %v2573, 7
  %v2575 = vsub.s32 5, %v2574
  %v2576 = vrot.slane %v1420, %v2575
  %v2577 = vlaneseq
  %v2578 = vshrl.u32 %v2577, 7
  %v2579 = vsub.s32 6, %v2578
  %v2580 = vrot.slane %v1420, %v2579
  %v2581 = vlaneseq
  %v2582 = vshrl.u32 %v2581, 7
  %v2583 = vsub.s32 7, %v2582
  %v2584 = vrot.slane %v1420, %v2583
  %v2585 = vlaneseq
  %v2586 = vshrl.u32 %v2585, 7
  %v2587 = vsub.s32 0, %v2586
  %v2588 = vrot.slane %v1422, %v2587
  %v2589 = vlaneseq
  %v2590 = vshrl.u32 %v2589, 7
  %v2591 = vsub.s32 1, %v2590
  %v2592 = vrot.slane %v1422, %v2591
  %v2593 = vlaneseq
  %v2594 = vshrl.u32 %v2593, 7
  %v2595 = vsub.s32 2, %v2594
  %v2596 = vrot.slane %v1422, %v2595
  %v2597 = vlaneseq
  %v2598 = vshrl.u32 %v2597, 7
  %v2599 = vsub.s32 3, %v2598
  %v2600 = vrot.slane %v1422, %v2599
  %v2601 = vlaneseq
  %v2602 = vshrl.u32 %v2601, 7
  %v2603 = vsub.s32 4, %v2602
  %v2604 = vrot.slane %v1422, %v2603
  %v2605 = vlaneseq
  %v2606 = vshrl.u32 %v2605, 7
  %v2607 = vsub.s32 5, %v2606
  %v2608 = vrot.slane %v1422, %v2607
  %v2609 = vlaneseq
  %v2610 = vshrl.u32 %v2609, 7
  %v2611 = vsub.s32 6, %v2610
  %v2612 = vrot.slane %v1422, %v2611
  %v2613 = vlaneseq
  %v2614 = vshrl.u32 %v2613, 7
  %v2615 = vsub.s32 7, %v2614
  %v2616 = vrot.slane %v1422, %v2615
  %v2617 = vlaneseq
  %v2618 = vshrl.u32 %v2617, 7
  %v2619 = vsub.s32 0, %v2618
  %v2620 = vrot.slane %v1424, %v2619
  %v2621 = vlaneseq
  %v2622 = vshrl.u32 %v2621, 7
  %v2623 = vsub.s32 1, %v2622
  %v2624 = vrot.slane %v1424, %v2623
  %v2625 = vlaneseq
  %v2626 = vshrl.u32 %v2625, 7
  %v2627 = vsub.s32 2, %v2626
  %v2628 = vrot.slane %v1424, %v2627
  %v2629 = vlaneseq
  %v2630 = vshrl.u32 %v2629, 7
  %v2631 = vsub.s32 3, %v2630
  %v2632 = vrot.slane %v1424, %v2631
  %v2633 = vlaneseq
  %v2634 = vshrl.u32 %v2633, 7
  %v2635 = vsub.s32 4, %v2634
  %v2636 = vrot.slane %v1424, %v2635
  %v2637 = vlaneseq
  %v2638 = vshrl.u32 %v2637, 7
  %v2639 = vsub.s32 5, %v2638
  %v2640 = vrot.slane %v1424, %v2639
  %v2641 = vlaneseq
  %v2642 = vshrl.u32 %v2641, 7
  %v2643 = vsub.s32 6, %v2642
  %v2644 = vrot.slane %v1424, %v2643
  %v2645 = vlaneseq
  %v2646 = vshrl.u32 %v2645, 7
  %v2647 = vsub.s32 7, %v2646
  %v2648 = vrot.slane %v1424, %v2647
  %v2649 = vlaneseq
  %v2650 = vshrl.u32 %v2649, 7
  %v2651 = vsub.s32 0, %v2650
  %v2652 = vrot.slane %v1426, %v2651
  %v2653 = vlaneseq
  %v2654 = vshrl.u32 %v2653, 7
  %v2655 = vsub.s32 1, %v2654
  %v2656 = vrot.slane %v1426, %v2655
  %v2657 = vlaneseq
  %v2658 = vshrl.u32 %v2657, 7
  %v2659 = vsub.s32 2, %v2658
  %v2660 = vrot.slane %v1426, %v2659
  %v2661 = vlaneseq
  %v2662 = vshrl.u32 %v2661, 7
  %v2663 = vsub.s32 3, %v2662
  %v2664 = vrot.slane %v1426, %v2663
  %v2665 = vlaneseq
  %v2666 = vshrl.u32 %v2665, 7
  %v2667 = vsub.s32 4, %v2666
  %v2668 = vrot.slane %v1426, %v2667
  %v2669 = vlaneseq
  %v2670 = vshrl.u32 %v2669, 7
  %v2671 = vsub.s32 5, %v2670
  %v2672 = vrot.slane %v1426, %v2671
  %v2673 = vlaneseq
  %v2674 = vshrl.u32 %v2673, 7
  %v2675 = vsub.s32 6, %v2674
  %v2676 = vrot.slane %v1426, %v2675
  %v2677 = vlaneseq
  %v2678 = vshrl.u32 %v2677, 7
  %v2679 = vsub.s32 7, %v2678
  %v2680 = vrot.slane %v1426, %v2679
  %v2681 = vlaneseq
  %v2682 = vshrl.u32 %v2681, 7
  %v2683 = vsub.s32 0, %v2682
  %v2684 = vrot.slane %v1428, %v2683
  %v2685 = vlaneseq
  %v2686 = vshrl.u32 %v2685, 7
  %v2687 = vsub.s32 1, %v2686
  %v2688 = vrot.slane %v1428, %v2687
  %v2689 = vlaneseq
  %v2690 = vshrl.u32 %v2689, 7
  %v2691 = vsub.s32 2, %v2690
  %v2692 = vrot.slane %v1428, %v2691
  %v2693 = vlaneseq
  %v2694 = vshrl.u32 %v2693, 7
  %v2695 = vsub.s32 3, %v2694
  %v2696 = vrot.slane %v1428, %v2695
  %v2697 = vlaneseq
  %v2698 = vshrl.u32 %v2697, 7
  %v2699 = vsub.s32 4, %v2698
  %v2700 = vrot.slane %v1428, %v2699
  %v2701 = vlaneseq
  %v2702 = vshrl.u32 %v2701, 7
  %v2703 = vsub.s32 5, %v2702
  %v2704 = vrot.slane %v1428, %v2703
  %v2705 = vlaneseq
  %v2706 = vshrl.u32 %v2705, 7
  %v2707 = vsub.s32 6, %v2706
  %v2708 = vrot.slane %v1428, %v2707
  %v2709 = vlaneseq
  %v2710 = vshrl.u32 %v2709, 7
  %v2711 = vsub.s32 7, %v2710
  %v2712 = vrot.slane %v1428, %v2711
  %v2713 = vlaneseq
  %v2714 = vshrl.u32 %v2713, 7
  %v2715 = vsub.s32 0, %v2714
  %v2716 = vrot.slane %v1430, %v2715
  %v2717 = vlaneseq
  %v2718 = vshrl.u32 %v2717, 7
  %v2719 = vsub.s32 1, %v2718
  %v2720 = vrot.slane %v1430, %v2719
  %v2721 = vlaneseq
  %v2722 = vshrl.u32 %v2721, 7
  %v2723 = vsub.s32 2, %v2722
  %v2724 = vrot.slane %v1430, %v2723
  %v2725 = vlaneseq
  %v2726 = vshrl.u32 %v2725, 7
  %v2727 = vsub.s32 3, %v2726
  %v2728 = vrot.slane %v1430, %v2727
  %v2729 = vlaneseq
  %v2730 = vshrl.u32 %v2729, 7
  %v2731 = vsub.s32 4, %v2730
  %v2732 = vrot.slane %v1430, %v2731
  %v2733 = vlaneseq
  %v2734 = vshrl.u32 %v2733, 7
  %v2735 = vsub.s32 5, %v2734
  %v2736 = vrot.slane %v1430, %v2735
  %v2737 = vlaneseq
  %v2738 = vshrl.u32 %v2737, 7
  %v2739 = vsub.s32 6, %v2738
  %v2740 = vrot.slane %v1430, %v2739
  %v2741 = vlaneseq
  %v2742 = vshrl.u32 %v2741, 7
  %v2743 = vsub.s32 7, %v2742
  %v2744 = vrot.slane %v1430, %v2743
  %v2745 = vlaneseq
  %v2746 = vshrl.u32 %v2745, 7
  %v2747 = vsub.s32 0, %v2746
  %v2748 = vrot.slane %v1432, %v2747
  %v2749 = vlaneseq
  %v2750 = vshrl.u32 %v2749, 7
  %v2751 = vsub.s32 1, %v2750
  %v2752 = vrot.slane %v1432, %v2751
  %v2753 = vlaneseq
  %v2754 = vshrl.u32 %v2753, 7
  %v2755 = vsub.s32 2, %v2754
  %v2756 = vrot.slane %v1432, %v2755
  %v2757 = vlaneseq
  %v2758 = vshrl.u32 %v2757, 7
  %v2759 = vsub.s32 3, %v2758
  %v2760 = vrot.slane %v1432, %v2759
  %v2761 = vlaneseq
  %v2762 = vshrl.u32 %v2761, 7
  %v2763 = vsub.s32 4, %v2762
  %v2764 = vrot.slane %v1432, %v2763
  %v2765 = vlaneseq
  %v2766 = vshrl.u32 %v2765, 7
  %v2767 = vsub.s32 5, %v2766
  %v2768 = vrot.slane %v1432, %v2767
  %v2769 = vlaneseq
  %v2770 = vshrl.u32 %v2769, 7
  %v2771 = vsub.s32 6, %v2770
  %v2772 = vrot.slane %v1432, %v2771
  %v2773 = vlaneseq
  %v2774 = vshrl.u32 %v2773, 7
  %v2775 = vsub.s32 7, %v2774
  %v2776 = vrot.slane %v1432, %v2775
  %v2777 = vlaneseq
  %v2778 = vshrl.u32 %v2777, 7
  %v2779 = vsub.s32 0, %v2778
  %v2780 = vrot.slane %v1434, %v2779
  %v2781 = vlaneseq
  %v2782 = vshrl.u32 %v2781, 7
  %v2783 = vsub.s32 1, %v2782
  %v2784 = vrot.slane %v1434, %v2783
  %v2785 = vlaneseq
  %v2786 = vshrl.u32 %v2785, 7
  %v2787 = vsub.s32 2, %v2786
  %v2788 = vrot.slane %v1434, %v2787
  %v2789 = vlaneseq
  %v2790 = vshrl.u32 %v2789, 7
  %v2791 = vsub.s32 3, %v2790
  %v2792 = vrot.slane %v1434, %v2791
  %v2793 = vlaneseq
  %v2794 = vshrl.u32 %v2793, 7
  %v2795 = vsub.s32 4, %v2794
  %v2796 = vrot.slane %v1434, %v2795
  %v2797 = vlaneseq
  %v2798 = vshrl.u32 %v2797, 7
  %v2799 = vsub.s32 5, %v2798
  %v2800 = vrot.slane %v1434, %v2799
  %v2801 = vlaneseq
  %v2802 = vshrl.u32 %v2801, 7
  %v2803 = vsub.s32 6, %v2802
  %v2804 = vrot.slane %v1434, %v2803
  %v2805 = vlaneseq
  %v2806 = vshrl.u32 %v2805, 7
  %v2807 = vsub.s32 7, %v2806
  %v2808 = vrot.slane %v1434, %v2807
  %v2809 = vlaneseq
  %v2810 = vshrl.u32 %v2809, 7
  %v2811 = vsub.s32 0, %v2810
  %v2812 = vrot.slane %v1436, %v2811
  %v2813 = vlaneseq
  %v2814 = vshrl.u32 %v2813, 7
  %v2815 = vsub.s32 1, %v2814
  %v2816 = vrot.slane %v1436, %v2815
  %v2817 = vlaneseq
  %v2818 = vshrl.u32 %v2817, 7
  %v2819 = vsub.s32 2, %v2818
  %v2820 = vrot.slane %v1436, %v2819
  %v2821 = vlaneseq
  %v2822 = vshrl.u32 %v2821, 7
  %v2823 = vsub.s32 3, %v2822
  %v2824 = vrot.slane %v1436, %v2823
  %v2825 = vlaneseq
  %v2826 = vshrl.u32 %v2825, 7
  %v2827 = vsub.s32 4, %v2826
  %v2828 = vrot.slane %v1436, %v2827
  %v2829 = vlaneseq
  %v2830 = vshrl.u32 %v2829, 7
  %v2831 = vsub.s32 5, %v2830
  %v2832 = vrot.slane %v1436, %v2831
  %v2833 = vlaneseq
  %v2834 = vshrl.u32 %v2833, 7
  %v2835 = vsub.s32 6, %v2834
  %v2836 = vrot.slane %v1436, %v2835
  %v2837 = vlaneseq
  %v2838 = vshrl.u32 %v2837, 7
  %v2839 = vsub.s32 7, %v2838
  %v2840 = vrot.slane %v1436, %v2839
  %v2841 = vlaneseq
  %v2842 = vshrl.u32 %v2841, 7
  %v2843 = vsub.s32 0, %v2842
  %v2844 = vrot.slane %v1438, %v2843
  %v2845 = vlaneseq
  %v2846 = vshrl.u32 %v2845, 7
  %v2847 = vsub.s32 1, %v2846
  %v2848 = vrot.slane %v1438, %v2847
  %v2849 = vlaneseq
  %v2850 = vshrl.u32 %v2849, 7
  %v2851 = vsub.s32 2, %v2850
  %v2852 = vrot.slane %v1438, %v2851
  %v2853 = vlaneseq
  %v2854 = vshrl.u32 %v2853, 7
  %v2855 = vsub.s32 3, %v2854
  %v2856 = vrot.slane %v1438, %v2855
  %v2857 = vlaneseq
  %v2858 = vshrl.u32 %v2857, 7
  %v2859 = vsub.s32 4, %v2858
  %v2860 = vrot.slane %v1438, %v2859
  %v2861 = vlaneseq
  %v2862 = vshrl.u32 %v2861, 7
  %v2863 = vsub.s32 5, %v2862
  %v2864 = vrot.slane %v1438, %v2863
  %v2865 = vlaneseq
  %v2866 = vshrl.u32 %v2865, 7
  %v2867 = vsub.s32 6, %v2866
  %v2868 = vrot.slane %v1438, %v2867
  %v2869 = vlaneseq
  %v2870 = vshrl.u32 %v2869, 7
  %v2871 = vsub.s32 7, %v2870
  %v2872 = vrot.slane %v1438, %v2871
  %v2873 = vlaneseq
  %v2874 = vshrl.u32 %v2873, 7
  %v2875 = vsub.s32 0, %v2874
  %v2876 = vrot.slane %v1440, %v2875
  %v2877 = vlaneseq
  %v2878 = vshrl.u32 %v2877, 7
  %v2879 = vsub.s32 1, %v2878
  %v2880 = vrot.slane %v1440, %v2879
  %v2881 = vlaneseq
  %v2882 = vshrl.u32 %v2881, 7
  %v2883 = vsub.s32 2, %v2882
  %v2884 = vrot.slane %v1440, %v2883
  %v2885 = vlaneseq
  %v2886 = vshrl.u32 %v2885, 7
  %v2887 = vsub.s32 3, %v2886
  %v2888 = vrot.slane %v1440, %v2887
  %v2889 = vlaneseq
  %v2890 = vshrl.u32 %v2889, 7
  %v2891 = vsub.s32 4, %v2890
  %v2892 = vrot.slane %v1440, %v2891
  %v2893 = vlaneseq
  %v2894 = vshrl.u32 %v2893, 7
  %v2895 = vsub.s32 5, %v2894
  %v2896 = vrot.slane %v1440, %v2895
  %v2897 = vlaneseq
  %v2898 = vshrl.u32 %v2897, 7
  %v2899 = vsub.s32 6, %v2898
  %v2900 = vrot.slane %v1440, %v2899
  %v2901 = vlaneseq
  %v2902 = vshrl.u32 %v2901, 7
  %v2903 = vsub.s32 7, %v2902
  %v2904 = vrot.slane %v1440, %v2903
  %v2905 = vlaneseq
  %v2906 = vshrl.u32 %v2905, 7
  %v2907 = vsub.s32 0, %v2906
  %v2908 = vrot.slane %v1442, %v2907
  %v2909 = vlaneseq
  %v2910 = vshrl.u32 %v2909, 7
  %v2911 = vsub.s32 1, %v2910
  %v2912 = vrot.slane %v1442, %v2911
  %v2913 = vlaneseq
  %v2914 = vshrl.u32 %v2913, 7
  %v2915 = vsub.s32 2, %v2914
  %v2916 = vrot.slane %v1442, %v2915
  %v2917 = vlaneseq
  %v2918 = vshrl.u32 %v2917, 7
  %v2919 = vsub.s32 3, %v2918
  %v2920 = vrot.slane %v1442, %v2919
  %v2921 = vlaneseq
  %v2922 = vshrl.u32 %v2921, 7
  %v2923 = vsub.s32 4, %v2922
  %v2924 = vrot.slane %v1442, %v2923
  %v2925 = vlaneseq
  %v2926 = vshrl.u32 %v2925, 7
  %v2927 = vsub.s32 5, %v2926
  %v2928 = vrot.slane %v1442, %v2927
  %v2929 = vlaneseq
  %v2930 = vshrl.u32 %v2929, 7
  %v2931 = vsub.s32 6, %v2930
  %v2932 = vrot.slane %v1442, %v2931
  %v2933 = vlaneseq
  %v2934 = vshrl.u32 %v2933, 7
  %v2935 = vsub.s32 7, %v2934
  %v2936 = vrot.slane %v1442, %v2935
  %v2937 = vlaneseq
  %v2938 = vshrl.u32 %v2937, 7
  %v2939 = vsub.s32 0, %v2938
  %v2940 = vrot.slane %v1444, %v2939
  %v2941 = vlaneseq
  %v2942 = vshrl.u32 %v2941, 7
  %v2943 = vsub.s32 1, %v2942
  %v2944 = vrot.slane %v1444, %v2943
  %v2945 = vlaneseq
  %v2946 = vshrl.u32 %v2945, 7
  %v2947 = vsub.s32 2, %v2946
  %v2948 = vrot.slane %v1444, %v2947
  %v2949 = vlaneseq
  %v2950 = vshrl.u32 %v2949, 7
  %v2951 = vsub.s32 3, %v2950
  %v2952 = vrot.slane %v1444, %v2951
  %v2953 = vlaneseq
  %v2954 = vshrl.u32 %v2953, 7
  %v2955 = vsub.s32 4, %v2954
  %v2956 = vrot.slane %v1444, %v2955
  %v2957 = vlaneseq
  %v2958 = vshrl.u32 %v2957, 7
  %v2959 = vsub.s32 5, %v2958
  %v2960 = vrot.slane %v1444, %v2959
  %v2961 = vlaneseq
  %v2962 = vshrl.u32 %v2961, 7
  %v2963 = vsub.s32 6, %v2962
  %v2964 = vrot.slane %v1444, %v2963
  %v2965 = vlaneseq
  %v2966 = vshrl.u32 %v2965, 7
  %v2967 = vsub.s32 7, %v2966
  %v2968 = vrot.slane %v1444, %v2967
  %v2969 = vlaneseq
  %v2970 = vshrl.u32 %v2969, 7
  %v2971 = vsub.s32 0, %v2970
  %v2972 = vrot.slane %v1446, %v2971
  %v2973 = vlaneseq
  %v2974 = vshrl.u32 %v2973, 7
  %v2975 = vsub.s32 1, %v2974
  %v2976 = vrot.slane %v1446, %v2975
  %v2977 = vlaneseq
  %v2978 = vshrl.u32 %v2977, 7
  %v2979 = vsub.s32 2, %v2978
  %v2980 = vrot.slane %v1446, %v2979
  %v2981 = vlaneseq
  %v2982 = vshrl.u32 %v2981, 7
  %v2983 = vsub.s32 3, %v2982
  %v2984 = vrot.slane %v1446, %v2983
  %v2985 = vlaneseq
  %v2986 = vshrl.u32 %v2985, 7
  %v2987 = vsub.s32 4, %v2986
  %v2988 = vrot.slane %v1446, %v2987
  %v2989 = vlaneseq
  %v2990 = vshrl.u32 %v2989, 7
  %v2991 = vsub.s32 5, %v2990
  %v2992 = vrot.slane %v1446, %v2991
  %v2993 = vlaneseq
  %v2994 = vshrl.u32 %v2993, 7
  %v2995 = vsub.s32 6, %v2994
  %v2996 = vrot.slane %v1446, %v2995
  %v2997 = vlaneseq
  %v2998 = vshrl.u32 %v2997, 7
  %v2999 = vsub.s32 7, %v2998
  %v3000 = vrot.slane %v1446, %v2999
  %v3001 = vlaneseq
  %v3002 = vshrl.u32 %v3001, 7
  %v3003 = vsub.s32 0, %v3002
  %v3004 = vrot.slane %v1448, %v3003
  %v3005 = vlaneseq
  %v3006 = vshrl.u32 %v3005, 7
  %v3007 = vsub.s32 1, %v3006
  %v3008 = vrot.slane %v1448, %v3007
  %v3009 = vlaneseq
  %v3010 = vshrl.u32 %v3009, 7
  %v3011 = vsub.s32 2, %v3010
  %v3012 = vrot.slane %v1448, %v3011
  %v3013 = vlaneseq
  %v3014 = vshrl.u32 %v3013, 7
  %v3015 = vsub.s32 3, %v3014
  %v3016 = vrot.slane %v1448, %v3015
  %v3017 = vlaneseq
  %v3018 = vshrl.u32 %v3017, 7
  %v3019 = vsub.s32 4, %v3018
  %v3020 = vrot.slane %v1448, %v3019
  %v3021 = vlaneseq
  %v3022 = vshrl.u32 %v3021, 7
  %v3023 = vsub.s32 5, %v3022
  %v3024 = vrot.slane %v1448, %v3023
  %v3025 = vlaneseq
  %v3026 = vshrl.u32 %v3025, 7
  %v3027 = vsub.s32 6, %v3026
  %v3028 = vrot.slane %v1448, %v3027
  %v3029 = vlaneseq
  %v3030 = vshrl.u32 %v3029, 7
  %v3031 = vsub.s32 7, %v3030
  %v3032 = vrot.slane %v1448, %v3031
  %v3033 = vcombine.low %v1500, %v1504
  %v3034 = vcombine.low %v1508, %v1512
  %v3035 = vcombine.low %v1516, %v1520
  %v3036 = vcombine.low %v1524, %v1528
  %v3038 = vunpack.c.l.s4 1966171168
  %v3039 = vunpack.c.0.s8 %v3038
  %v3040 = vlaneseq
  %v3041 = vshrl.u32 %v3040, 7
  %v3042 = vsub.s32 %v3039, %v3041
  %v3043 = vrot.slane %v3033, %v3042
  %v3045 = vunpack.c.l.s4 1966171168
  %v3046 = vunpack.c.0.s8 %v3045
  %v3047 = vlaneseq
  %v3048 = vshrl.u32 %v3047, 7
  %v3049 = vsub.s32 %v3046, %v3048
  %v3050 = vrot.slane %v3034, %v3049
  %v3052 = vunpack.c.l.s4 1966171168
  %v3053 = vunpack.c.0.s8 %v3052
  %v3054 = vlaneseq
  %v3055 = vshrl.u32 %v3054, 7
  %v3056 = vsub.s32 %v3053, %v3055
  %v3057 = vrot.slane %v3035, %v3056
  %v3059 = vunpack.c.l.s4 1966171168
  %v3060 = vunpack.c.0.s8 %v3059
  %v3061 = vlaneseq
  %v3062 = vshrl.u32 %v3061, 7
  %v3063 = vsub.s32 %v3060, %v3062
  %v3064 = vrot.slane %v3036, %v3063
  %v3065 = vcombine.low %v3043, %v3050
  %v3066 = vcombine.low %v3057, %v3064
  %v3068 = vunpack.c.l.s4 1966171168
  %v3069 = vunpack.c.0.s8 %v3068
  %v3070 = vlaneseq
  %v3071 = vshrl.u32 %v3070, 7
  %v3072 = vsub.s32 %v3069, %v3071
  %v3073 = vrot.slane %v3065, %v3072
  %v3075 = vunpack.c.l.s4 1966171168
  %v3076 = vunpack.c.0.s8 %v3075
  %v3077 = vlaneseq
  %v3078 = vshrl.u32 %v3077, 7
  %v3079 = vsub.s32 %v3076, %v3078
  %v3080 = vrot.slane %v3066, %v3079
  %v3081 = vcombine.low %v3073, %v3080
  %v3082 = vcombine.low %v1532, %v1536
  %v3083 = vcombine.low %v1540, %v1544
  %v3084 = vcombine.low %v1548, %v1552
  %v3085 = vcombine.low %v1556, %v1560
  %v3087 = vunpack.c.l.s4 1966171168
  %v3088 = vunpack.c.0.s8 %v3087
  %v3089 = vlaneseq
  %v3090 = vshrl.u32 %v3089, 7
  %v3091 = vsub.s32 %v3088, %v3090
  %v3092 = vrot.slane %v3082, %v3091
  %v3094 = vunpack.c.l.s4 1966171168
  %v3095 = vunpack.c.0.s8 %v3094
  %v3096 = vlaneseq
  %v3097 = vshrl.u32 %v3096, 7
  %v3098 = vsub.s32 %v3095, %v3097
  %v3099 = vrot.slane %v3083, %v3098
  %v3101 = vunpack.c.l.s4 1966171168
  %v3102 = vunpack.c.0.s8 %v3101
  %v3103 = vlaneseq
  %v3104 = vshrl.u32 %v3103, 7
  %v3105 = vsub.s32 %v3102, %v3104
  %v3106 = vrot.slane %v3084, %v3105
  %v3108 = vunpack.c.l.s4 1966171168
  %v3109 = vunpack.c.0.s8 %v3108
  %v3110 = vlaneseq
  %v3111 = vshrl.u32 %v3110, 7
  %v3112 = vsub.s32 %v3109, %v3111
  %v3113 = vrot.slane %v3085, %v3112
  %v3114 = vcombine.low %v3092, %v3099
  %v3115 = vcombine.low %v3106, %v3113
  %v3117 = vunpack.c.l.s4 1966171168
  %v3118 = vunpack.c.0.s8 %v3117
  %v3119 = vlaneseq
  %v3120 = vshrl.u32 %v3119, 7
  %v3121 = vsub.s32 %v3118, %v3120
  %v3122 = vrot.slane %v3114, %v3121
  %v3124 = vunpack.c.l.s4 1966171168
  %v3125 = vunpack.c.0.s8 %v3124
  %v3126 = vlaneseq
  %v3127 = vshrl.u32 %v3126, 7
  %v3128 = vsub.s32 %v3125, %v3127
  %v3129 = vrot.slane %v3115, %v3128
  %v3130 = vcombine.low %v3122, %v3129
  %v3131 = vcombine.low %v1564, %v1568
  %v3132 = vcombine.low %v1572, %v1576
  %v3133 = vcombine.low %v1580, %v1584
  %v3134 = vcombine.low %v1588, %v1592
  %v3136 = vunpack.c.l.s4 1966171168
  %v3137 = vunpack.c.0.s8 %v3136
  %v3138 = vlaneseq
  %v3139 = vshrl.u32 %v3138, 7
  %v3140 = vsub.s32 %v3137, %v3139
  %v3141 = vrot.slane %v3131, %v3140
  %v3143 = vunpack.c.l.s4 1966171168
  %v3144 = vunpack.c.0.s8 %v3143
  %v3145 = vlaneseq
  %v3146 = vshrl.u32 %v3145, 7
  %v3147 = vsub.s32 %v3144, %v3146
  %v3148 = vrot.slane %v3132, %v3147
  %v3150 = vunpack.c.l.s4 1966171168
  %v3151 = vunpack.c.0.s8 %v3150
  %v3152 = vlaneseq
  %v3153 = vshrl.u32 %v3152, 7
  %v3154 = vsub.s32 %v3151, %v3153
  %v3155 = vrot.slane %v3133, %v3154
  %v3157 = vunpack.c.l.s4 1966171168
  %v3158 = vunpack.c.0.s8 %v3157
  %v3159 = vlaneseq
  %v3160 = vshrl.u32 %v3159, 7
  %v3161 = vsub.s32 %v3158, %v3160
  %v3162 = vrot.slane %v3134, %v3161
  %v3163 = vcombine.low %v3141, %v3148
  %v3164 = vcombine.low %v3155, %v3162
  %v3166 = vunpack.c.l.s4 1966171168
  %v3167 = vunpack.c.0.s8 %v3166
  %v3168 = vlaneseq
  %v3169 = vshrl.u32 %v3168, 7
  %v3170 = vsub.s32 %v3167, %v3169
  %v3171 = vrot.slane %v3163, %v3170
  %v3173 = vunpack.c.l.s4 1966171168
  %v3174 = vunpack.c.0.s8 %v3173
  %v3175 = vlaneseq
  %v3176 = vshrl.u32 %v3175, 7
  %v3177 = vsub.s32 %v3174, %v3176
  %v3178 = vrot.slane %v3164, %v3177
  %v3179 = vcombine.low %v3171, %v3178
  %v3180 = vcombine.low %v1596, %v1600
  %v3181 = vcombine.low %v1604, %v1608
  %v3182 = vcombine.low %v1612, %v1616
  %v3183 = vcombine.low %v1620, %v1624
  %v3185 = vunpack.c.l.s4 1966171168
  %v3186 = vunpack.c.0.s8 %v3185
  %v3187 = vlaneseq
  %v3188 = vshrl.u32 %v3187, 7
  %v3189 = vsub.s32 %v3186, %v3188
  %v3190 = vrot.slane %v3180, %v3189
  %v3192 = vunpack.c.l.s4 1966171168
  %v3193 = vunpack.c.0.s8 %v3192
  %v3194 = vlaneseq
  %v3195 = vshrl.u32 %v3194, 7
  %v3196 = vsub.s32 %v3193, %v3195
  %v3197 = vrot.slane %v3181, %v3196
  %v3199 = vunpack.c.l.s4 1966171168
  %v3200 = vunpack.c.0.s8 %v3199
  %v3201 = vlaneseq
  %v3202 = vshrl.u32 %v3201, 7
  %v3203 = vsub.s32 %v3200, %v3202
  %v3204 = vrot.slane %v3182, %v3203
  %v3206 = vunpack.c.l.s4 1966171168
  %v3207 = vunpack.c.0.s8 %v3206
  %v3208 = vlaneseq
  %v3209 = vshrl.u32 %v3208, 7
  %v3210 = vsub.s32 %v3207, %v3209
  %v3211 = vrot.slane %v3183, %v3210
  %v3212 = vcombine.low %v3190, %v3197
  %v3213 = vcombine.low %v3204, %v3211
  %v3215 = vunpack.c.l.s4 1966171168
  %v3216 = vunpack.c.0.s8 %v3215
  %v3217 = vlaneseq
  %v3218 = vshrl.u32 %v3217, 7
  %v3219 = vsub.s32 %v3216, %v3218
  %v3220 = vrot.slane %v3212, %v3219
  %v3222 = vunpack.c.l.s4 1966171168
  %v3223 = vunpack.c.0.s8 %v3222
  %v3224 = vlaneseq
  %v3225 = vshrl.u32 %v3224, 7
  %v3226 = vsub.s32 %v3223, %v3225
  %v3227 = vrot.slane %v3213, %v3226
  %v3228 = vcombine.low %v3220, %v3227
  %v3229 = vcombine.low %v1628, %v1632
  %v3230 = vcombine.low %v1636, %v1640
  %v3231 = vcombine.low %v1644, %v1648
  %v3232 = vcombine.low %v1652, %v1656
  %v3234 = vunpack.c.l.s4 1966171168
  %v3235 = vunpack.c.0.s8 %v3234
  %v3236 = vlaneseq
  %v3237 = vshrl.u32 %v3236, 7
  %v3238 = vsub.s32 %v3235, %v3237
  %v3239 = vrot.slane %v3229, %v3238
  %v3241 = vunpack.c.l.s4 1966171168
  %v3242 = vunpack.c.0.s8 %v3241
  %v3243 = vlaneseq
  %v3244 = vshrl.u32 %v3243, 7
  %v3245 = vsub.s32 %v3242, %v3244
  %v3246 = vrot.slane %v3230, %v3245
  %v3248 = vunpack.c.l.s4 1966171168
  %v3249 = vunpack.c.0.s8 %v3248
  %v3250 = vlaneseq
  %v3251 = vshrl.u32 %v3250, 7
  %v3252 = vsub.s32 %v3249, %v3251
  %v3253 = vrot.slane %v3231, %v3252
  %v3255 = vunpack.c.l.s4 1966171168
  %v3256 = vunpack.c.0.s8 %v3255
  %v3257 = vlaneseq
  %v3258 = vshrl.u32 %v3257, 7
  %v3259 = vsub.s32 %v3256, %v3258
  %v3260 = vrot.slane %v3232, %v3259
  %v3261 = vcombine.low %v3239, %v3246
  %v3262 = vcombine.low %v3253, %v3260
  %v3264 = vunpack.c.l.s4 1966171168
  %v3265 = vunpack.c.0.s8 %v3264
  %v3266 = vlaneseq
  %v3267 = vshrl.u32 %v3266, 7
  %v3268 = vsub.s32 %v3265, %v3267
  %v3269 = vrot.slane %v3261, %v3268
  %v3271 = vunpack.c.l.s4 1966171168
  %v3272 = vunpack.c.0.s8 %v3271
  %v3273 = vlaneseq
  %v3274 = vshrl.u32 %v3273, 7
  %v3275 = vsub.s32 %v3272, %v3274
  %v3276 = vrot.slane %v3262, %v3275
  %v3277 = vcombine.low %v3269, %v3276
  %v3278 = vcombine.low %v1660, %v1664
  %v3279 = vcombine.low %v1668, %v1672
  %v3280 = vcombine.low %v1676, %v1680
  %v3281 = vcombine.low %v1684, %v1688
  %v3283 = vunpack.c.l.s4 1966171168
  %v3284 = vunpack.c.0.s8 %v3283
  %v3285 = vlaneseq
  %v3286 = vshrl.u32 %v3285, 7
  %v3287 = vsub.s32 %v3284, %v3286
  %v3288 = vrot.slane %v3278, %v3287
  %v3290 = vunpack.c.l.s4 1966171168
  %v3291 = vunpack.c.0.s8 %v3290
  %v3292 = vlaneseq
  %v3293 = vshrl.u32 %v3292, 7
  %v3294 = vsub.s32 %v3291, %v3293
  %v3295 = vrot.slane %v3279, %v3294
  %v3297 = vunpack.c.l.s4 1966171168
  %v3298 = vunpack.c.0.s8 %v3297
  %v3299 = vlaneseq
  %v3300 = vshrl.u32 %v3299, 7
  %v3301 = vsub.s32 %v3298, %v3300
  %v3302 = vrot.slane %v3280, %v3301
  %v3304 = vunpack.c.l.s4 1966171168
  %v3305 = vunpack.c.0.s8 %v3304
  %v3306 = vlaneseq
  %v3307 = vshrl.u32 %v3306, 7
  %v3308 = vsub.s32 %v3305, %v3307
  %v3309 = vrot.slane %v3281, %v3308
  %v3310 = vcombine.low %v3288, %v3295
  %v3311 = vcombine.low %v3302, %v3309
  %v3313 = vunpack.c.l.s4 1966171168
  %v3314 = vunpack.c.0.s8 %v3313
  %v3315 = vlaneseq
  %v3316 = vshrl.u32 %v3315, 7
  %v3317 = vsub.s32 %v3314, %v3316
  %v3318 = vrot.slane %v3310, %v3317
  %v3320 = vunpack.c.l.s4 1966171168
  %v3321 = vunpack.c.0.s8 %v3320
  %v3322 = vlaneseq
  %v3323 = vshrl.u32 %v3322, 7
  %v3324 = vsub.s32 %v3321, %v3323
  %v3325 = vrot.slane %v3311, %v3324
  %v3326 = vcombine.low %v3318, %v3325
  %v3327 = vcombine.low %v1692, %v1696
  %v3328 = vcombine.low %v1700, %v1704
  %v3329 = vcombine.low %v1708, %v1712
  %v3330 = vcombine.low %v1716, %v1720
  %v3332 = vunpack.c.l.s4 1966171168
  %v3333 = vunpack.c.0.s8 %v3332
  %v3334 = vlaneseq
  %v3335 = vshrl.u32 %v3334, 7
  %v3336 = vsub.s32 %v3333, %v3335
  %v3337 = vrot.slane %v3327, %v3336
  %v3339 = vunpack.c.l.s4 1966171168
  %v3340 = vunpack.c.0.s8 %v3339
  %v3341 = vlaneseq
  %v3342 = vshrl.u32 %v3341, 7
  %v3343 = vsub.s32 %v3340, %v3342
  %v3344 = vrot.slane %v3328, %v3343
  %v3346 = vunpack.c.l.s4 1966171168
  %v3347 = vunpack.c.0.s8 %v3346
  %v3348 = vlaneseq
  %v3349 = vshrl.u32 %v3348, 7
  %v3350 = vsub.s32 %v3347, %v3349
  %v3351 = vrot.slane %v3329, %v3350
  %v3353 = vunpack.c.l.s4 1966171168
  %v3354 = vunpack.c.0.s8 %v3353
  %v3355 = vlaneseq
  %v3356 = vshrl.u32 %v3355, 7
  %v3357 = vsub.s32 %v3354, %v3356
  %v3358 = vrot.slane %v3330, %v3357
  %v3359 = vcombine.low %v3337, %v3344
  %v3360 = vcombine.low %v3351, %v3358
  %v3362 = vunpack.c.l.s4 1966171168
  %v3363 = vunpack.c.0.s8 %v3362
  %v3364 = vlaneseq
  %v3365 = vshrl.u32 %v3364, 7
  %v3366 = vsub.s32 %v3363, %v3365
  %v3367 = vrot.slane %v3359, %v3366
  %v3369 = vunpack.c.l.s4 1966171168
  %v3370 = vunpack.c.0.s8 %v3369
  %v3371 = vlaneseq
  %v3372 = vshrl.u32 %v3371, 7
  %v3373 = vsub.s32 %v3370, %v3372
  %v3374 = vrot.slane %v3360, %v3373
  %v3375 = vcombine.low %v3367, %v3374
  %v3376 = vcombine.low %v1724, %v1728
  %v3377 = vcombine.low %v1732, %v1736
  %v3378 = vcombine.low %v1740, %v1744
  %v3379 = vcombine.low %v1748, %v1752
  %v3381 = vunpack.c.l.s4 1966171168
  %v3382 = vunpack.c.0.s8 %v3381
  %v3383 = vlaneseq
  %v3384 = vshrl.u32 %v3383, 7
  %v3385 = vsub.s32 %v3382, %v3384
  %v3386 = vrot.slane %v3376, %v3385
  %v3388 = vunpack.c.l.s4 1966171168
  %v3389 = vunpack.c.0.s8 %v3388
  %v3390 = vlaneseq
  %v3391 = vshrl.u32 %v3390, 7
  %v3392 = vsub.s32 %v3389, %v3391
  %v3393 = vrot.slane %v3377, %v3392
  %v3395 = vunpack.c.l.s4 1966171168
  %v3396 = vunpack.c.0.s8 %v3395
  %v3397 = vlaneseq
  %v3398 = vshrl.u32 %v3397, 7
  %v3399 = vsub.s32 %v3396, %v3398
  %v3400 = vrot.slane %v3378, %v3399
  %v3402 = vunpack.c.l.s4 1966171168
  %v3403 = vunpack.c.0.s8 %v3402
  %v3404 = vlaneseq
  %v3405 = vshrl.u32 %v3404, 7
  %v3406 = vsub.s32 %v3403, %v3405
  %v3407 = vrot.slane %v3379, %v3406
  %v3408 = vcombine.low %v3386, %v3393
  %v3409 = vcombine.low %v3400, %v3407
  %v3411 = vunpack.c.l.s4 1966171168
  %v3412 = vunpack.c.0.s8 %v3411
  %v3413 = vlaneseq
  %v3414 = vshrl.u32 %v3413, 7
  %v3415 = vsub.s32 %v3412, %v3414
  %v3416 = vrot.slane %v3408, %v3415
  %v3418 = vunpack.c.l.s4 1966171168
  %v3419 = vunpack.c.0.s8 %v3418
  %v3420 = vlaneseq
  %v3421 = vshrl.u32 %v3420, 7
  %v3422 = vsub.s32 %v3419, %v3421
  %v3423 = vrot.slane %v3409, %v3422
  %v3424 = vcombine.low %v3416, %v3423
  %v3425 = vcombine.low %v1756, %v1760
  %v3426 = vcombine.low %v1764, %v1768
  %v3427 = vcombine.low %v1772, %v1776
  %v3428 = vcombine.low %v1780, %v1784
  %v3430 = vunpack.c.l.s4 1966171168
  %v3431 = vunpack.c.0.s8 %v3430
  %v3432 = vlaneseq
  %v3433 = vshrl.u32 %v3432, 7
  %v3434 = vsub.s32 %v3431, %v3433
  %v3435 = vrot.slane %v3425, %v3434
  %v3437 = vunpack.c.l.s4 1966171168
  %v3438 = vunpack.c.0.s8 %v3437
  %v3439 = vlaneseq
  %v3440 = vshrl.u32 %v3439, 7
  %v3441 = vsub.s32 %v3438, %v3440
  %v3442 = vrot.slane %v3426, %v3441
  %v3444 = vunpack.c.l.s4 1966171168
  %v3445 = vunpack.c.0.s8 %v3444
  %v3446 = vlaneseq
  %v3447 = vshrl.u32 %v3446, 7
  %v3448 = vsub.s32 %v3445, %v3447
  %v3449 = vrot.slane %v3427, %v3448
  %v3451 = vunpack.c.l.s4 1966171168
  %v3452 = vunpack.c.0.s8 %v3451
  %v3453 = vlaneseq
  %v3454 = vshrl.u32 %v3453, 7
  %v3455 = vsub.s32 %v3452, %v3454
  %v3456 = vrot.slane %v3428, %v3455
  %v3457 = vcombine.low %v3435, %v3442
  %v3458 = vcombine.low %v3449, %v3456
  %v3460 = vunpack.c.l.s4 1966171168
  %v3461 = vunpack.c.0.s8 %v3460
  %v3462 = vlaneseq
  %v3463 = vshrl.u32 %v3462, 7
  %v3464 = vsub.s32 %v3461, %v3463
  %v3465 = vrot.slane %v3457, %v3464
  %v3467 = vunpack.c.l.s4 1966171168
  %v3468 = vunpack.c.0.s8 %v3467
  %v3469 = vlaneseq
  %v3470 = vshrl.u32 %v3469, 7
  %v3471 = vsub.s32 %v3468, %v3470
  %v3472 = vrot.slane %v3458, %v3471
  %v3473 = vcombine.low %v3465, %v3472
  %v3474 = vcombine.low %v1788, %v1792
  %v3475 = vcombine.low %v1796, %v1800
  %v3476 = vcombine.low %v1804, %v1808
  %v3477 = vcombine.low %v1812, %v1816
  %v3479 = vunpack.c.l.s4 1966171168
  %v3480 = vunpack.c.0.s8 %v3479
  %v3481 = vlaneseq
  %v3482 = vshrl.u32 %v3481, 7
  %v3483 = vsub.s32 %v3480, %v3482
  %v3484 = vrot.slane %v3474, %v3483
  %v3486 = vunpack.c.l.s4 1966171168
  %v3487 = vunpack.c.0.s8 %v3486
  %v3488 = vlaneseq
  %v3489 = vshrl.u32 %v3488, 7
  %v3490 = vsub.s32 %v3487, %v3489
  %v3491 = vrot.slane %v3475, %v3490
  %v3493 = vunpack.c.l.s4 1966171168
  %v3494 = vunpack.c.0.s8 %v3493
  %v3495 = vlaneseq
  %v3496 = vshrl.u32 %v3495, 7
  %v3497 = vsub.s32 %v3494, %v3496
  %v3498 = vrot.slane %v3476, %v3497
  %v3500 = vunpack.c.l.s4 1966171168
  %v3501 = vunpack.c.0.s8 %v3500
  %v3502 = vlaneseq
  %v3503 = vshrl.u32 %v3502, 7
  %v3504 = vsub.s32 %v3501, %v3503
  %v3505 = vrot.slane %v3477, %v3504
  %v3506 = vcombine.low %v3484, %v3491
  %v3507 = vcombine.low %v3498, %v3505
  %v3509 = vunpack.c.l.s4 1966171168
  %v3510 = vunpack.c.0.s8 %v3509
  %v3511 = vlaneseq
  %v3512 = vshrl.u32 %v3511, 7
  %v3513 = vsub.s32 %v3510, %v3512
  %v3514 = vrot.slane %v3506, %v3513
  %v3516 = vunpack.c.l.s4 1966171168
  %v3517 = vunpack.c.0.s8 %v3516
  %v3518 = vlaneseq
  %v3519 = vshrl.u32 %v3518, 7
  %v3520 = vsub.s32 %v3517, %v3519
  %v3521 = vrot.slane %v3507, %v3520
  %v3522 = vcombine.low %v3514, %v3521
  %v3523 = vcombine.low %v1820, %v1824
  %v3524 = vcombine.low %v1828, %v1832
  %v3525 = vcombine.low %v1836, %v1840
  %v3526 = vcombine.low %v1844, %v1848
  %v3528 = vunpack.c.l.s4 1966171168
  %v3529 = vunpack.c.0.s8 %v3528
  %v3530 = vlaneseq
  %v3531 = vshrl.u32 %v3530, 7
  %v3532 = vsub.s32 %v3529, %v3531
  %v3533 = vrot.slane %v3523, %v3532
  %v3535 = vunpack.c.l.s4 1966171168
  %v3536 = vunpack.c.0.s8 %v3535
  %v3537 = vlaneseq
  %v3538 = vshrl.u32 %v3537, 7
  %v3539 = vsub.s32 %v3536, %v3538
  %v3540 = vrot.slane %v3524, %v3539
  %v3542 = vunpack.c.l.s4 1966171168
  %v3543 = vunpack.c.0.s8 %v3542
  %v3544 = vlaneseq
  %v3545 = vshrl.u32 %v3544, 7
  %v3546 = vsub.s32 %v3543, %v3545
  %v3547 = vrot.slane %v3525, %v3546
  %v3549 = vunpack.c.l.s4 1966171168
  %v3550 = vunpack.c.0.s8 %v3549
  %v3551 = vlaneseq
  %v3552 = vshrl.u32 %v3551, 7
  %v3553 = vsub.s32 %v3550, %v3552
  %v3554 = vrot.slane %v3526, %v3553
  %v3555 = vcombine.low %v3533, %v3540
  %v3556 = vcombine.low %v3547, %v3554
  %v3558 = vunpack.c.l.s4 1966171168
  %v3559 = vunpack.c.0.s8 %v3558
  %v3560 = vlaneseq
  %v3561 = vshrl.u32 %v3560, 7
  %v3562 = vsub.s32 %v3559, %v3561
  %v3563 = vrot.slane %v3555, %v3562
  %v3565 = vunpack.c.l.s4 1966171168
  %v3566 = vunpack.c.0.s8 %v3565
  %v3567 = vlaneseq
  %v3568 = vshrl.u32 %v3567, 7
  %v3569 = vsub.s32 %v3566, %v3568
  %v3570 = vrot.slane %v3556, %v3569
  %v3571 = vcombine.low %v3563, %v3570
  %v3572 = vcombine.low %v1852, %v1856
  %v3573 = vcombine.low %v1860, %v1864
  %v3574 = vcombine.low %v1868, %v1872
  %v3575 = vcombine.low %v1876, %v1880
  %v3577 = vunpack.c.l.s4 1966171168
  %v3578 = vunpack.c.0.s8 %v3577
  %v3579 = vlaneseq
  %v3580 = vshrl.u32 %v3579, 7
  %v3581 = vsub.s32 %v3578, %v3580
  %v3582 = vrot.slane %v3572, %v3581
  %v3584 = vunpack.c.l.s4 1966171168
  %v3585 = vunpack.c.0.s8 %v3584
  %v3586 = vlaneseq
  %v3587 = vshrl.u32 %v3586, 7
  %v3588 = vsub.s32 %v3585, %v3587
  %v3589 = vrot.slane %v3573, %v3588
  %v3591 = vunpack.c.l.s4 1966171168
  %v3592 = vunpack.c.0.s8 %v3591
  %v3593 = vlaneseq
  %v3594 = vshrl.u32 %v3593, 7
  %v3595 = vsub.s32 %v3592, %v3594
  %v3596 = vrot.slane %v3574, %v3595
  %v3598 = vunpack.c.l.s4 1966171168
  %v3599 = vunpack.c.0.s8 %v3598
  %v3600 = vlaneseq
  %v3601 = vshrl.u32 %v3600, 7
  %v3602 = vsub.s32 %v3599, %v3601
  %v3603 = vrot.slane %v3575, %v3602
  %v3604 = vcombine.low %v3582, %v3589
  %v3605 = vcombine.low %v3596, %v3603
  %v3607 = vunpack.c.l.s4 1966171168
  %v3608 = vunpack.c.0.s8 %v3607
  %v3609 = vlaneseq
  %v3610 = vshrl.u32 %v3609, 7
  %v3611 = vsub.s32 %v3608, %v3610
  %v3612 = vrot.slane %v3604, %v3611
  %v3614 = vunpack.c.l.s4 1966171168
  %v3615 = vunpack.c.0.s8 %v3614
  %v3616 = vlaneseq
  %v3617 = vshrl.u32 %v3616, 7
  %v3618 = vsub.s32 %v3615, %v3617
  %v3619 = vrot.slane %v3605, %v3618
  %v3620 = vcombine.low %v3612, %v3619
  %v3621 = vcombine.low %v1884, %v1888
  %v3622 = vcombine.low %v1892, %v1896
  %v3623 = vcombine.low %v1900, %v1904
  %v3624 = vcombine.low %v1908, %v1912
  %v3626 = vunpack.c.l.s4 1966171168
  %v3627 = vunpack.c.0.s8 %v3626
  %v3628 = vlaneseq
  %v3629 = vshrl.u32 %v3628, 7
  %v3630 = vsub.s32 %v3627, %v3629
  %v3631 = vrot.slane %v3621, %v3630
  %v3633 = vunpack.c.l.s4 1966171168
  %v3634 = vunpack.c.0.s8 %v3633
  %v3635 = vlaneseq
  %v3636 = vshrl.u32 %v3635, 7
  %v3637 = vsub.s32 %v3634, %v3636
  %v3638 = vrot.slane %v3622, %v3637
  %v3640 = vunpack.c.l.s4 1966171168
  %v3641 = vunpack.c.0.s8 %v3640
  %v3642 = vlaneseq
  %v3643 = vshrl.u32 %v3642, 7
  %v3644 = vsub.s32 %v3641, %v3643
  %v3645 = vrot.slane %v3623, %v3644
  %v3647 = vunpack.c.l.s4 1966171168
  %v3648 = vunpack.c.0.s8 %v3647
  %v3649 = vlaneseq
  %v3650 = vshrl.u32 %v3649, 7
  %v3651 = vsub.s32 %v3648, %v3650
  %v3652 = vrot.slane %v3624, %v3651
  %v3653 = vcombine.low %v3631, %v3638
  %v3654 = vcombine.low %v3645, %v3652
  %v3656 = vunpack.c.l.s4 1966171168
  %v3657 = vunpack.c.0.s8 %v3656
  %v3658 = vlaneseq
  %v3659 = vshrl.u32 %v3658, 7
  %v3660 = vsub.s32 %v3657, %v3659
  %v3661 = vrot.slane %v3653, %v3660
  %v3663 = vunpack.c.l.s4 1966171168
  %v3664 = vunpack.c.0.s8 %v3663
  %v3665 = vlaneseq
  %v3666 = vshrl.u32 %v3665, 7
  %v3667 = vsub.s32 %v3664, %v3666
  %v3668 = vrot.slane %v3654, %v3667
  %v3669 = vcombine.low %v3661, %v3668
  %v3670 = vcombine.low %v1916, %v1920
  %v3671 = vcombine.low %v1924, %v1928
  %v3672 = vcombine.low %v1932, %v1936
  %v3673 = vcombine.low %v1940, %v1944
  %v3675 = vunpack.c.l.s4 1966171168
  %v3676 = vunpack.c.0.s8 %v3675
  %v3677 = vlaneseq
  %v3678 = vshrl.u32 %v3677, 7
  %v3679 = vsub.s32 %v3676, %v3678
  %v3680 = vrot.slane %v3670, %v3679
  %v3682 = vunpack.c.l.s4 1966171168
  %v3683 = vunpack.c.0.s8 %v3682
  %v3684 = vlaneseq
  %v3685 = vshrl.u32 %v3684, 7
  %v3686 = vsub.s32 %v3683, %v3685
  %v3687 = vrot.slane %v3671, %v3686
  %v3689 = vunpack.c.l.s4 1966171168
  %v3690 = vunpack.c.0.s8 %v3689
  %v3691 = vlaneseq
  %v3692 = vshrl.u32 %v3691, 7
  %v3693 = vsub.s32 %v3690, %v3692
  %v3694 = vrot.slane %v3672, %v3693
  %v3696 = vunpack.c.l.s4 1966171168
  %v3697 = vunpack.c.0.s8 %v3696
  %v3698 = vlaneseq
  %v3699 = vshrl.u32 %v3698, 7
  %v3700 = vsub.s32 %v3697, %v3699
  %v3701 = vrot.slane %v3673, %v3700
  %v3702 = vcombine.low %v3680, %v3687
  %v3703 = vcombine.low %v3694, %v3701
  %v3705 = vunpack.c.l.s4 1966171168
  %v3706 = vunpack.c.0.s8 %v3705
  %v3707 = vlaneseq
  %v3708 = vshrl.u32 %v3707, 7
  %v3709 = vsub.s32 %v3706, %v3708
  %v3710 = vrot.slane %v3702, %v3709
  %v3712 = vunpack.c.l.s4 1966171168
  %v3713 = vunpack.c.0.s8 %v3712
  %v3714 = vlaneseq
  %v3715 = vshrl.u32 %v3714, 7
  %v3716 = vsub.s32 %v3713, %v3715
  %v3717 = vrot.slane %v3703, %v3716
  %v3718 = vcombine.low %v3710, %v3717
  %v3719 = vcombine.low %v1948, %v1952
  %v3720 = vcombine.low %v1956, %v1960
  %v3721 = vcombine.low %v1964, %v1968
  %v3722 = vcombine.low %v1972, %v1976
  %v3724 = vunpack.c.l.s4 1966171168
  %v3725 = vunpack.c.0.s8 %v3724
  %v3726 = vlaneseq
  %v3727 = vshrl.u32 %v3726, 7
  %v3728 = vsub.s32 %v3725, %v3727
  %v3729 = vrot.slane %v3719, %v3728
  %v3731 = vunpack.c.l.s4 1966171168
  %v3732 = vunpack.c.0.s8 %v3731
  %v3733 = vlaneseq
  %v3734 = vshrl.u32 %v3733, 7
  %v3735 = vsub.s32 %v3732, %v3734
  %v3736 = vrot.slane %v3720, %v3735
  %v3738 = vunpack.c.l.s4 1966171168
  %v3739 = vunpack.c.0.s8 %v3738
  %v3740 = vlaneseq
  %v3741 = vshrl.u32 %v3740, 7
  %v3742 = vsub.s32 %v3739, %v3741
  %v3743 = vrot.slane %v3721, %v3742
  %v3745 = vunpack.c.l.s4 1966171168
  %v3746 = vunpack.c.0.s8 %v3745
  %v3747 = vlaneseq
  %v3748 = vshrl.u32 %v3747, 7
  %v3749 = vsub.s32 %v3746, %v3748
  %v3750 = vrot.slane %v3722, %v3749
  %v3751 = vcombine.low %v3729, %v3736
  %v3752 = vcombine.low %v3743, %v3750
  %v3754 = vunpack.c.l.s4 1966171168
  %v3755 = vunpack.c.0.s8 %v3754
  %v3756 = vlaneseq
  %v3757 = vshrl.u32 %v3756, 7
  %v3758 = vsub.s32 %v3755, %v3757
  %v3759 = vrot.slane %v3751, %v3758
  %v3761 = vunpack.c.l.s4 1966171168
  %v3762 = vunpack.c.0.s8 %v3761
  %v3763 = vlaneseq
  %v3764 = vshrl.u32 %v3763, 7
  %v3765 = vsub.s32 %v3762, %v3764
  %v3766 = vrot.slane %v3752, %v3765
  %v3767 = vcombine.low %v3759, %v3766
  %v3768 = vcombine.low %v1980, %v1984
  %v3769 = vcombine.low %v1988, %v1992
  %v3770 = vcombine.low %v1996, %v2000
  %v3771 = vcombine.low %v2004, %v2008
  %v3773 = vunpack.c.l.s4 1966171168
  %v3774 = vunpack.c.0.s8 %v3773
  %v3775 = vlaneseq
  %v3776 = vshrl.u32 %v3775, 7
  %v3777 = vsub.s32 %v3774, %v3776
  %v3778 = vrot.slane %v3768, %v3777
  %v3780 = vunpack.c.l.s4 1966171168
  %v3781 = vunpack.c.0.s8 %v3780
  %v3782 = vlaneseq
  %v3783 = vshrl.u32 %v3782, 7
  %v3784 = vsub.s32 %v3781, %v3783
  %v3785 = vrot.slane %v3769, %v3784
  %v3787 = vunpack.c.l.s4 1966171168
  %v3788 = vunpack.c.0.s8 %v3787
  %v3789 = vlaneseq
  %v3790 = vshrl.u32 %v3789, 7
  %v3791 = vsub.s32 %v3788, %v3790
  %v3792 = vrot.slane %v3770, %v3791
  %v3794 = vunpack.c.l.s4 1966171168
  %v3795 = vunpack.c.0.s8 %v3794
  %v3796 = vlaneseq
  %v3797 = vshrl.u32 %v3796, 7
  %v3798 = vsub.s32 %v3795, %v3797
  %v3799 = vrot.slane %v3771, %v3798
  %v3800 = vcombine.low %v3778, %v3785
  %v3801 = vcombine.low %v3792, %v3799
  %v3803 = vunpack.c.l.s4 1966171168
  %v3804 = vunpack.c.0.s8 %v3803
  %v3805 = vlaneseq
  %v3806 = vshrl.u32 %v3805, 7
  %v3807 = vsub.s32 %v3804, %v3806
  %v3808 = vrot.slane %v3800, %v3807
  %v3810 = vunpack.c.l.s4 1966171168
  %v3811 = vunpack.c.0.s8 %v3810
  %v3812 = vlaneseq
  %v3813 = vshrl.u32 %v3812, 7
  %v3814 = vsub.s32 %v3811, %v3813
  %v3815 = vrot.slane %v3801, %v3814
  %v3816 = vcombine.low %v3808, %v3815
  %v3817 = vcombine.low %v2012, %v2016
  %v3818 = vcombine.low %v2020, %v2024
  %v3819 = vcombine.low %v2028, %v2032
  %v3820 = vcombine.low %v2036, %v2040
  %v3822 = vunpack.c.l.s4 1966171168
  %v3823 = vunpack.c.0.s8 %v3822
  %v3824 = vlaneseq
  %v3825 = vshrl.u32 %v3824, 7
  %v3826 = vsub.s32 %v3823, %v3825
  %v3827 = vrot.slane %v3817, %v3826
  %v3829 = vunpack.c.l.s4 1966171168
  %v3830 = vunpack.c.0.s8 %v3829
  %v3831 = vlaneseq
  %v3832 = vshrl.u32 %v3831, 7
  %v3833 = vsub.s32 %v3830, %v3832
  %v3834 = vrot.slane %v3818, %v3833
  %v3836 = vunpack.c.l.s4 1966171168
  %v3837 = vunpack.c.0.s8 %v3836
  %v3838 = vlaneseq
  %v3839 = vshrl.u32 %v3838, 7
  %v3840 = vsub.s32 %v3837, %v3839
  %v3841 = vrot.slane %v3819, %v3840
  %v3843 = vunpack.c.l.s4 1966171168
  %v3844 = vunpack.c.0.s8 %v3843
  %v3845 = vlaneseq
  %v3846 = vshrl.u32 %v3845, 7
  %v3847 = vsub.s32 %v3844, %v3846
  %v3848 = vrot.slane %v3820, %v3847
  %v3849 = vcombine.low %v3827, %v3834
  %v3850 = vcombine.low %v3841, %v3848
  %v3852 = vunpack.c.l.s4 1966171168
  %v3853 = vunpack.c.0.s8 %v3852
  %v3854 = vlaneseq
  %v3855 = vshrl.u32 %v3854, 7
  %v3856 = vsub.s32 %v3853, %v3855
  %v3857 = vrot.slane %v3849, %v3856
  %v3859 = vunpack.c.l.s4 1966171168
  %v3860 = vunpack.c.0.s8 %v3859
  %v3861 = vlaneseq
  %v3862 = vshrl.u32 %v3861, 7
  %v3863 = vsub.s32 %v3860, %v3862
  %v3864 = vrot.slane %v3850, %v3863
  %v3865 = vcombine.low %v3857, %v3864
  %v3866 = vcombine.low %v2044, %v2048
  %v3867 = vcombine.low %v2052, %v2056
  %v3868 = vcombine.low %v2060, %v2064
  %v3869 = vcombine.low %v2068, %v2072
  %v3871 = vunpack.c.l.s4 1966171168
  %v3872 = vunpack.c.0.s8 %v3871
  %v3873 = vlaneseq
  %v3874 = vshrl.u32 %v3873, 7
  %v3875 = vsub.s32 %v3872, %v3874
  %v3876 = vrot.slane %v3866, %v3875
  %v3878 = vunpack.c.l.s4 1966171168
  %v3879 = vunpack.c.0.s8 %v3878
  %v3880 = vlaneseq
  %v3881 = vshrl.u32 %v3880, 7
  %v3882 = vsub.s32 %v3879, %v3881
  %v3883 = vrot.slane %v3867, %v3882
  %v3885 = vunpack.c.l.s4 1966171168
  %v3886 = vunpack.c.0.s8 %v3885
  %v3887 = vlaneseq
  %v3888 = vshrl.u32 %v3887, 7
  %v3889 = vsub.s32 %v3886, %v3888
  %v3890 = vrot.slane %v3868, %v3889
  %v3892 = vunpack.c.l.s4 1966171168
  %v3893 = vunpack.c.0.s8 %v3892
  %v3894 = vlaneseq
  %v3895 = vshrl.u32 %v3894, 7
  %v3896 = vsub.s32 %v3893, %v3895
  %v3897 = vrot.slane %v3869, %v3896
  %v3898 = vcombine.low %v3876, %v3883
  %v3899 = vcombine.low %v3890, %v3897
  %v3901 = vunpack.c.l.s4 1966171168
  %v3902 = vunpack.c.0.s8 %v3901
  %v3903 = vlaneseq
  %v3904 = vshrl.u32 %v3903, 7
  %v3905 = vsub.s32 %v3902, %v3904
  %v3906 = vrot.slane %v3898, %v3905
  %v3908 = vunpack.c.l.s4 1966171168
  %v3909 = vunpack.c.0.s8 %v3908
  %v3910 = vlaneseq
  %v3911 = vshrl.u32 %v3910, 7
  %v3912 = vsub.s32 %v3909, %v3911
  %v3913 = vrot.slane %v3899, %v3912
  %v3914 = vcombine.low %v3906, %v3913
  %v3915 = vcombine.low %v2076, %v2080
  %v3916 = vcombine.low %v2084, %v2088
  %v3917 = vcombine.low %v2092, %v2096
  %v3918 = vcombine.low %v2100, %v2104
  %v3920 = vunpack.c.l.s4 1966171168
  %v3921 = vunpack.c.0.s8 %v3920
  %v3922 = vlaneseq
  %v3923 = vshrl.u32 %v3922, 7
  %v3924 = vsub.s32 %v3921, %v3923
  %v3925 = vrot.slane %v3915, %v3924
  %v3927 = vunpack.c.l.s4 1966171168
  %v3928 = vunpack.c.0.s8 %v3927
  %v3929 = vlaneseq
  %v3930 = vshrl.u32 %v3929, 7
  %v3931 = vsub.s32 %v3928, %v3930
  %v3932 = vrot.slane %v3916, %v3931
  %v3934 = vunpack.c.l.s4 1966171168
  %v3935 = vunpack.c.0.s8 %v3934
  %v3936 = vlaneseq
  %v3937 = vshrl.u32 %v3936, 7
  %v3938 = vsub.s32 %v3935, %v3937
  %v3939 = vrot.slane %v3917, %v3938
  %v3941 = vunpack.c.l.s4 1966171168
  %v3942 = vunpack.c.0.s8 %v3941
  %v3943 = vlaneseq
  %v3944 = vshrl.u32 %v3943, 7
  %v3945 = vsub.s32 %v3942, %v3944
  %v3946 = vrot.slane %v3918, %v3945
  %v3947 = vcombine.low %v3925, %v3932
  %v3948 = vcombine.low %v3939, %v3946
  %v3950 = vunpack.c.l.s4 1966171168
  %v3951 = vunpack.c.0.s8 %v3950
  %v3952 = vlaneseq
  %v3953 = vshrl.u32 %v3952, 7
  %v3954 = vsub.s32 %v3951, %v3953
  %v3955 = vrot.slane %v3947, %v3954
  %v3957 = vunpack.c.l.s4 1966171168
  %v3958 = vunpack.c.0.s8 %v3957
  %v3959 = vlaneseq
  %v3960 = vshrl.u32 %v3959, 7
  %v3961 = vsub.s32 %v3958, %v3960
  %v3962 = vrot.slane %v3948, %v3961
  %v3963 = vcombine.low %v3955, %v3962
  %v3964 = vcombine.low %v2108, %v2112
  %v3965 = vcombine.low %v2116, %v2120
  %v3966 = vcombine.low %v2124, %v2128
  %v3967 = vcombine.low %v2132, %v2136
  %v3969 = vunpack.c.l.s4 1966171168
  %v3970 = vunpack.c.0.s8 %v3969
  %v3971 = vlaneseq
  %v3972 = vshrl.u32 %v3971, 7
  %v3973 = vsub.s32 %v3970, %v3972
  %v3974 = vrot.slane %v3964, %v3973
  %v3976 = vunpack.c.l.s4 1966171168
  %v3977 = vunpack.c.0.s8 %v3976
  %v3978 = vlaneseq
  %v3979 = vshrl.u32 %v3978, 7
  %v3980 = vsub.s32 %v3977, %v3979
  %v3981 = vrot.slane %v3965, %v3980
  %v3983 = vunpack.c.l.s4 1966171168
  %v3984 = vunpack.c.0.s8 %v3983
  %v3985 = vlaneseq
  %v3986 = vshrl.u32 %v3985, 7
  %v3987 = vsub.s32 %v3984, %v3986
  %v3988 = vrot.slane %v3966, %v3987
  %v3990 = vunpack.c.l.s4 1966171168
  %v3991 = vunpack.c.0.s8 %v3990
  %v3992 = vlaneseq
  %v3993 = vshrl.u32 %v3992, 7
  %v3994 = vsub.s32 %v3991, %v3993
  %v3995 = vrot.slane %v3967, %v3994
  %v3996 = vcombine.low %v3974, %v3981
  %v3997 = vcombine.low %v3988, %v3995
  %v3999 = vunpack.c.l.s4 1966171168
  %v4000 = vunpack.c.0.s8 %v3999
  %v4001 = vlaneseq
  %v4002 = vshrl.u32 %v4001, 7
  %v4003 = vsub.s32 %v4000, %v4002
  %v4004 = vrot.slane %v3996, %v4003
  %v4006 = vunpack.c.l.s4 1966171168
  %v4007 = vunpack.c.0.s8 %v4006
  %v4008 = vlaneseq
  %v4009 = vshrl.u32 %v4008, 7
  %v4010 = vsub.s32 %v4007, %v4009
  %v4011 = vrot.slane %v3997, %v4010
  %v4012 = vcombine.low %v4004, %v4011
  %v4013 = vcombine.low %v2140, %v2144
  %v4014 = vcombine.low %v2148, %v2152
  %v4015 = vcombine.low %v2156, %v2160
  %v4016 = vcombine.low %v2164, %v2168
  %v4018 = vunpack.c.l.s4 1966171168
  %v4019 = vunpack.c.0.s8 %v4018
  %v4020 = vlaneseq
  %v4021 = vshrl.u32 %v4020, 7
  %v4022 = vsub.s32 %v4019, %v4021
  %v4023 = vrot.slane %v4013, %v4022
  %v4025 = vunpack.c.l.s4 1966171168
  %v4026 = vunpack.c.0.s8 %v4025
  %v4027 = vlaneseq
  %v4028 = vshrl.u32 %v4027, 7
  %v4029 = vsub.s32 %v4026, %v4028
  %v4030 = vrot.slane %v4014, %v4029
  %v4032 = vunpack.c.l.s4 1966171168
  %v4033 = vunpack.c.0.s8 %v4032
  %v4034 = vlaneseq
  %v4035 = vshrl.u32 %v4034, 7
  %v4036 = vsub.s32 %v4033, %v4035
  %v4037 = vrot.slane %v4015, %v4036
  %v4039 = vunpack.c.l.s4 1966171168
  %v4040 = vunpack.c.0.s8 %v4039
  %v4041 = vlaneseq
  %v4042 = vshrl.u32 %v4041, 7
  %v4043 = vsub.s32 %v4040, %v4042
  %v4044 = vrot.slane %v4016, %v4043
  %v4045 = vcombine.low %v4023, %v4030
  %v4046 = vcombine.low %v4037, %v4044
  %v4048 = vunpack.c.l.s4 1966171168
  %v4049 = vunpack.c.0.s8 %v4048
  %v4050 = vlaneseq
  %v4051 = vshrl.u32 %v4050, 7
  %v4052 = vsub.s32 %v4049, %v4051
  %v4053 = vrot.slane %v4045, %v4052
  %v4055 = vunpack.c.l.s4 1966171168
  %v4056 = vunpack.c.0.s8 %v4055
  %v4057 = vlaneseq
  %v4058 = vshrl.u32 %v4057, 7
  %v4059 = vsub.s32 %v4056, %v4058
  %v4060 = vrot.slane %v4046, %v4059
  %v4061 = vcombine.low %v4053, %v4060
  %v4062 = vcombine.low %v2172, %v2176
  %v4063 = vcombine.low %v2180, %v2184
  %v4064 = vcombine.low %v2188, %v2192
  %v4065 = vcombine.low %v2196, %v2200
  %v4067 = vunpack.c.l.s4 1966171168
  %v4068 = vunpack.c.0.s8 %v4067
  %v4069 = vlaneseq
  %v4070 = vshrl.u32 %v4069, 7
  %v4071 = vsub.s32 %v4068, %v4070
  %v4072 = vrot.slane %v4062, %v4071
  %v4074 = vunpack.c.l.s4 1966171168
  %v4075 = vunpack.c.0.s8 %v4074
  %v4076 = vlaneseq
  %v4077 = vshrl.u32 %v4076, 7
  %v4078 = vsub.s32 %v4075, %v4077
  %v4079 = vrot.slane %v4063, %v4078
  %v4081 = vunpack.c.l.s4 1966171168
  %v4082 = vunpack.c.0.s8 %v4081
  %v4083 = vlaneseq
  %v4084 = vshrl.u32 %v4083, 7
  %v4085 = vsub.s32 %v4082, %v4084
  %v4086 = vrot.slane %v4064, %v4085
  %v4088 = vunpack.c.l.s4 1966171168
  %v4089 = vunpack.c.0.s8 %v4088
  %v4090 = vlaneseq
  %v4091 = vshrl.u32 %v4090, 7
  %v4092 = vsub.s32 %v4089, %v4091
  %v4093 = vrot.slane %v4065, %v4092
  %v4094 = vcombine.low %v4072, %v4079
  %v4095 = vcombine.low %v4086, %v4093
  %v4097 = vunpack.c.l.s4 1966171168
  %v4098 = vunpack.c.0.s8 %v4097
  %v4099 = vlaneseq
  %v4100 = vshrl.u32 %v4099, 7
  %v4101 = vsub.s32 %v4098, %v4100
  %v4102 = vrot.slane %v4094, %v4101
  %v4104 = vunpack.c.l.s4 1966171168
  %v4105 = vunpack.c.0.s8 %v4104
  %v4106 = vlaneseq
  %v4107 = vshrl.u32 %v4106, 7
  %v4108 = vsub.s32 %v4105, %v4107
  %v4109 = vrot.slane %v4095, %v4108
  %v4110 = vcombine.low %v4102, %v4109
  %v4111 = vcombine.low %v2204, %v2208
  %v4112 = vcombine.low %v2212, %v2216
  %v4113 = vcombine.low %v2220, %v2224
  %v4114 = vcombine.low %v2228, %v2232
  %v4116 = vunpack.c.l.s4 1966171168
  %v4117 = vunpack.c.0.s8 %v4116
  %v4118 = vlaneseq
  %v4119 = vshrl.u32 %v4118, 7
  %v4120 = vsub.s32 %v4117, %v4119
  %v4121 = vrot.slane %v4111, %v4120
  %v4123 = vunpack.c.l.s4 1966171168
  %v4124 = vunpack.c.0.s8 %v4123
  %v4125 = vlaneseq
  %v4126 = vshrl.u32 %v4125, 7
  %v4127 = vsub.s32 %v4124, %v4126
  %v4128 = vrot.slane %v4112, %v4127
  %v4130 = vunpack.c.l.s4 1966171168
  %v4131 = vunpack.c.0.s8 %v4130
  %v4132 = vlaneseq
  %v4133 = vshrl.u32 %v4132, 7
  %v4134 = vsub.s32 %v4131, %v4133
  %v4135 = vrot.slane %v4113, %v4134
  %v4137 = vunpack.c.l.s4 1966171168
  %v4138 = vunpack.c.0.s8 %v4137
  %v4139 = vlaneseq
  %v4140 = vshrl.u32 %v4139, 7
  %v4141 = vsub.s32 %v4138, %v4140
  %v4142 = vrot.slane %v4114, %v4141
  %v4143 = vcombine.low %v4121, %v4128
  %v4144 = vcombine.low %v4135, %v4142
  %v4146 = vunpack.c.l.s4 1966171168
  %v4147 = vunpack.c.0.s8 %v4146
  %v4148 = vlaneseq
  %v4149 = vshrl.u32 %v4148, 7
  %v4150 = vsub.s32 %v4147, %v4149
  %v4151 = vrot.slane %v4143, %v4150
  %v4153 = vunpack.c.l.s4 1966171168
  %v4154 = vunpack.c.0.s8 %v4153
  %v4155 = vlaneseq
  %v4156 = vshrl.u32 %v4155, 7
  %v4157 = vsub.s32 %v4154, %v4156
  %v4158 = vrot.slane %v4144, %v4157
  %v4159 = vcombine.low %v4151, %v4158
  %v4160 = vcombine.low %v2236, %v2240
  %v4161 = vcombine.low %v2244, %v2248
  %v4162 = vcombine.low %v2252, %v2256
  %v4163 = vcombine.low %v2260, %v2264
  %v4165 = vunpack.c.l.s4 1966171168
  %v4166 = vunpack.c.0.s8 %v4165
  %v4167 = vlaneseq
  %v4168 = vshrl.u32 %v4167, 7
  %v4169 = vsub.s32 %v4166, %v4168
  %v4170 = vrot.slane %v4160, %v4169
  %v4172 = vunpack.c.l.s4 1966171168
  %v4173 = vunpack.c.0.s8 %v4172
  %v4174 = vlaneseq
  %v4175 = vshrl.u32 %v4174, 7
  %v4176 = vsub.s32 %v4173, %v4175
  %v4177 = vrot.slane %v4161, %v4176
  %v4179 = vunpack.c.l.s4 1966171168
  %v4180 = vunpack.c.0.s8 %v4179
  %v4181 = vlaneseq
  %v4182 = vshrl.u32 %v4181, 7
  %v4183 = vsub.s32 %v4180, %v4182
  %v4184 = vrot.slane %v4162, %v4183
  %v4186 = vunpack.c.l.s4 1966171168
  %v4187 = vunpack.c.0.s8 %v4186
  %v4188 = vlaneseq
  %v4189 = vshrl.u32 %v4188, 7
  %v4190 = vsub.s32 %v4187, %v4189
  %v4191 = vrot.slane %v4163, %v4190
  %v4192 = vcombine.low %v4170, %v4177
  %v4193 = vcombine.low %v4184, %v4191
  %v4195 = vunpack.c.l.s4 1966171168
  %v4196 = vunpack.c.0.s8 %v4195
  %v4197 = vlaneseq
  %v4198 = vshrl.u32 %v4197, 7
  %v4199 = vsub.s32 %v4196, %v4198
  %v4200 = vrot.slane %v4192, %v4199
  %v4202 = vunpack.c.l.s4 1966171168
  %v4203 = vunpack.c.0.s8 %v4202
  %v4204 = vlaneseq
  %v4205 = vshrl.u32 %v4204, 7
  %v4206 = vsub.s32 %v4203, %v4205
  %v4207 = vrot.slane %v4193, %v4206
  %v4208 = vcombine.low %v4200, %v4207
  %v4209 = vcombine.low %v2268, %v2272
  %v4210 = vcombine.low %v2276, %v2280
  %v4211 = vcombine.low %v2284, %v2288
  %v4212 = vcombine.low %v2292, %v2296
  %v4214 = vunpack.c.l.s4 1966171168
  %v4215 = vunpack.c.0.s8 %v4214
  %v4216 = vlaneseq
  %v4217 = vshrl.u32 %v4216, 7
  %v4218 = vsub.s32 %v4215, %v4217
  %v4219 = vrot.slane %v4209, %v4218
  %v4221 = vunpack.c.l.s4 1966171168
  %v4222 = vunpack.c.0.s8 %v4221
  %v4223 = vlaneseq
  %v4224 = vshrl.u32 %v4223, 7
  %v4225 = vsub.s32 %v4222, %v4224
  %v4226 = vrot.slane %v4210, %v4225
  %v4228 = vunpack.c.l.s4 1966171168
  %v4229 = vunpack.c.0.s8 %v4228
  %v4230 = vlaneseq
  %v4231 = vshrl.u32 %v4230, 7
  %v4232 = vsub.s32 %v4229, %v4231
  %v4233 = vrot.slane %v4211, %v4232
  %v4235 = vunpack.c.l.s4 1966171168
  %v4236 = vunpack.c.0.s8 %v4235
  %v4237 = vlaneseq
  %v4238 = vshrl.u32 %v4237, 7
  %v4239 = vsub.s32 %v4236, %v4238
  %v4240 = vrot.slane %v4212, %v4239
  %v4241 = vcombine.low %v4219, %v4226
  %v4242 = vcombine.low %v4233, %v4240
  %v4244 = vunpack.c.l.s4 1966171168
  %v4245 = vunpack.c.0.s8 %v4244
  %v4246 = vlaneseq
  %v4247 = vshrl.u32 %v4246, 7
  %v4248 = vsub.s32 %v4245, %v4247
  %v4249 = vrot.slane %v4241, %v4248
  %v4251 = vunpack.c.l.s4 1966171168
  %v4252 = vunpack.c.0.s8 %v4251
  %v4253 = vlaneseq
  %v4254 = vshrl.u32 %v4253, 7
  %v4255 = vsub.s32 %v4252, %v4254
  %v4256 = vrot.slane %v4242, %v4255
  %v4257 = vcombine.low %v4249, %v4256
  %v4258 = vcombine.low %v2300, %v2304
  %v4259 = vcombine.low %v2308, %v2312
  %v4260 = vcombine.low %v2316, %v2320
  %v4261 = vcombine.low %v2324, %v2328
  %v4263 = vunpack.c.l.s4 1966171168
  %v4264 = vunpack.c.0.s8 %v4263
  %v4265 = vlaneseq
  %v4266 = vshrl.u32 %v4265, 7
  %v4267 = vsub.s32 %v4264, %v4266
  %v4268 = vrot.slane %v4258, %v4267
  %v4270 = vunpack.c.l.s4 1966171168
  %v4271 = vunpack.c.0.s8 %v4270
  %v4272 = vlaneseq
  %v4273 = vshrl.u32 %v4272, 7
  %v4274 = vsub.s32 %v4271, %v4273
  %v4275 = vrot.slane %v4259, %v4274
  %v4277 = vunpack.c.l.s4 1966171168
  %v4278 = vunpack.c.0.s8 %v4277
  %v4279 = vlaneseq
  %v4280 = vshrl.u32 %v4279, 7
  %v4281 = vsub.s32 %v4278, %v4280
  %v4282 = vrot.slane %v4260, %v4281
  %v4284 = vunpack.c.l.s4 1966171168
  %v4285 = vunpack.c.0.s8 %v4284
  %v4286 = vlaneseq
  %v4287 = vshrl.u32 %v4286, 7
  %v4288 = vsub.s32 %v4285, %v4287
  %v4289 = vrot.slane %v4261, %v4288
  %v4290 = vcombine.low %v4268, %v4275
  %v4291 = vcombine.low %v4282, %v4289
  %v4293 = vunpack.c.l.s4 1966171168
  %v4294 = vunpack.c.0.s8 %v4293
  %v4295 = vlaneseq
  %v4296 = vshrl.u32 %v4295, 7
  %v4297 = vsub.s32 %v4294, %v4296
  %v4298 = vrot.slane %v4290, %v4297
  %v4300 = vunpack.c.l.s4 1966171168
  %v4301 = vunpack.c.0.s8 %v4300
  %v4302 = vlaneseq
  %v4303 = vshrl.u32 %v4302, 7
  %v4304 = vsub.s32 %v4301, %v4303
  %v4305 = vrot.slane %v4291, %v4304
  %v4306 = vcombine.low %v4298, %v4305
  %v4307 = vcombine.low %v2332, %v2336
  %v4308 = vcombine.low %v2340, %v2344
  %v4309 = vcombine.low %v2348, %v2352
  %v4310 = vcombine.low %v2356, %v2360
  %v4312 = vunpack.c.l.s4 1966171168
  %v4313 = vunpack.c.0.s8 %v4312
  %v4314 = vlaneseq
  %v4315 = vshrl.u32 %v4314, 7
  %v4316 = vsub.s32 %v4313, %v4315
  %v4317 = vrot.slane %v4307, %v4316
  %v4319 = vunpack.c.l.s4 1966171168
  %v4320 = vunpack.c.0.s8 %v4319
  %v4321 = vlaneseq
  %v4322 = vshrl.u32 %v4321, 7
  %v4323 = vsub.s32 %v4320, %v4322
  %v4324 = vrot.slane %v4308, %v4323
  %v4326 = vunpack.c.l.s4 1966171168
  %v4327 = vunpack.c.0.s8 %v4326
  %v4328 = vlaneseq
  %v4329 = vshrl.u32 %v4328, 7
  %v4330 = vsub.s32 %v4327, %v4329
  %v4331 = vrot.slane %v4309, %v4330
  %v4333 = vunpack.c.l.s4 1966171168
  %v4334 = vunpack.c.0.s8 %v4333
  %v4335 = vlaneseq
  %v4336 = vshrl.u32 %v4335, 7
  %v4337 = vsub.s32 %v4334, %v4336
  %v4338 = vrot.slane %v4310, %v4337
  %v4339 = vcombine.low %v4317, %v4324
  %v4340 = vcombine.low %v4331, %v4338
  %v4342 = vunpack.c.l.s4 1966171168
  %v4343 = vunpack.c.0.s8 %v4342
  %v4344 = vlaneseq
  %v4345 = vshrl.u32 %v4344, 7
  %v4346 = vsub.s32 %v4343, %v4345
  %v4347 = vrot.slane %v4339, %v4346
  %v4349 = vunpack.c.l.s4 1966171168
  %v4350 = vunpack.c.0.s8 %v4349
  %v4351 = vlaneseq
  %v4352 = vshrl.u32 %v4351, 7
  %v4353 = vsub.s32 %v4350, %v4352
  %v4354 = vrot.slane %v4340, %v4353
  %v4355 = vcombine.low %v4347, %v4354
  %v4356 = vcombine.low %v2364, %v2368
  %v4357 = vcombine.low %v2372, %v2376
  %v4358 = vcombine.low %v2380, %v2384
  %v4359 = vcombine.low %v2388, %v2392
  %v4361 = vunpack.c.l.s4 1966171168
  %v4362 = vunpack.c.0.s8 %v4361
  %v4363 = vlaneseq
  %v4364 = vshrl.u32 %v4363, 7
  %v4365 = vsub.s32 %v4362, %v4364
  %v4366 = vrot.slane %v4356, %v4365
  %v4368 = vunpack.c.l.s4 1966171168
  %v4369 = vunpack.c.0.s8 %v4368
  %v4370 = vlaneseq
  %v4371 = vshrl.u32 %v4370, 7
  %v4372 = vsub.s32 %v4369, %v4371
  %v4373 = vrot.slane %v4357, %v4372
  %v4375 = vunpack.c.l.s4 1966171168
  %v4376 = vunpack.c.0.s8 %v4375
  %v4377 = vlaneseq
  %v4378 = vshrl.u32 %v4377, 7
  %v4379 = vsub.s32 %v4376, %v4378
  %v4380 = vrot.slane %v4358, %v4379
  %v4382 = vunpack.c.l.s4 1966171168
  %v4383 = vunpack.c.0.s8 %v4382
  %v4384 = vlaneseq
  %v4385 = vshrl.u32 %v4384, 7
  %v4386 = vsub.s32 %v4383, %v4385
  %v4387 = vrot.slane %v4359, %v4386
  %v4388 = vcombine.low %v4366, %v4373
  %v4389 = vcombine.low %v4380, %v4387
  %v4391 = vunpack.c.l.s4 1966171168
  %v4392 = vunpack.c.0.s8 %v4391
  %v4393 = vlaneseq
  %v4394 = vshrl.u32 %v4393, 7
  %v4395 = vsub.s32 %v4392, %v4394
  %v4396 = vrot.slane %v4388, %v4395
  %v4398 = vunpack.c.l.s4 1966171168
  %v4399 = vunpack.c.0.s8 %v4398
  %v4400 = vlaneseq
  %v4401 = vshrl.u32 %v4400, 7
  %v4402 = vsub.s32 %v4399, %v4401
  %v4403 = vrot.slane %v4389, %v4402
  %v4404 = vcombine.low %v4396, %v4403
  %v4405 = vcombine.low %v2396, %v2400
  %v4406 = vcombine.low %v2404, %v2408
  %v4407 = vcombine.low %v2412, %v2416
  %v4408 = vcombine.low %v2420, %v2424
  %v4410 = vunpack.c.l.s4 1966171168
  %v4411 = vunpack.c.0.s8 %v4410
  %v4412 = vlaneseq
  %v4413 = vshrl.u32 %v4412, 7
  %v4414 = vsub.s32 %v4411, %v4413
  %v4415 = vrot.slane %v4405, %v4414
  %v4417 = vunpack.c.l.s4 1966171168
  %v4418 = vunpack.c.0.s8 %v4417
  %v4419 = vlaneseq
  %v4420 = vshrl.u32 %v4419, 7
  %v4421 = vsub.s32 %v4418, %v4420
  %v4422 = vrot.slane %v4406, %v4421
  %v4424 = vunpack.c.l.s4 1966171168
  %v4425 = vunpack.c.0.s8 %v4424
  %v4426 = vlaneseq
  %v4427 = vshrl.u32 %v4426, 7
  %v4428 = vsub.s32 %v4425, %v4427
  %v4429 = vrot.slane %v4407, %v4428
  %v4431 = vunpack.c.l.s4 1966171168
  %v4432 = vunpack.c.0.s8 %v4431
  %v4433 = vlaneseq
  %v4434 = vshrl.u32 %v4433, 7
  %v4435 = vsub.s32 %v4432, %v4434
  %v4436 = vrot.slane %v4408, %v4435
  %v4437 = vcombine.low %v4415, %v4422
  %v4438 = vcombine.low %v4429, %v4436
  %v4440 = vunpack.c.l.s4 1966171168
  %v4441 = vunpack.c.0.s8 %v4440
  %v4442 = vlaneseq
  %v4443 = vshrl.u32 %v4442, 7
  %v4444 = vsub.s32 %v4441, %v4443
  %v4445 = vrot.slane %v4437, %v4444
  %v4447 = vunpack.c.l.s4 1966171168
  %v4448 = vunpack.c.0.s8 %v4447
  %v4449 = vlaneseq
  %v4450 = vshrl.u32 %v4449, 7
  %v4451 = vsub.s32 %v4448, %v4450
  %v4452 = vrot.slane %v4438, %v4451
  %v4453 = vcombine.low %v4445, %v4452
  %v4454 = vcombine.low %v2428, %v2432
  %v4455 = vcombine.low %v2436, %v2440
  %v4456 = vcombine.low %v2444, %v2448
  %v4457 = vcombine.low %v2452, %v2456
  %v4459 = vunpack.c.l.s4 1966171168
  %v4460 = vunpack.c.0.s8 %v4459
  %v4461 = vlaneseq
  %v4462 = vshrl.u32 %v4461, 7
  %v4463 = vsub.s32 %v4460, %v4462
  %v4464 = vrot.slane %v4454, %v4463
  %v4466 = vunpack.c.l.s4 1966171168
  %v4467 = vunpack.c.0.s8 %v4466
  %v4468 = vlaneseq
  %v4469 = vshrl.u32 %v4468, 7
  %v4470 = vsub.s32 %v4467, %v4469
  %v4471 = vrot.slane %v4455, %v4470
  %v4473 = vunpack.c.l.s4 1966171168
  %v4474 = vunpack.c.0.s8 %v4473
  %v4475 = vlaneseq
  %v4476 = vshrl.u32 %v4475, 7
  %v4477 = vsub.s32 %v4474, %v4476
  %v4478 = vrot.slane %v4456, %v4477
  %v4480 = vunpack.c.l.s4 1966171168
  %v4481 = vunpack.c.0.s8 %v4480
  %v4482 = vlaneseq
  %v4483 = vshrl.u32 %v4482, 7
  %v4484 = vsub.s32 %v4481, %v4483
  %v4485 = vrot.slane %v4457, %v4484
  %v4486 = vcombine.low %v4464, %v4471
  %v4487 = vcombine.low %v4478, %v4485
  %v4489 = vunpack.c.l.s4 1966171168
  %v4490 = vunpack.c.0.s8 %v4489
  %v4491 = vlaneseq
  %v4492 = vshrl.u32 %v4491, 7
  %v4493 = vsub.s32 %v4490, %v4492
  %v4494 = vrot.slane %v4486, %v4493
  %v4496 = vunpack.c.l.s4 1966171168
  %v4497 = vunpack.c.0.s8 %v4496
  %v4498 = vlaneseq
  %v4499 = vshrl.u32 %v4498, 7
  %v4500 = vsub.s32 %v4497, %v4499
  %v4501 = vrot.slane %v4487, %v4500
  %v4502 = vcombine.low %v4494, %v4501
  %v4503 = vcombine.low %v2460, %v2464
  %v4504 = vcombine.low %v2468, %v2472
  %v4505 = vcombine.low %v2476, %v2480
  %v4506 = vcombine.low %v2484, %v2488
  %v4508 = vunpack.c.l.s4 1966171168
  %v4509 = vunpack.c.0.s8 %v4508
  %v4510 = vlaneseq
  %v4511 = vshrl.u32 %v4510, 7
  %v4512 = vsub.s32 %v4509, %v4511
  %v4513 = vrot.slane %v4503, %v4512
  %v4515 = vunpack.c.l.s4 1966171168
  %v4516 = vunpack.c.0.s8 %v4515
  %v4517 = vlaneseq
  %v4518 = vshrl.u32 %v4517, 7
  %v4519 = vsub.s32 %v4516, %v4518
  %v4520 = vrot.slane %v4504, %v4519
  %v4522 = vunpack.c.l.s4 1966171168
  %v4523 = vunpack.c.0.s8 %v4522
  %v4524 = vlaneseq
  %v4525 = vshrl.u32 %v4524, 7
  %v4526 = vsub.s32 %v4523, %v4525
  %v4527 = vrot.slane %v4505, %v4526
  %v4529 = vunpack.c.l.s4 1966171168
  %v4530 = vunpack.c.0.s8 %v4529
  %v4531 = vlaneseq
  %v4532 = vshrl.u32 %v4531, 7
  %v4533 = vsub.s32 %v4530, %v4532
  %v4534 = vrot.slane %v4506, %v4533
  %v4535 = vcombine.low %v4513, %v4520
  %v4536 = vcombine.low %v4527, %v4534
  %v4538 = vunpack.c.l.s4 1966171168
  %v4539 = vunpack.c.0.s8 %v4538
  %v4540 = vlaneseq
  %v4541 = vshrl.u32 %v4540, 7
  %v4542 = vsub.s32 %v4539, %v4541
  %v4543 = vrot.slane %v4535, %v4542
  %v4545 = vunpack.c.l.s4 1966171168
  %v4546 = vunpack.c.0.s8 %v4545
  %v4547 = vlaneseq
  %v4548 = vshrl.u32 %v4547, 7
  %v4549 = vsub.s32 %v4546, %v4548
  %v4550 = vrot.slane %v4536, %v4549
  %v4551 = vcombine.low %v4543, %v4550
  %v4552 = vcombine.low %v2492, %v2496
  %v4553 = vcombine.low %v2500, %v2504
  %v4554 = vcombine.low %v2508, %v2512
  %v4555 = vcombine.low %v2516, %v2520
  %v4557 = vunpack.c.l.s4 1966171168
  %v4558 = vunpack.c.0.s8 %v4557
  %v4559 = vlaneseq
  %v4560 = vshrl.u32 %v4559, 7
  %v4561 = vsub.s32 %v4558, %v4560
  %v4562 = vrot.slane %v4552, %v4561
  %v4564 = vunpack.c.l.s4 1966171168
  %v4565 = vunpack.c.0.s8 %v4564
  %v4566 = vlaneseq
  %v4567 = vshrl.u32 %v4566, 7
  %v4568 = vsub.s32 %v4565, %v4567
  %v4569 = vrot.slane %v4553, %v4568
  %v4571 = vunpack.c.l.s4 1966171168
  %v4572 = vunpack.c.0.s8 %v4571
  %v4573 = vlaneseq
  %v4574 = vshrl.u32 %v4573, 7
  %v4575 = vsub.s32 %v4572, %v4574
  %v4576 = vrot.slane %v4554, %v4575
  %v4578 = vunpack.c.l.s4 1966171168
  %v4579 = vunpack.c.0.s8 %v4578
  %v4580 = vlaneseq
  %v4581 = vshrl.u32 %v4580, 7
  %v4582 = vsub.s32 %v4579, %v4581
  %v4583 = vrot.slane %v4555, %v4582
  %v4584 = vcombine.low %v4562, %v4569
  %v4585 = vcombine.low %v4576, %v4583
  %v4587 = vunpack.c.l.s4 1966171168
  %v4588 = vunpack.c.0.s8 %v4587
  %v4589 = vlaneseq
  %v4590 = vshrl.u32 %v4589, 7
  %v4591 = vsub.s32 %v4588, %v4590
  %v4592 = vrot.slane %v4584, %v4591
  %v4594 = vunpack.c.l.s4 1966171168
  %v4595 = vunpack.c.0.s8 %v4594
  %v4596 = vlaneseq
  %v4597 = vshrl.u32 %v4596, 7
  %v4598 = vsub.s32 %v4595, %v4597
  %v4599 = vrot.slane %v4585, %v4598
  %v4600 = vcombine.low %v4592, %v4599
  %v4601 = vcombine.low %v2524, %v2528
  %v4602 = vcombine.low %v2532, %v2536
  %v4603 = vcombine.low %v2540, %v2544
  %v4604 = vcombine.low %v2548, %v2552
  %v4606 = vunpack.c.l.s4 1966171168
  %v4607 = vunpack.c.0.s8 %v4606
  %v4608 = vlaneseq
  %v4609 = vshrl.u32 %v4608, 7
  %v4610 = vsub.s32 %v4607, %v4609
  %v4611 = vrot.slane %v4601, %v4610
  %v4613 = vunpack.c.l.s4 1966171168
  %v4614 = vunpack.c.0.s8 %v4613
  %v4615 = vlaneseq
  %v4616 = vshrl.u32 %v4615, 7
  %v4617 = vsub.s32 %v4614, %v4616
  %v4618 = vrot.slane %v4602, %v4617
  %v4620 = vunpack.c.l.s4 1966171168
  %v4621 = vunpack.c.0.s8 %v4620
  %v4622 = vlaneseq
  %v4623 = vshrl.u32 %v4622, 7
  %v4624 = vsub.s32 %v4621, %v4623
  %v4625 = vrot.slane %v4603, %v4624
  %v4627 = vunpack.c.l.s4 1966171168
  %v4628 = vunpack.c.0.s8 %v4627
  %v4629 = vlaneseq
  %v4630 = vshrl.u32 %v4629, 7
  %v4631 = vsub.s32 %v4628, %v4630
  %v4632 = vrot.slane %v4604, %v4631
  %v4633 = vcombine.low %v4611, %v4618
  %v4634 = vcombine.low %v4625, %v4632
  %v4636 = vunpack.c.l.s4 1966171168
  %v4637 = vunpack.c.0.s8 %v4636
  %v4638 = vlaneseq
  %v4639 = vshrl.u32 %v4638, 7
  %v4640 = vsub.s32 %v4637, %v4639
  %v4641 = vrot.slane %v4633, %v4640
  %v4643 = vunpack.c.l.s4 1966171168
  %v4644 = vunpack.c.0.s8 %v4643
  %v4645 = vlaneseq
  %v4646 = vshrl.u32 %v4645, 7
  %v4647 = vsub.s32 %v4644, %v4646
  %v4648 = vrot.slane %v4634, %v4647
  %v4649 = vcombine.low %v4641, %v4648
  %v4650 = vcombine.low %v2556, %v2560
  %v4651 = vcombine.low %v2564, %v2568
  %v4652 = vcombine.low %v2572, %v2576
  %v4653 = vcombine.low %v2580, %v2584
  %v4655 = vunpack.c.l.s4 1966171168
  %v4656 = vunpack.c.0.s8 %v4655
  %v4657 = vlaneseq
  %v4658 = vshrl.u32 %v4657, 7
  %v4659 = vsub.s32 %v4656, %v4658
  %v4660 = vrot.slane %v4650, %v4659
  %v4662 = vunpack.c.l.s4 1966171168
  %v4663 = vunpack.c.0.s8 %v4662
  %v4664 = vlaneseq
  %v4665 = vshrl.u32 %v4664, 7
  %v4666 = vsub.s32 %v4663, %v4665
  %v4667 = vrot.slane %v4651, %v4666
  %v4669 = vunpack.c.l.s4 1966171168
  %v4670 = vunpack.c.0.s8 %v4669
  %v4671 = vlaneseq
  %v4672 = vshrl.u32 %v4671, 7
  %v4673 = vsub.s32 %v4670, %v4672
  %v4674 = vrot.slane %v4652, %v4673
  %v4676 = vunpack.c.l.s4 1966171168
  %v4677 = vunpack.c.0.s8 %v4676
  %v4678 = vlaneseq
  %v4679 = vshrl.u32 %v4678, 7
  %v4680 = vsub.s32 %v4677, %v4679
  %v4681 = vrot.slane %v4653, %v4680
  %v4682 = vcombine.low %v4660, %v4667
  %v4683 = vcombine.low %v4674, %v4681
  %v4685 = vunpack.c.l.s4 1966171168
  %v4686 = vunpack.c.0.s8 %v4685
  %v4687 = vlaneseq
  %v4688 = vshrl.u32 %v4687, 7
  %v4689 = vsub.s32 %v4686, %v4688
  %v4690 = vrot.slane %v4682, %v4689
  %v4692 = vunpack.c.l.s4 1966171168
  %v4693 = vunpack.c.0.s8 %v4692
  %v4694 = vlaneseq
  %v4695 = vshrl.u32 %v4694, 7
  %v4696 = vsub.s32 %v4693, %v4695
  %v4697 = vrot.slane %v4683, %v4696
  %v4698 = vcombine.low %v4690, %v4697
  %v4699 = vcombine.low %v2588, %v2592
  %v4700 = vcombine.low %v2596, %v2600
  %v4701 = vcombine.low %v2604, %v2608
  %v4702 = vcombine.low %v2612, %v2616
  %v4704 = vunpack.c.l.s4 1966171168
  %v4705 = vunpack.c.0.s8 %v4704
  %v4706 = vlaneseq
  %v4707 = vshrl.u32 %v4706, 7
  %v4708 = vsub.s32 %v4705, %v4707
  %v4709 = vrot.slane %v4699, %v4708
  %v4711 = vunpack.c.l.s4 1966171168
  %v4712 = vunpack.c.0.s8 %v4711
  %v4713 = vlaneseq
  %v4714 = vshrl.u32 %v4713, 7
  %v4715 = vsub.s32 %v4712, %v4714
  %v4716 = vrot.slane %v4700, %v4715
  %v4718 = vunpack.c.l.s4 1966171168
  %v4719 = vunpack.c.0.s8 %v4718
  %v4720 = vlaneseq
  %v4721 = vshrl.u32 %v4720, 7
  %v4722 = vsub.s32 %v4719, %v4721
  %v4723 = vrot.slane %v4701, %v4722
  %v4725 = vunpack.c.l.s4 1966171168
  %v4726 = vunpack.c.0.s8 %v4725
  %v4727 = vlaneseq
  %v4728 = vshrl.u32 %v4727, 7
  %v4729 = vsub.s32 %v4726, %v4728
  %v4730 = vrot.slane %v4702, %v4729
  %v4731 = vcombine.low %v4709, %v4716
  %v4732 = vcombine.low %v4723, %v4730
  %v4734 = vunpack.c.l.s4 1966171168
  %v4735 = vunpack.c.0.s8 %v4734
  %v4736 = vlaneseq
  %v4737 = vshrl.u32 %v4736, 7
  %v4738 = vsub.s32 %v4735, %v4737
  %v4739 = vrot.slane %v4731, %v4738
  %v4741 = vunpack.c.l.s4 1966171168
  %v4742 = vunpack.c.0.s8 %v4741
  %v4743 = vlaneseq
  %v4744 = vshrl.u32 %v4743, 7
  %v4745 = vsub.s32 %v4742, %v4744
  %v4746 = vrot.slane %v4732, %v4745
  %v4747 = vcombine.low %v4739, %v4746
  %v4748 = vcombine.low %v2620, %v2624
  %v4749 = vcombine.low %v2628, %v2632
  %v4750 = vcombine.low %v2636, %v2640
  %v4751 = vcombine.low %v2644, %v2648
  %v4753 = vunpack.c.l.s4 1966171168
  %v4754 = vunpack.c.0.s8 %v4753
  %v4755 = vlaneseq
  %v4756 = vshrl.u32 %v4755, 7
  %v4757 = vsub.s32 %v4754, %v4756
  %v4758 = vrot.slane %v4748, %v4757
  %v4760 = vunpack.c.l.s4 1966171168
  %v4761 = vunpack.c.0.s8 %v4760
  %v4762 = vlaneseq
  %v4763 = vshrl.u32 %v4762, 7
  %v4764 = vsub.s32 %v4761, %v4763
  %v4765 = vrot.slane %v4749, %v4764
  %v4767 = vunpack.c.l.s4 1966171168
  %v4768 = vunpack.c.0.s8 %v4767
  %v4769 = vlaneseq
  %v4770 = vshrl.u32 %v4769, 7
  %v4771 = vsub.s32 %v4768, %v4770
  %v4772 = vrot.slane %v4750, %v4771
  %v4774 = vunpack.c.l.s4 1966171168
  %v4775 = vunpack.c.0.s8 %v4774
  %v4776 = vlaneseq
  %v4777 = vshrl.u32 %v4776, 7
  %v4778 = vsub.s32 %v4775, %v4777
  %v4779 = vrot.slane %v4751, %v4778
  %v4780 = vcombine.low %v4758, %v4765
  %v4781 = vcombine.low %v4772, %v4779
  %v4783 = vunpack.c.l.s4 1966171168
  %v4784 = vunpack.c.0.s8 %v4783
  %v4785 = vlaneseq
  %v4786 = vshrl.u32 %v4785, 7
  %v4787 = vsub.s32 %v4784, %v4786
  %v4788 = vrot.slane %v4780, %v4787
  %v4790 = vunpack.c.l.s4 1966171168
  %v4791 = vunpack.c.0.s8 %v4790
  %v4792 = vlaneseq
  %v4793 = vshrl.u32 %v4792, 7
  %v4794 = vsub.s32 %v4791, %v4793
  %v4795 = vrot.slane %v4781, %v4794
  %v4796 = vcombine.low %v4788, %v4795
  %v4797 = vcombine.low %v2652, %v2656
  %v4798 = vcombine.low %v2660, %v2664
  %v4799 = vcombine.low %v2668, %v2672
  %v4800 = vcombine.low %v2676, %v2680
  %v4802 = vunpack.c.l.s4 1966171168
  %v4803 = vunpack.c.0.s8 %v4802
  %v4804 = vlaneseq
  %v4805 = vshrl.u32 %v4804, 7
  %v4806 = vsub.s32 %v4803, %v4805
  %v4807 = vrot.slane %v4797, %v4806
  %v4809 = vunpack.c.l.s4 1966171168
  %v4810 = vunpack.c.0.s8 %v4809
  %v4811 = vlaneseq
  %v4812 = vshrl.u32 %v4811, 7
  %v4813 = vsub.s32 %v4810, %v4812
  %v4814 = vrot.slane %v4798, %v4813
  %v4816 = vunpack.c.l.s4 1966171168
  %v4817 = vunpack.c.0.s8 %v4816
  %v4818 = vlaneseq
  %v4819 = vshrl.u32 %v4818, 7
  %v4820 = vsub.s32 %v4817, %v4819
  %v4821 = vrot.slane %v4799, %v4820
  %v4823 = vunpack.c.l.s4 1966171168
  %v4824 = vunpack.c.0.s8 %v4823
  %v4825 = vlaneseq
  %v4826 = vshrl.u32 %v4825, 7
  %v4827 = vsub.s32 %v4824, %v4826
  %v4828 = vrot.slane %v4800, %v4827
  %v4829 = vcombine.low %v4807, %v4814
  %v4830 = vcombine.low %v4821, %v4828
  %v4832 = vunpack.c.l.s4 1966171168
  %v4833 = vunpack.c.0.s8 %v4832
  %v4834 = vlaneseq
  %v4835 = vshrl.u32 %v4834, 7
  %v4836 = vsub.s32 %v4833, %v4835
  %v4837 = vrot.slane %v4829, %v4836
  %v4839 = vunpack.c.l.s4 1966171168
  %v4840 = vunpack.c.0.s8 %v4839
  %v4841 = vlaneseq
  %v4842 = vshrl.u32 %v4841, 7
  %v4843 = vsub.s32 %v4840, %v4842
  %v4844 = vrot.slane %v4830, %v4843
  %v4845 = vcombine.low %v4837, %v4844
  %v4846 = vcombine.low %v2684, %v2688
  %v4847 = vcombine.low %v2692, %v2696
  %v4848 = vcombine.low %v2700, %v2704
  %v4849 = vcombine.low %v2708, %v2712
  %v4851 = vunpack.c.l.s4 1966171168
  %v4852 = vunpack.c.0.s8 %v4851
  %v4853 = vlaneseq
  %v4854 = vshrl.u32 %v4853, 7
  %v4855 = vsub.s32 %v4852, %v4854
  %v4856 = vrot.slane %v4846, %v4855
  %v4858 = vunpack.c.l.s4 1966171168
  %v4859 = vunpack.c.0.s8 %v4858
  %v4860 = vlaneseq
  %v4861 = vshrl.u32 %v4860, 7
  %v4862 = vsub.s32 %v4859, %v4861
  %v4863 = vrot.slane %v4847, %v4862
  %v4865 = vunpack.c.l.s4 1966171168
  %v4866 = vunpack.c.0.s8 %v4865
  %v4867 = vlaneseq
  %v4868 = vshrl.u32 %v4867, 7
  %v4869 = vsub.s32 %v4866, %v4868
  %v4870 = vrot.slane %v4848, %v4869
  %v4872 = vunpack.c.l.s4 1966171168
  %v4873 = vunpack.c.0.s8 %v4872
  %v4874 = vlaneseq
  %v4875 = vshrl.u32 %v4874, 7
  %v4876 = vsub.s32 %v4873, %v4875
  %v4877 = vrot.slane %v4849, %v4876
  %v4878 = vcombine.low %v4856, %v4863
  %v4879 = vcombine.low %v4870, %v4877
  %v4881 = vunpack.c.l.s4 1966171168
  %v4882 = vunpack.c.0.s8 %v4881
  %v4883 = vlaneseq
  %v4884 = vshrl.u32 %v4883, 7
  %v4885 = vsub.s32 %v4882, %v4884
  %v4886 = vrot.slane %v4878, %v4885
  %v4888 = vunpack.c.l.s4 1966171168
  %v4889 = vunpack.c.0.s8 %v4888
  %v4890 = vlaneseq
  %v4891 = vshrl.u32 %v4890, 7
  %v4892 = vsub.s32 %v4889, %v4891
  %v4893 = vrot.slane %v4879, %v4892
  %v4894 = vcombine.low %v4886, %v4893
  %v4895 = vcombine.low %v2716, %v2720
  %v4896 = vcombine.low %v2724, %v2728
  %v4897 = vcombine.low %v2732, %v2736
  %v4898 = vcombine.low %v2740, %v2744
  %v4900 = vunpack.c.l.s4 1966171168
  %v4901 = vunpack.c.0.s8 %v4900
  %v4902 = vlaneseq
  %v4903 = vshrl.u32 %v4902, 7
  %v4904 = vsub.s32 %v4901, %v4903
  %v4905 = vrot.slane %v4895, %v4904
  %v4907 = vunpack.c.l.s4 1966171168
  %v4908 = vunpack.c.0.s8 %v4907
  %v4909 = vlaneseq
  %v4910 = vshrl.u32 %v4909, 7
  %v4911 = vsub.s32 %v4908, %v4910
  %v4912 = vrot.slane %v4896, %v4911
  %v4914 = vunpack.c.l.s4 1966171168
  %v4915 = vunpack.c.0.s8 %v4914
  %v4916 = vlaneseq
  %v4917 = vshrl.u32 %v4916, 7
  %v4918 = vsub.s32 %v4915, %v4917
  %v4919 = vrot.slane %v4897, %v4918
  %v4921 = vunpack.c.l.s4 1966171168
  %v4922 = vunpack.c.0.s8 %v4921
  %v4923 = vlaneseq
  %v4924 = vshrl.u32 %v4923, 7
  %v4925 = vsub.s32 %v4922, %v4924
  %v4926 = vrot.slane %v4898, %v4925
  %v4927 = vcombine.low %v4905, %v4912
  %v4928 = vcombine.low %v4919, %v4926
  %v4930 = vunpack.c.l.s4 1966171168
  %v4931 = vunpack.c.0.s8 %v4930
  %v4932 = vlaneseq
  %v4933 = vshrl.u32 %v4932, 7
  %v4934 = vsub.s32 %v4931, %v4933
  %v4935 = vrot.slane %v4927, %v4934
  %v4937 = vunpack.c.l.s4 1966171168
  %v4938 = vunpack.c.0.s8 %v4937
  %v4939 = vlaneseq
  %v4940 = vshrl.u32 %v4939, 7
  %v4941 = vsub.s32 %v4938, %v4940
  %v4942 = vrot.slane %v4928, %v4941
  %v4943 = vcombine.low %v4935, %v4942
  %v4944 = vcombine.low %v2748, %v2752
  %v4945 = vcombine.low %v2756, %v2760
  %v4946 = vcombine.low %v2764, %v2768
  %v4947 = vcombine.low %v2772, %v2776
  %v4949 = vunpack.c.l.s4 1966171168
  %v4950 = vunpack.c.0.s8 %v4949
  %v4951 = vlaneseq
  %v4952 = vshrl.u32 %v4951, 7
  %v4953 = vsub.s32 %v4950, %v4952
  %v4954 = vrot.slane %v4944, %v4953
  %v4956 = vunpack.c.l.s4 1966171168
  %v4957 = vunpack.c.0.s8 %v4956
  %v4958 = vlaneseq
  %v4959 = vshrl.u32 %v4958, 7
  %v4960 = vsub.s32 %v4957, %v4959
  %v4961 = vrot.slane %v4945, %v4960
  %v4963 = vunpack.c.l.s4 1966171168
  %v4964 = vunpack.c.0.s8 %v4963
  %v4965 = vlaneseq
  %v4966 = vshrl.u32 %v4965, 7
  %v4967 = vsub.s32 %v4964, %v4966
  %v4968 = vrot.slane %v4946, %v4967
  %v4970 = vunpack.c.l.s4 1966171168
  %v4971 = vunpack.c.0.s8 %v4970
  %v4972 = vlaneseq
  %v4973 = vshrl.u32 %v4972, 7
  %v4974 = vsub.s32 %v4971, %v4973
  %v4975 = vrot.slane %v4947, %v4974
  %v4976 = vcombine.low %v4954, %v4961
  %v4977 = vcombine.low %v4968, %v4975
  %v4979 = vunpack.c.l.s4 1966171168
  %v4980 = vunpack.c.0.s8 %v4979
  %v4981 = vlaneseq
  %v4982 = vshrl.u32 %v4981, 7
  %v4983 = vsub.s32 %v4980, %v4982
  %v4984 = vrot.slane %v4976, %v4983
  %v4986 = vunpack.c.l.s4 1966171168
  %v4987 = vunpack.c.0.s8 %v4986
  %v4988 = vlaneseq
  %v4989 = vshrl.u32 %v4988, 7
  %v4990 = vsub.s32 %v4987, %v4989
  %v4991 = vrot.slane %v4977, %v4990
  %v4992 = vcombine.low %v4984, %v4991
  %v4993 = vcombine.low %v2780, %v2784
  %v4994 = vcombine.low %v2788, %v2792
  %v4995 = vcombine.low %v2796, %v2800
  %v4996 = vcombine.low %v2804, %v2808
  %v4998 = vunpack.c.l.s4 1966171168
  %v4999 = vunpack.c.0.s8 %v4998
  %v5000 = vlaneseq
  %v5001 = vshrl.u32 %v5000, 7
  %v5002 = vsub.s32 %v4999, %v5001
  %v5003 = vrot.slane %v4993, %v5002
  %v5005 = vunpack.c.l.s4 1966171168
  %v5006 = vunpack.c.0.s8 %v5005
  %v5007 = vlaneseq
  %v5008 = vshrl.u32 %v5007, 7
  %v5009 = vsub.s32 %v5006, %v5008
  %v5010 = vrot.slane %v4994, %v5009
  %v5012 = vunpack.c.l.s4 1966171168
  %v5013 = vunpack.c.0.s8 %v5012
  %v5014 = vlaneseq
  %v5015 = vshrl.u32 %v5014, 7
  %v5016 = vsub.s32 %v5013, %v5015
  %v5017 = vrot.slane %v4995, %v5016
  %v5019 = vunpack.c.l.s4 1966171168
  %v5020 = vunpack.c.0.s8 %v5019
  %v5021 = vlaneseq
  %v5022 = vshrl.u32 %v5021, 7
  %v5023 = vsub.s32 %v5020, %v5022
  %v5024 = vrot.slane %v4996, %v5023
  %v5025 = vcombine.low %v5003, %v5010
  %v5026 = vcombine.low %v5017, %v5024
  %v5028 = vunpack.c.l.s4 1966171168
  %v5029 = vunpack.c.0.s8 %v5028
  %v5030 = vlaneseq
  %v5031 = vshrl.u32 %v5030, 7
  %v5032 = vsub.s32 %v5029, %v5031
  %v5033 = vrot.slane %v5025, %v5032
  %v5035 = vunpack.c.l.s4 1966171168
  %v5036 = vunpack.c.0.s8 %v5035
  %v5037 = vlaneseq
  %v5038 = vshrl.u32 %v5037, 7
  %v5039 = vsub.s32 %v5036, %v5038
  %v5040 = vrot.slane %v5026, %v5039
  %v5041 = vcombine.low %v5033, %v5040
  %v5042 = vcombine.low %v2812, %v2816
  %v5043 = vcombine.low %v2820, %v2824
  %v5044 = vcombine.low %v2828, %v2832
  %v5045 = vcombine.low %v2836, %v2840
  %v5047 = vunpack.c.l.s4 1966171168
  %v5048 = vunpack.c.0.s8 %v5047
  %v5049 = vlaneseq
  %v5050 = vshrl.u32 %v5049, 7
  %v5051 = vsub.s32 %v5048, %v5050
  %v5052 = vrot.slane %v5042, %v5051
  %v5054 = vunpack.c.l.s4 1966171168
  %v5055 = vunpack.c.0.s8 %v5054
  %v5056 = vlaneseq
  %v5057 = vshrl.u32 %v5056, 7
  %v5058 = vsub.s32 %v5055, %v5057
  %v5059 = vrot.slane %v5043, %v5058
  %v5061 = vunpack.c.l.s4 1966171168
  %v5062 = vunpack.c.0.s8 %v5061
  %v5063 = vlaneseq
  %v5064 = vshrl.u32 %v5063, 7
  %v5065 = vsub.s32 %v5062, %v5064
  %v5066 = vrot.slane %v5044, %v5065
  %v5068 = vunpack.c.l.s4 1966171168
  %v5069 = vunpack.c.0.s8 %v5068
  %v5070 = vlaneseq
  %v5071 = vshrl.u32 %v5070, 7
  %v5072 = vsub.s32 %v5069, %v5071
  %v5073 = vrot.slane %v5045, %v5072
  %v5074 = vcombine.low %v5052, %v5059
  %v5075 = vcombine.low %v5066, %v5073
  %v5077 = vunpack.c.l.s4 1966171168
  %v5078 = vunpack.c.0.s8 %v5077
  %v5079 = vlaneseq
  %v5080 = vshrl.u32 %v5079, 7
  %v5081 = vsub.s32 %v5078, %v5080
  %v5082 = vrot.slane %v5074, %v5081
  %v5084 = vunpack.c.l.s4 1966171168
  %v5085 = vunpack.c.0.s8 %v5084
  %v5086 = vlaneseq
  %v5087 = vshrl.u32 %v5086, 7
  %v5088 = vsub.s32 %v5085, %v5087
  %v5089 = vrot.slane %v5075, %v5088
  %v5090 = vcombine.low %v5082, %v5089
  %v5091 = vcombine.low %v2844, %v2848
  %v5092 = vcombine.low %v2852, %v2856
  %v5093 = vcombine.low %v2860, %v2864
  %v5094 = vcombine.low %v2868, %v2872
  %v5096 = vunpack.c.l.s4 1966171168
  %v5097 = vunpack.c.0.s8 %v5096
  %v5098 = vlaneseq
  %v5099 = vshrl.u32 %v5098, 7
  %v5100 = vsub.s32 %v5097, %v5099
  %v5101 = vrot.slane %v5091, %v5100
  %v5103 = vunpack.c.l.s4 1966171168
  %v5104 = vunpack.c.0.s8 %v5103
  %v5105 = vlaneseq
  %v5106 = vshrl.u32 %v5105, 7
  %v5107 = vsub.s32 %v5104, %v5106
  %v5108 = vrot.slane %v5092, %v5107
  %v5110 = vunpack.c.l.s4 1966171168
  %v5111 = vunpack.c.0.s8 %v5110
  %v5112 = vlaneseq
  %v5113 = vshrl.u32 %v5112, 7
  %v5114 = vsub.s32 %v5111, %v5113
  %v5115 = vrot.slane %v5093, %v5114
  %v5117 = vunpack.c.l.s4 1966171168
  %v5118 = vunpack.c.0.s8 %v5117
  %v5119 = vlaneseq
  %v5120 = vshrl.u32 %v5119, 7
  %v5121 = vsub.s32 %v5118, %v5120
  %v5122 = vrot.slane %v5094, %v5121
  %v5123 = vcombine.low %v5101, %v5108
  %v5124 = vcombine.low %v5115, %v5122
  %v5126 = vunpack.c.l.s4 1966171168
  %v5127 = vunpack.c.0.s8 %v5126
  %v5128 = vlaneseq
  %v5129 = vshrl.u32 %v5128, 7
  %v5130 = vsub.s32 %v5127, %v5129
  %v5131 = vrot.slane %v5123, %v5130
  %v5133 = vunpack.c.l.s4 1966171168
  %v5134 = vunpack.c.0.s8 %v5133
  %v5135 = vlaneseq
  %v5136 = vshrl.u32 %v5135, 7
  %v5137 = vsub.s32 %v5134, %v5136
  %v5138 = vrot.slane %v5124, %v5137
  %v5139 = vcombine.low %v5131, %v5138
  %v5140 = vcombine.low %v2876, %v2880
  %v5141 = vcombine.low %v2884, %v2888
  %v5142 = vcombine.low %v2892, %v2896
  %v5143 = vcombine.low %v2900, %v2904
  %v5145 = vunpack.c.l.s4 1966171168
  %v5146 = vunpack.c.0.s8 %v5145
  %v5147 = vlaneseq
  %v5148 = vshrl.u32 %v5147, 7
  %v5149 = vsub.s32 %v5146, %v5148
  %v5150 = vrot.slane %v5140, %v5149
  %v5152 = vunpack.c.l.s4 1966171168
  %v5153 = vunpack.c.0.s8 %v5152
  %v5154 = vlaneseq
  %v5155 = vshrl.u32 %v5154, 7
  %v5156 = vsub.s32 %v5153, %v5155
  %v5157 = vrot.slane %v5141, %v5156
  %v5159 = vunpack.c.l.s4 1966171168
  %v5160 = vunpack.c.0.s8 %v5159
  %v5161 = vlaneseq
  %v5162 = vshrl.u32 %v5161, 7
  %v5163 = vsub.s32 %v5160, %v5162
  %v5164 = vrot.slane %v5142, %v5163
  %v5166 = vunpack.c.l.s4 1966171168
  %v5167 = vunpack.c.0.s8 %v5166
  %v5168 = vlaneseq
  %v5169 = vshrl.u32 %v5168, 7
  %v5170 = vsub.s32 %v5167, %v5169
  %v5171 = vrot.slane %v5143, %v5170
  %v5172 = vcombine.low %v5150, %v5157
  %v5173 = vcombine.low %v5164, %v5171
  %v5175 = vunpack.c.l.s4 1966171168
  %v5176 = vunpack.c.0.s8 %v5175
  %v5177 = vlaneseq
  %v5178 = vshrl.u32 %v5177, 7
  %v5179 = vsub.s32 %v5176, %v5178
  %v5180 = vrot.slane %v5172, %v5179
  %v5182 = vunpack.c.l.s4 1966171168
  %v5183 = vunpack.c.0.s8 %v5182
  %v5184 = vlaneseq
  %v5185 = vshrl.u32 %v5184, 7
  %v5186 = vsub.s32 %v5183, %v5185
  %v5187 = vrot.slane %v5173, %v5186
  %v5188 = vcombine.low %v5180, %v5187
  %v5189 = vcombine.low %v2908, %v2912
  %v5190 = vcombine.low %v2916, %v2920
  %v5191 = vcombine.low %v2924, %v2928
  %v5192 = vcombine.low %v2932, %v2936
  %v5194 = vunpack.c.l.s4 1966171168
  %v5195 = vunpack.c.0.s8 %v5194
  %v5196 = vlaneseq
  %v5197 = vshrl.u32 %v5196, 7
  %v5198 = vsub.s32 %v5195, %v5197
  %v5199 = vrot.slane %v5189, %v5198
  %v5201 = vunpack.c.l.s4 1966171168
  %v5202 = vunpack.c.0.s8 %v5201
  %v5203 = vlaneseq
  %v5204 = vshrl.u32 %v5203, 7
  %v5205 = vsub.s32 %v5202, %v5204
  %v5206 = vrot.slane %v5190, %v5205
  %v5208 = vunpack.c.l.s4 1966171168
  %v5209 = vunpack.c.0.s8 %v5208
  %v5210 = vlaneseq
  %v5211 = vshrl.u32 %v5210, 7
  %v5212 = vsub.s32 %v5209, %v5211
  %v5213 = vrot.slane %v5191, %v5212
  %v5215 = vunpack.c.l.s4 1966171168
  %v5216 = vunpack.c.0.s8 %v5215
  %v5217 = vlaneseq
  %v5218 = vshrl.u32 %v5217, 7
  %v5219 = vsub.s32 %v5216, %v5218
  %v5220 = vrot.slane %v5192, %v5219
  %v5221 = vcombine.low %v5199, %v5206
  %v5222 = vcombine.low %v5213, %v5220
  %v5224 = vunpack.c.l.s4 1966171168
  %v5225 = vunpack.c.0.s8 %v5224
  %v5226 = vlaneseq
  %v5227 = vshrl.u32 %v5226, 7
  %v5228 = vsub.s32 %v5225, %v5227
  %v5229 = vrot.slane %v5221, %v5228
  %v5231 = vunpack.c.l.s4 1966171168
  %v5232 = vunpack.c.0.s8 %v5231
  %v5233 = vlaneseq
  %v5234 = vshrl.u32 %v5233, 7
  %v5235 = vsub.s32 %v5232, %v5234
  %v5236 = vrot.slane %v5222, %v5235
  %v5237 = vcombine.low %v5229, %v5236
  %v5238 = vcombine.low %v2940, %v2944
  %v5239 = vcombine.low %v2948, %v2952
  %v5240 = vcombine.low %v2956, %v2960
  %v5241 = vcombine.low %v2964, %v2968
  %v5243 = vunpack.c.l.s4 1966171168
  %v5244 = vunpack.c.0.s8 %v5243
  %v5245 = vlaneseq
  %v5246 = vshrl.u32 %v5245, 7
  %v5247 = vsub.s32 %v5244, %v5246
  %v5248 = vrot.slane %v5238, %v5247
  %v5250 = vunpack.c.l.s4 1966171168
  %v5251 = vunpack.c.0.s8 %v5250
  %v5252 = vlaneseq
  %v5253 = vshrl.u32 %v5252, 7
  %v5254 = vsub.s32 %v5251, %v5253
  %v5255 = vrot.slane %v5239, %v5254
  %v5257 = vunpack.c.l.s4 1966171168
  %v5258 = vunpack.c.0.s8 %v5257
  %v5259 = vlaneseq
  %v5260 = vshrl.u32 %v5259, 7
  %v5261 = vsub.s32 %v5258, %v5260
  %v5262 = vrot.slane %v5240, %v5261
  %v5264 = vunpack.c.l.s4 1966171168
  %v5265 = vunpack.c.0.s8 %v5264
  %v5266 = vlaneseq
  %v5267 = vshrl.u32 %v5266, 7
  %v5268 = vsub.s32 %v5265, %v5267
  %v5269 = vrot.slane %v5241, %v5268
  %v5270 = vcombine.low %v5248, %v5255
  %v5271 = vcombine.low %v5262, %v5269
  %v5273 = vunpack.c.l.s4 1966171168
  %v5274 = vunpack.c.0.s8 %v5273
  %v5275 = vlaneseq
  %v5276 = vshrl.u32 %v5275, 7
  %v5277 = vsub.s32 %v5274, %v5276
  %v5278 = vrot.slane %v5270, %v5277
  %v5280 = vunpack.c.l.s4 1966171168
  %v5281 = vunpack.c.0.s8 %v5280
  %v5282 = vlaneseq
  %v5283 = vshrl.u32 %v5282, 7
  %v5284 = vsub.s32 %v5281, %v5283
  %v5285 = vrot.slane %v5271, %v5284
  %v5286 = vcombine.low %v5278, %v5285
  %v5287 = vcombine.low %v2972, %v2976
  %v5288 = vcombine.low %v2980, %v2984
  %v5289 = vcombine.low %v2988, %v2992
  %v5290 = vcombine.low %v2996, %v3000
  %v5292 = vunpack.c.l.s4 1966171168
  %v5293 = vunpack.c.0.s8 %v5292
  %v5294 = vlaneseq
  %v5295 = vshrl.u32 %v5294, 7
  %v5296 = vsub.s32 %v5293, %v5295
  %v5297 = vrot.slane %v5287, %v5296
  %v5299 = vunpack.c.l.s4 1966171168
  %v5300 = vunpack.c.0.s8 %v5299
  %v5301 = vlaneseq
  %v5302 = vshrl.u32 %v5301, 7
  %v5303 = vsub.s32 %v5300, %v5302
  %v5304 = vrot.slane %v5288, %v5303
  %v5306 = vunpack.c.l.s4 1966171168
  %v5307 = vunpack.c.0.s8 %v5306
  %v5308 = vlaneseq
  %v5309 = vshrl.u32 %v5308, 7
  %v5310 = vsub.s32 %v5307, %v5309
  %v5311 = vrot.slane %v5289, %v5310
  %v5313 = vunpack.c.l.s4 1966171168
  %v5314 = vunpack.c.0.s8 %v5313
  %v5315 = vlaneseq
  %v5316 = vshrl.u32 %v5315, 7
  %v5317 = vsub.s32 %v5314, %v5316
  %v5318 = vrot.slane %v5290, %v5317
  %v5319 = vcombine.low %v5297, %v5304
  %v5320 = vcombine.low %v5311, %v5318
  %v5322 = vunpack.c.l.s4 1966171168
  %v5323 = vunpack.c.0.s8 %v5322
  %v5324 = vlaneseq
  %v5325 = vshrl.u32 %v5324, 7
  %v5326 = vsub.s32 %v5323, %v5325
  %v5327 = vrot.slane %v5319, %v5326
  %v5329 = vunpack.c.l.s4 1966171168
  %v5330 = vunpack.c.0.s8 %v5329
  %v5331 = vlaneseq
  %v5332 = vshrl.u32 %v5331, 7
  %v5333 = vsub.s32 %v5330, %v5332
  %v5334 = vrot.slane %v5320, %v5333
  %v5335 = vcombine.low %v5327, %v5334
  %v5336 = vcombine.low %v3004, %v3008
  %v5337 = vcombine.low %v3012, %v3016
  %v5338 = vcombine.low %v3020, %v3024
  %v5339 = vcombine.low %v3028, %v3032
  %v5341 = vunpack.c.l.s4 1966171168
  %v5342 = vunpack.c.0.s8 %v5341
  %v5343 = vlaneseq
  %v5344 = vshrl.u32 %v5343, 7
  %v5345 = vsub.s32 %v5342, %v5344
  %v5346 = vrot.slane %v5336, %v5345
  %v5348 = vunpack.c.l.s4 1966171168
  %v5349 = vunpack.c.0.s8 %v5348
  %v5350 = vlaneseq
  %v5351 = vshrl.u32 %v5350, 7
  %v5352 = vsub.s32 %v5349, %v5351
  %v5353 = vrot.slane %v5337, %v5352
  %v5355 = vunpack.c.l.s4 1966171168
  %v5356 = vunpack.c.0.s8 %v5355
  %v5357 = vlaneseq
  %v5358 = vshrl.u32 %v5357, 7
  %v5359 = vsub.s32 %v5356, %v5358
  %v5360 = vrot.slane %v5338, %v5359
  %v5362 = vunpack.c.l.s4 1966171168
  %v5363 = vunpack.c.0.s8 %v5362
  %v5364 = vlaneseq
  %v5365 = vshrl.u32 %v5364, 7
  %v5366 = vsub.s32 %v5363, %v5365
  %v5367 = vrot.slane %v5339, %v5366
  %v5368 = vcombine.low %v5346, %v5353
  %v5369 = vcombine.low %v5360, %v5367
  %v5371 = vunpack.c.l.s4 1966171168
  %v5372 = vunpack.c.0.s8 %v5371
  %v5373 = vlaneseq
  %v5374 = vshrl.u32 %v5373, 7
  %v5375 = vsub.s32 %v5372, %v5374
  %v5376 = vrot.slane %v5368, %v5375
  %v5378 = vunpack.c.l.s4 1966171168
  %v5379 = vunpack.c.0.s8 %v5378
  %v5380 = vlaneseq
  %v5381 = vshrl.u32 %v5380, 7
  %v5382 = vsub.s32 %v5379, %v5381
  %v5383 = vrot.slane %v5369, %v5382
  %v5384 = vcombine.low %v5376, %v5383
  %5385 = vset.pattern.permute.xlu0 0
  %5386 = vperm.xlu0 %5385, %v3081
  %v5387 = vpop.permute.xlu0 %5386
  %5388 = vset.pattern.permute.xlu0 0
  %5389 = vperm.xlu0 %5388, %v3130
  %v5390 = vpop.permute.xlu0 %5389
  %5391 = vset.pattern.permute.xlu0 0
  %5392 = vperm.xlu0 %5391, %v3179
  %v5393 = vpop.permute.xlu0 %5392
  %5394 = vset.pattern.permute.xlu0 0
  %5395 = vperm.xlu0 %5394, %v3228
  %v5396 = vpop.permute.xlu0 %5395
  %5397 = vset.pattern.permute.xlu0 0
  %5398 = vperm.xlu0 %5397, %v3277
  %v5399 = vpop.permute.xlu0 %5398
  %5400 = vset.pattern.permute.xlu0 0
  %5401 = vperm.xlu0 %5400, %v3326
  %v5402 = vpop.permute.xlu0 %5401
  %5403 = vset.pattern.permute.xlu0 0
  %5404 = vperm.xlu0 %5403, %v3375
  %v5405 = vpop.permute.xlu0 %5404
  %5406 = vset.pattern.permute.xlu0 0
  %5407 = vperm.xlu0 %5406, %v3424
  %v5408 = vpop.permute.xlu0 %5407
  %5409 = vset.pattern.permute.xlu0 0
  %5410 = vperm.xlu0 %5409, %v3473
  %v5411 = vpop.permute.xlu0 %5410
  %5412 = vset.pattern.permute.xlu0 0
  %5413 = vperm.xlu0 %5412, %v3522
  %v5414 = vpop.permute.xlu0 %5413
  %5415 = vset.pattern.permute.xlu0 0
  %5416 = vperm.xlu0 %5415, %v3571
  %v5417 = vpop.permute.xlu0 %5416
  %5418 = vset.pattern.permute.xlu0 0
  %5419 = vperm.xlu0 %5418, %v3620
  %v5420 = vpop.permute.xlu0 %5419
  %5421 = vset.pattern.permute.xlu0 0
  %5422 = vperm.xlu0 %5421, %v3669
  %v5423 = vpop.permute.xlu0 %5422
  %5424 = vset.pattern.permute.xlu0 0
  %5425 = vperm.xlu0 %5424, %v3718
  %v5426 = vpop.permute.xlu0 %5425
  %5427 = vset.pattern.permute.xlu0 0
  %5428 = vperm.xlu0 %5427, %v3767
  %v5429 = vpop.permute.xlu0 %5428
  %5430 = vset.pattern.permute.xlu0 0
  %5431 = vperm.xlu0 %5430, %v3816
  %v5432 = vpop.permute.xlu0 %5431
  %5433 = vset.pattern.permute.xlu0 0
  %5434 = vperm.xlu0 %5433, %v3865
  %v5435 = vpop.permute.xlu0 %5434
  %5436 = vset.pattern.permute.xlu0 0
  %5437 = vperm.xlu0 %5436, %v3914
  %v5438 = vpop.permute.xlu0 %5437
  %5439 = vset.pattern.permute.xlu0 0
  %5440 = vperm.xlu0 %5439, %v3963
  %v5441 = vpop.permute.xlu0 %5440
  %5442 = vset.pattern.permute.xlu0 0
  %5443 = vperm.xlu0 %5442, %v4012
  %v5444 = vpop.permute.xlu0 %5443
  %5445 = vset.pattern.permute.xlu0 0
  %5446 = vperm.xlu0 %5445, %v4061
  %v5447 = vpop.permute.xlu0 %5446
  %5448 = vset.pattern.permute.xlu0 0
  %5449 = vperm.xlu0 %5448, %v4110
  %v5450 = vpop.permute.xlu0 %5449
  %5451 = vset.pattern.permute.xlu0 0
  %5452 = vperm.xlu0 %5451, %v4159
  %v5453 = vpop.permute.xlu0 %5452
  %5454 = vset.pattern.permute.xlu0 0
  %5455 = vperm.xlu0 %5454, %v4208
  %v5456 = vpop.permute.xlu0 %5455
  %5457 = vset.pattern.permute.xlu0 0
  %5458 = vperm.xlu0 %5457, %v4257
  %v5459 = vpop.permute.xlu0 %5458
  %5460 = vset.pattern.permute.xlu0 0
  %5461 = vperm.xlu0 %5460, %v4306
  %v5462 = vpop.permute.xlu0 %5461
  %5463 = vset.pattern.permute.xlu0 0
  %5464 = vperm.xlu0 %5463, %v4355
  %v5465 = vpop.permute.xlu0 %5464
  %5466 = vset.pattern.permute.xlu0 0
  %5467 = vperm.xlu0 %5466, %v4404
  %v5468 = vpop.permute.xlu0 %5467
  %5469 = vset.pattern.permute.xlu0 0
  %5470 = vperm.xlu0 %5469, %v4453
  %v5471 = vpop.permute.xlu0 %5470
  %5472 = vset.pattern.permute.xlu0 0
  %5473 = vperm.xlu0 %5472, %v4502
  %v5474 = vpop.permute.xlu0 %5473
  %5475 = vset.pattern.permute.xlu0 0
  %5476 = vperm.xlu0 %5475, %v4551
  %v5477 = vpop.permute.xlu0 %5476
  %5478 = vset.pattern.permute.xlu0 0
  %5479 = vperm.xlu0 %5478, %v4600
  %v5480 = vpop.permute.xlu0 %5479
  %5481 = vset.pattern.permute.xlu0 0
  %5482 = vperm.xlu0 %5481, %v4649
  %v5483 = vpop.permute.xlu0 %5482
  %5484 = vset.pattern.permute.xlu0 0
  %5485 = vperm.xlu0 %5484, %v4698
  %v5486 = vpop.permute.xlu0 %5485
  %5487 = vset.pattern.permute.xlu0 0
  %5488 = vperm.xlu0 %5487, %v4747
  %v5489 = vpop.permute.xlu0 %5488
  %5490 = vset.pattern.permute.xlu0 0
  %5491 = vperm.xlu0 %5490, %v4796
  %v5492 = vpop.permute.xlu0 %5491
  %5493 = vset.pattern.permute.xlu0 0
  %5494 = vperm.xlu0 %5493, %v4845
  %v5495 = vpop.permute.xlu0 %5494
  %5496 = vset.pattern.permute.xlu0 0
  %5497 = vperm.xlu0 %5496, %v4894
  %v5498 = vpop.permute.xlu0 %5497
  %5499 = vset.pattern.permute.xlu0 0
  %5500 = vperm.xlu0 %5499, %v4943
  %v5501 = vpop.permute.xlu0 %5500
  %5502 = vset.pattern.permute.xlu0 0
  %5503 = vperm.xlu0 %5502, %v4992
  %v5504 = vpop.permute.xlu0 %5503
  %5505 = vset.pattern.permute.xlu0 0
  %5506 = vperm.xlu0 %5505, %v5041
  %v5507 = vpop.permute.xlu0 %5506
  %5508 = vset.pattern.permute.xlu0 0
  %5509 = vperm.xlu0 %5508, %v5090
  %v5510 = vpop.permute.xlu0 %5509
  %5511 = vset.pattern.permute.xlu0 0
  %5512 = vperm.xlu0 %5511, %v5139
  %v5513 = vpop.permute.xlu0 %5512
  %5514 = vset.pattern.permute.xlu0 0
  %5515 = vperm.xlu0 %5514, %v5188
  %v5516 = vpop.permute.xlu0 %5515
  %5517 = vset.pattern.permute.xlu0 0
  %5518 = vperm.xlu0 %5517, %v5237
  %v5519 = vpop.permute.xlu0 %5518
  %5520 = vset.pattern.permute.xlu0 0
  %5521 = vperm.xlu0 %5520, %v5286
  %v5522 = vpop.permute.xlu0 %5521
  %5523 = vset.pattern.permute.xlu0 0
  %5524 = vperm.xlu0 %5523, %v5335
  %v5525 = vpop.permute.xlu0 %5524
  %5526 = vset.pattern.permute.xlu0 0
  %5527 = vperm.xlu0 %5526, %v5384
  %v5528 = vpop.permute.xlu0 %5527
  %v5529 = vlaneseq
  %v5530 = vand.u32 %v5529, 127
  %v5531 = vlaneseq
  %v5532 = vshrl.u32 %v5531, 7
  %v5533 = vsub.s32 %v5530, %v5532
  %v5534 = vrot.slane %v5387, %v5533
  %v5535 = vadd.s32 %v5530, 4294967288
  %v5536 = vlaneseq
  %v5537 = vshrl.u32 %v5536, 7
  %v5538 = vsub.s32 %v5535, %v5537
  %v5539 = vrot.slane %v5390, %v5538
  %vm5540 = vcmask 130112
  %v5541 = vsel %vm5540, %v5539, %v5534
  %v5542 = vadd.s32 %v5530, 4294967280
  %v5543 = vlaneseq
  %v5544 = vshrl.u32 %v5543, 7
  %v5545 = vsub.s32 %v5542, %v5544
  %v5546 = vrot.slane %v5393, %v5545
  %vm5547 = vcmask 195712
  %v5548 = vsel %vm5547, %v5546, %v5541
  %v5549 = vadd.s32 %v5530, 4294967272
  %v5550 = vlaneseq
  %v5551 = vshrl.u32 %v5550, 7
  %v5552 = vsub.s32 %v5549, %v5551
  %v5553 = vrot.slane %v5396, %v5552
  %vm5554 = vcmask 261312
  %v5555 = vsel %vm5554, %v5553, %v5548
  %v5556 = vadd.s32 %v5530, 4294967264
  %v5557 = vlaneseq
  %v5558 = vshrl.u32 %v5557, 7
  %v5559 = vsub.s32 %v5556, %v5558
  %v5560 = vrot.slane %v5399, %v5559
  %vm5561 = vcmask 326912
  %v5562 = vsel %vm5561, %v5560, %v5555
  %v5563 = vadd.s32 %v5530, 4294967256
  %v5564 = vlaneseq
  %v5565 = vshrl.u32 %v5564, 7
  %v5566 = vsub.s32 %v5563, %v5565
  %v5567 = vrot.slane %v5402, %v5566
  %vm5568 = vcmask 392512
  %v5569 = vsel %vm5568, %v5567, %v5562
  %v5570 = vadd.s32 %v5530, 4294967248
  %v5571 = vlaneseq
  %v5572 = vshrl.u32 %v5571, 7
  %v5573 = vsub.s32 %v5570, %v5572
  %v5574 = vrot.slane %v5405, %v5573
  %vm5575 = vcmask 458112
  %v5576 = vsel %vm5575, %v5574, %v5569
  %v5577 = vadd.s32 %v5530, 4294967240
  %v5578 = vlaneseq
  %v5579 = vshrl.u32 %v5578, 7
  %v5580 = vsub.s32 %v5577, %v5579
  %v5581 = vrot.slane %v5408, %v5580
  %vm5582 = vcmask 523712
  %v5583 = vsel %vm5582, %v5581, %v5576
  %v5584 = vadd.s32 %v5530, 4294967232
  %v5585 = vlaneseq
  %v5586 = vshrl.u32 %v5585, 7
  %v5587 = vsub.s32 %v5584, %v5586
  %v5588 = vrot.slane %v5411, %v5587
  %vm5589 = vcmask 589312
  %v5590 = vsel %vm5589, %v5588, %v5583
  %v5591 = vadd.s32 %v5530, 4294967224
  %v5592 = vlaneseq
  %v5593 = vshrl.u32 %v5592, 7
  %v5594 = vsub.s32 %v5591, %v5593
  %v5595 = vrot.slane %v5414, %v5594
  %vm5596 = vcmask 654912
  %v5597 = vsel %vm5596, %v5595, %v5590
  %v5598 = vadd.s32 %v5530, 4294967216
  %v5599 = vlaneseq
  %v5600 = vshrl.u32 %v5599, 7
  %v5601 = vsub.s32 %v5598, %v5600
  %v5602 = vrot.slane %v5417, %v5601
  %vm5603 = vcmask 720512
  %v5604 = vsel %vm5603, %v5602, %v5597
  %v5605 = vadd.s32 %v5530, 4294967208
  %v5606 = vlaneseq
  %v5607 = vshrl.u32 %v5606, 7
  %v5608 = vsub.s32 %v5605, %v5607
  %v5609 = vrot.slane %v5420, %v5608
  %vm5610 = vcmask 786112
  %v5611 = vsel %vm5610, %v5609, %v5604
  %v5612 = vadd.s32 %v5530, 4294967200
  %v5613 = vlaneseq
  %v5614 = vshrl.u32 %v5613, 7
  %v5615 = vsub.s32 %v5612, %v5614
  %v5616 = vrot.slane %v5423, %v5615
  %vm5617 = vcmask 851712
  %v5618 = vsel %vm5617, %v5616, %v5611
  %v5619 = vadd.s32 %v5530, 4294967192
  %v5620 = vlaneseq
  %v5621 = vshrl.u32 %v5620, 7
  %v5622 = vsub.s32 %v5619, %v5621
  %v5623 = vrot.slane %v5426, %v5622
  %vm5624 = vcmask 917312
  %v5625 = vsel %vm5624, %v5623, %v5618
  %v5626 = vadd.s32 %v5530, 4294967184
  %v5627 = vlaneseq
  %v5628 = vshrl.u32 %v5627, 7
  %v5629 = vsub.s32 %v5626, %v5628
  %v5630 = vrot.slane %v5429, %v5629
  %vm5631 = vcmask 982912
  %v5632 = vsel %vm5631, %v5630, %v5625
  %v5633 = vadd.s32 %v5530, 4294967176
  %v5634 = vlaneseq
  %v5635 = vshrl.u32 %v5634, 7
  %v5636 = vsub.s32 %v5633, %v5635
  %v5637 = vrot.slane %v5432, %v5636
  %vm5638 = vcmask 1048512
  %v5639 = vsel %vm5638, %v5637, %v5632
  %v5640 = vlaneseq
  %v5641 = vshrl.u32 %v5640, 7
  %v5642 = vsub.s32 %v5530, %v5641
  %v5643 = vrot.slane %v5435, %v5642
  %v5644 = vlaneseq
  %v5645 = vshrl.u32 %v5644, 7
  %v5646 = vsub.s32 %v5535, %v5645
  %v5647 = vrot.slane %v5438, %v5646
  %v5648 = vsel %vm5540, %v5647, %v5643
  %v5649 = vlaneseq
  %v5650 = vshrl.u32 %v5649, 7
  %v5651 = vsub.s32 %v5542, %v5650
  %v5652 = vrot.slane %v5441, %v5651
  %v5653 = vsel %vm5547, %v5652, %v5648
  %v5654 = vlaneseq
  %v5655 = vshrl.u32 %v5654, 7
  %v5656 = vsub.s32 %v5549, %v5655
  %v5657 = vrot.slane %v5444, %v5656
  %v5658 = vsel %vm5554, %v5657, %v5653
  %v5659 = vlaneseq
  %v5660 = vshrl.u32 %v5659, 7
  %v5661 = vsub.s32 %v5556, %v5660
  %v5662 = vrot.slane %v5447, %v5661
  %v5663 = vsel %vm5561, %v5662, %v5658
  %v5664 = vlaneseq
  %v5665 = vshrl.u32 %v5664, 7
  %v5666 = vsub.s32 %v5563, %v5665
  %v5667 = vrot.slane %v5450, %v5666
  %v5668 = vsel %vm5568, %v5667, %v5663
  %v5669 = vlaneseq
  %v5670 = vshrl.u32 %v5669, 7
  %v5671 = vsub.s32 %v5570, %v5670
  %v5672 = vrot.slane %v5453, %v5671
  %v5673 = vsel %vm5575, %v5672, %v5668
  %v5674 = vlaneseq
  %v5675 = vshrl.u32 %v5674, 7
  %v5676 = vsub.s32 %v5577, %v5675
  %v5677 = vrot.slane %v5456, %v5676
  %v5678 = vsel %vm5582, %v5677, %v5673
  %v5679 = vlaneseq
  %v5680 = vshrl.u32 %v5679, 7
  %v5681 = vsub.s32 %v5584, %v5680
  %v5682 = vrot.slane %v5459, %v5681
  %v5683 = vsel %vm5589, %v5682, %v5678
  %v5684 = vlaneseq
  %v5685 = vshrl.u32 %v5684, 7
  %v5686 = vsub.s32 %v5591, %v5685
  %v5687 = vrot.slane %v5462, %v5686
  %v5688 = vsel %vm5596, %v5687, %v5683
  %v5689 = vlaneseq
  %v5690 = vshrl.u32 %v5689, 7
  %v5691 = vsub.s32 %v5598, %v5690
  %v5692 = vrot.slane %v5465, %v5691
  %v5693 = vsel %vm5603, %v5692, %v5688
  %v5694 = vlaneseq
  %v5695 = vshrl.u32 %v5694, 7
  %v5696 = vsub.s32 %v5605, %v5695
  %v5697 = vrot.slane %v5468, %v5696
  %v5698 = vsel %vm5610, %v5697, %v5693
  %v5699 = vlaneseq
  %v5700 = vshrl.u32 %v5699, 7
  %v5701 = vsub.s32 %v5612, %v5700
  %v5702 = vrot.slane %v5471, %v5701
  %v5703 = vsel %vm5617, %v5702, %v5698
  %v5704 = vlaneseq
  %v5705 = vshrl.u32 %v5704, 7
  %v5706 = vsub.s32 %v5619, %v5705
  %v5707 = vrot.slane %v5474, %v5706
  %v5708 = vsel %vm5624, %v5707, %v5703
  %v5709 = vlaneseq
  %v5710 = vshrl.u32 %v5709, 7
  %v5711 = vsub.s32 %v5626, %v5710
  %v5712 = vrot.slane %v5477, %v5711
  %v5713 = vsel %vm5631, %v5712, %v5708
  %v5714 = vlaneseq
  %v5715 = vshrl.u32 %v5714, 7
  %v5716 = vsub.s32 %v5633, %v5715
  %v5717 = vrot.slane %v5480, %v5716
  %v5718 = vsel %vm5638, %v5717, %v5713
  %v5719 = vlaneseq
  %v5720 = vshrl.u32 %v5719, 7
  %v5721 = vsub.s32 %v5530, %v5720
  %v5722 = vrot.slane %v5483, %v5721
  %v5723 = vlaneseq
  %v5724 = vshrl.u32 %v5723, 7
  %v5725 = vsub.s32 %v5535, %v5724
  %v5726 = vrot.slane %v5486, %v5725
  %v5727 = vsel %vm5540, %v5726, %v5722
  %v5728 = vlaneseq
  %v5729 = vshrl.u32 %v5728, 7
  %v5730 = vsub.s32 %v5542, %v5729
  %v5731 = vrot.slane %v5489, %v5730
  %v5732 = vsel %vm5547, %v5731, %v5727
  %v5733 = vlaneseq
  %v5734 = vshrl.u32 %v5733, 7
  %v5735 = vsub.s32 %v5549, %v5734
  %v5736 = vrot.slane %v5492, %v5735
  %v5737 = vsel %vm5554, %v5736, %v5732
  %v5738 = vlaneseq
  %v5739 = vshrl.u32 %v5738, 7
  %v5740 = vsub.s32 %v5556, %v5739
  %v5741 = vrot.slane %v5495, %v5740
  %v5742 = vsel %vm5561, %v5741, %v5737
  %v5743 = vlaneseq
  %v5744 = vshrl.u32 %v5743, 7
  %v5745 = vsub.s32 %v5563, %v5744
  %v5746 = vrot.slane %v5498, %v5745
  %v5747 = vsel %vm5568, %v5746, %v5742
  %v5748 = vlaneseq
  %v5749 = vshrl.u32 %v5748, 7
  %v5750 = vsub.s32 %v5570, %v5749
  %v5751 = vrot.slane %v5501, %v5750
  %v5752 = vsel %vm5575, %v5751, %v5747
  %v5753 = vlaneseq
  %v5754 = vshrl.u32 %v5753, 7
  %v5755 = vsub.s32 %v5577, %v5754
  %v5756 = vrot.slane %v5504, %v5755
  %v5757 = vsel %vm5582, %v5756, %v5752
  %v5758 = vlaneseq
  %v5759 = vshrl.u32 %v5758, 7
  %v5760 = vsub.s32 %v5584, %v5759
  %v5761 = vrot.slane %v5507, %v5760
  %v5762 = vsel %vm5589, %v5761, %v5757
  %v5763 = vlaneseq
  %v5764 = vshrl.u32 %v5763, 7
  %v5765 = vsub.s32 %v5591, %v5764
  %v5766 = vrot.slane %v5510, %v5765
  %v5767 = vsel %vm5596, %v5766, %v5762
  %v5768 = vlaneseq
  %v5769 = vshrl.u32 %v5768, 7
  %v5770 = vsub.s32 %v5598, %v5769
  %v5771 = vrot.slane %v5513, %v5770
  %v5772 = vsel %vm5603, %v5771, %v5767
  %v5773 = vlaneseq
  %v5774 = vshrl.u32 %v5773, 7
  %v5775 = vsub.s32 %v5605, %v5774
  %v5776 = vrot.slane %v5516, %v5775
  %v5777 = vsel %vm5610, %v5776, %v5772
  %v5778 = vlaneseq
  %v5779 = vshrl.u32 %v5778, 7
  %v5780 = vsub.s32 %v5612, %v5779
  %v5781 = vrot.slane %v5519, %v5780
  %v5782 = vsel %vm5617, %v5781, %v5777
  %v5783 = vlaneseq
  %v5784 = vshrl.u32 %v5783, 7
  %v5785 = vsub.s32 %v5619, %v5784
  %v5786 = vrot.slane %v5522, %v5785
  %v5787 = vsel %vm5624, %v5786, %v5782
  %v5788 = vlaneseq
  %v5789 = vshrl.u32 %v5788, 7
  %v5790 = vsub.s32 %v5626, %v5789
  %v5791 = vrot.slane %v5525, %v5790
  %v5792 = vsel %vm5631, %v5791, %v5787
  %v5793 = vlaneseq
  %v5794 = vshrl.u32 %v5793, 7
  %v5795 = vsub.s32 %v5633, %v5794
  %v5796 = vrot.slane %v5528, %v5795
  %v5797 = vsel %vm5638, %v5796, %v5792
  %v5798 = vcombine.low %v5639, %v5718
  %v5800 = vunpack.c.l.s4 1966171168
  %v5801 = vunpack.c.0.s8 %v5800
  %v5802 = vlaneseq
  %v5803 = vshrl.u32 %v5802, 7
  %v5804 = vsub.s32 %v5801, %v5803
  %v5805 = vrot.slane %v5798, %v5804
  %v5807 = vunpack.c.l.s4 1966171168
  %v5808 = vunpack.c.0.s8 %v5807
  %v5809 = vlaneseq
  %v5810 = vshrl.u32 %v5809, 7
  %v5811 = vsub.s32 %v5808, %v5810
  %v5812 = vrot.slane %v5797, %v5811
  %v5813 = vcombine.low %v5805, %v5812
  %v5815 = vunpack.c.l.s4 1966171168
  %v5816 = vunpack.c.0.s8 %v5815
  %v5817 = vlaneseq
  %v5818 = vshrl.u32 %v5817, 7
  %v5819 = vsub.s32 %v5816, %v5818
  %v5820 = vrot.slane %v5813, %v5819
  %v5822 = vlaneseq
  %vm5823 = vcmp.ge.s32.totalorder %v5822, 0
  %vm5824 = vcmp.lt.s32.totalorder %v5822, 384
  %vm5825 = vmand %vm5823, %vm5824
  %5826 = vst.msk [vmem:[%s7] sm:$0x7] %vm5825, %v5820
  // Predicated region
  $region30: #{simple_ffn_forward.1} parent=0 // pred_check
    _
  $region31: #{simple_ffn_forward.1} parent=0 // pred_check_branch
    %5828 = sbr.rel (0) target = $region33
  $region32: #{simple_ffn_forward.1} parent=0 // pred_region
    _
  $region33: #{simple_ffn_forward.1} parent=0 // pred_fallthru
    _
  // Predicated region
  $region34: #{simple_ffn_forward.1} parent=0 // pred_check
    _
  $region35: #{simple_ffn_forward.1} parent=0 // pred_check_branch
    %5830 = sbr.rel (0) target = $region37
  $region36: #{simple_ffn_forward.1} parent=0 // pred_region
    _
  $region37: #{simple_ffn_forward.1} parent=0 // pred_fallthru
    _

</llo_original>
